<compile_context>
chip_gen: v7x
topology: tpu7x:2x2x1
jax: 0.10.0
libtpu: 0.0.40
codegen_flags: <defaults>
</compile_context>

<pallas_src>
import functools
import math

import jax
import jax.numpy as jnp
from jax.experimental import pallas as pl
from jax.experimental.pallas import tpu as pltpu


# ---------------------------------------------------------------------------
# Fused Block35 kernel (one grid step == one image)
# ---------------------------------------------------------------------------

def _block35_kernel(x_ref, w1_ref, b1_ref,
                    w3a_ref, b3a_ref, w3b_ref, b3b_ref, w3c_ref, b3c_ref,
                    wh_ref, bh_ref,
                    o_ref,
                    pad_ref, col_ref, cat_ref,
                    *, scale):
    _, H, W, C = x_ref.shape          # C == 256
    HW = H * W
    CB = 32                           # per-branch channel width

    # ---- load the input once: f32 residual + bf16 MXU operand -------------
    x = x_ref[...].reshape(HW, C)
    xb = x.astype(jnp.bfloat16)

    # ---- fused branch-entry 1x1 convs: one (HW,256)@(256,96) matmul -------
    y = jnp.dot(xb, w1_ref[...], preferred_element_type=jnp.float32)
    y = jnp.maximum(y + b1_ref[...], 0.0)        # lanes: [x0 | t1 | t2]
    cat_ref[...] = y                             # slot 0 (x0) is already final

    # zero the 3x3 padding border once; the interior is overwritten per conv
    pad_ref[...] = jnp.zeros_like(pad_ref)

    def conv3x3(t, w_ref_, b_ref_):
        """3x3 / stride 1 / pad 1 conv (+folded BN) + ReLU via im2col matmul."""
        pad_ref[1:H + 1, 1:W + 1, :] = t.reshape(H, W, CB)
        for k in range(9):                       # build (HW, 288) im2col slab
            dy, dx = divmod(k, 3)
            col_ref[:, k * CB:(k + 1) * CB] = (
                pad_ref[dy:dy + H, dx:dx + W, :].reshape(HW, CB))
        acc = jnp.dot(col_ref[...].astype(jnp.bfloat16), w_ref_[...],
                      preferred_element_type=jnp.float32)
        return jnp.maximum(acc + b_ref_[...], 0.0)

    # branch1: 1x1 -> 3x3        branch2: 1x1 -> 3x3 -> 3x3
    x1 = conv3x3(y[:, CB:2 * CB], w3a_ref, b3a_ref)
    u = conv3x3(y[:, 2 * CB:3 * CB], w3b_ref, b3b_ref)
    x2 = conv3x3(u, w3c_ref, b3c_ref)

    # ---- concat in VMEM: overwrite the t1 / t2 slots with 3x3 outputs -----
    cat_ref[:, CB:2 * CB] = x1
    cat_ref[:, 2 * CB:3 * CB] = x2

    # ---- head 1x1 conv (with bias) + scaled residual + ReLU ----------------
    out = jnp.dot(cat_ref[...].astype(jnp.bfloat16), wh_ref[...],
                  preferred_element_type=jnp.float32)
    out = (out + bh_ref[...]) * scale + x
    o_ref[...] = jnp.maximum(out, 0.0).reshape(1, H, W, C).astype(o_ref.dtype)


# ---------------------------------------------------------------------------
# Pallas-call wrapper
# ---------------------------------------------------------------------------

def block35_forward_nhwc(x_nhwc, params, scale=1.0):
    N, H, W, C = x_nhwc.shape
    assert C == 256, "Block35 requires 256 input channels"

    def _const2d(a):
        return pl.BlockSpec(a.shape, lambda n: (0, 0))

    w1, b1 = params["w1"], params["b1"]
    w3a, b3a = params["w3a"], params["b3a"]
    w3b, b3b = params["w3b"], params["b3b"]
    w3c, b3c = params["w3c"], params["b3c"]
    wh, bh = params["wh"], params["bh"]

    return pl.pallas_call(
        functools.partial(_block35_kernel, scale=scale),
        out_shape=jax.ShapeDtypeStruct((N, H, W, C), x_nhwc.dtype),
        grid=(N,),
        in_specs=[
            pl.BlockSpec((1, H, W, C), lambda n: (n, 0, 0, 0)),   # x (per image)
            _const2d(w1), _const2d(b1),
            _const2d(w3a), _const2d(b3a),
            _const2d(w3b), _const2d(b3b),
            _const2d(w3c), _const2d(b3c),
            _const2d(wh), _const2d(bh),
        ],
        out_specs=pl.BlockSpec((1, H, W, C), lambda n: (n, 0, 0, 0)),
        scratch_shapes=[
            pltpu.VMEM((H + 2, W + 2, 32), jnp.float32),   # zero-padded 3x3 input
            pltpu.VMEM((H * W, 9 * 32), jnp.float32),      # im2col slab (K=288)
            pltpu.VMEM((H * W, 96), jnp.float32),          # branch-concat buffer
        ],
        compiler_params=pltpu.CompilerParams(
            dimension_semantics=("parallel",)),
    )(x_nhwc, w1, b1, w3a, b3a, w3b, b3b, w3c, b3c, wh, bh)


def block35_forward(x_nchw, params, scale=1.0):
    # NCHW (PyTorch convention) <-> NHWC (TPU-friendly) only at the boundary.
    x = jnp.transpose(x_nchw, (0, 2, 3, 1))
    out = block35_forward_nhwc(x, params, scale)
    return jnp.transpose(out, (0, 3, 1, 2))


# ---------------------------------------------------------------------------
# Parameters (deterministic synthetic init) + BN folding
# ---------------------------------------------------------------------------

def _bn_stats(key, c):
    k1, k2, k3, k4 = jax.random.split(key, 4)
    gamma = 1.0 + 0.1 * jax.random.normal(k1, (c,), jnp.float32)
    beta = 0.1 * jax.random.normal(k2, (c,), jnp.float32)
    mean = 0.1 * jax.random.normal(k3, (c,), jnp.float32)
    var = 1.0 + 0.1 * jnp.abs(jax.random.normal(k4, (c,), jnp.float32))
    return gamma, beta, mean, var


def _fold_bn(w_hwio, gamma, beta, mean, var, eps=1e-3):
    s = gamma / jnp.sqrt(var + eps)          # (Cout,)
    return w_hwio * s, (beta - mean * s)     # broadcast over last (Cout) dim


def _basic_conv_params(key, ksize, cin, cout):
    kw_, kb_ = jax.random.split(key)
    fan_in = ksize * ksize * cin
    w = jax.random.normal(kw_, (ksize, ksize, cin, cout), jnp.float32)
    w = w * (1.0 / math.sqrt(fan_in))
    return _fold_bn(w, *_bn_stats(kb_, cout))


def make_params(key):
    ks = jax.random.split(key, 8)
    w0, b0 = _basic_conv_params(ks[0], 1, 256, 32)     # branch0: 1x1 256->32
    w10, b10 = _basic_conv_params(ks[1], 1, 256, 32)   # branch1: 1x1 256->32
    w11, b11 = _basic_conv_params(ks[2], 3, 32, 32)    # branch1: 3x3 32->32
    w20, b20 = _basic_conv_params(ks[3], 1, 256, 32)   # branch2: 1x1 256->32
    w21, b21 = _basic_conv_params(ks[4], 3, 32, 32)    # branch2: 3x3 32->32
    w22, b22 = _basic_conv_params(ks[5], 3, 32, 32)    # branch2: 3x3 32->32
    wc = jax.random.normal(ks[6], (96, 256), jnp.float32) * (1.0 / math.sqrt(96))
    bc = 0.01 * jax.random.normal(ks[7], (256,), jnp.float32)

    bf = jnp.bfloat16
    return {
        # fused branch-entry 1x1 convs: lanes [branch0 | branch1[0] | branch2[0]]
        "w1": jnp.concatenate([w0.reshape(256, 32), w10.reshape(256, 32),
                               w20.reshape(256, 32)], axis=1).astype(bf),
        "b1": jnp.concatenate([b0, b10, b20]).reshape(1, 96),
        # im2col weights (3*3*32, 32) for the 3x3 convs
        "w3a": w11.reshape(288, 32).astype(bf), "b3a": b11.reshape(1, 32),
        "w3b": w21.reshape(288, 32).astype(bf), "b3b": b21.reshape(1, 32),
        "w3c": w22.reshape(288, 32).astype(bf), "b3c": b22.reshape(1, 32),
        # head 1x1 conv 96->256 (with bias, no BN)
        "wh": wc.astype(bf), "bh": bc.reshape(1, 256),
    }


# ---------------------------------------------------------------------------

if __name__ == "__main__":
    key = jax.random.PRNGKey(0)
    kx, kp = jax.random.split(key)

    # Block35 requires 256 input channels; keep batch/spatial small.
    x = jax.random.normal(kx, (2, 256, 8, 8), jnp.float32)
    params = make_params(kp)

    fwd = jax.jit(functools.partial(block35_forward, scale=0.17))
    out = jax.block_until_ready(fwd(x, params))

    assert out.shape == (2, 256, 8, 8), out.shape
    assert bool(jnp.all(jnp.isfinite(out)))
    assert bool(jnp.all(out >= 0.0))  # ReLU output
    print("KERNEL_OK")
</pallas_src>

<mosaic_0001>
module attributes {stable_mosaic.version = 11 : i64} {
  func.func @_block35_kernel(%arg0: i32, %arg1: memref<1x8x8x256xf32, #tpu.memory_space<vmem>>, %arg2: memref<256x96xbf16, #tpu.memory_space<vmem>>, %arg3: memref<1x96xf32, #tpu.memory_space<vmem>>, %arg4: memref<288x32xbf16, #tpu.memory_space<vmem>>, %arg5: memref<1x32xf32, #tpu.memory_space<vmem>>, %arg6: memref<288x32xbf16, #tpu.memory_space<vmem>>, %arg7: memref<1x32xf32, #tpu.memory_space<vmem>>, %arg8: memref<288x32xbf16, #tpu.memory_space<vmem>>, %arg9: memref<1x32xf32, #tpu.memory_space<vmem>>, %arg10: memref<96x256xbf16, #tpu.memory_space<vmem>>, %arg11: memref<1x256xf32, #tpu.memory_space<vmem>>, %arg12: memref<1x8x8x256xf32, #tpu.memory_space<vmem>>, %arg13: memref<10x10x32xf32, #tpu.memory_space<vmem>>, %arg14: memref<64x288xf32, #tpu.memory_space<vmem>>, %arg15: memref<64x96xf32, #tpu.memory_space<vmem>>) attributes {dimension_semantics = [#tpu.dimension_semantics<parallel>], iteration_bounds = array<i64: 2>, scalar_prefetch = 0 : i64, scratch_operands = 3 : i64, tpu.core_type = #tpu.core_type<tc>, window_params = [{transform_indices = @transform_0, window_bounds = array<i64: 1, 8, 8, 256>}, {pipeline_mode = #tpu.pipeline_mode<synchronous>, transform_indices = @transform_1, window_bounds = array<i64: 256, 96>}, {pipeline_mode = #tpu.pipeline_mode<synchronous>, transform_indices = @transform_2, window_bounds = array<i64: 1, 96>}, {pipeline_mode = #tpu.pipeline_mode<synchronous>, transform_indices = @transform_3, window_bounds = array<i64: 288, 32>}, {pipeline_mode = #tpu.pipeline_mode<synchronous>, transform_indices = @transform_4, window_bounds = array<i64: 1, 32>}, {pipeline_mode = #tpu.pipeline_mode<synchronous>, transform_indices = @transform_5, window_bounds = array<i64: 288, 32>}, {pipeline_mode = #tpu.pipeline_mode<synchronous>, transform_indices = @transform_6, window_bounds = array<i64: 1, 32>}, {pipeline_mode = #tpu.pipeline_mode<synchronous>, transform_indices = @transform_7, window_bounds = array<i64: 288, 32>}, {pipeline_mode = #tpu.pipeline_mode<synchronous>, transform_indices = @transform_8, window_bounds = array<i64: 1, 32>}, {pipeline_mode = #tpu.pipeline_mode<synchronous>, transform_indices = @transform_9, window_bounds = array<i64: 96, 256>}, {pipeline_mode = #tpu.pipeline_mode<synchronous>, transform_indices = @transform_10, window_bounds = array<i64: 1, 256>}, {transform_indices = @transform_11, window_bounds = array<i64: 1, 8, 8, 256>}]} {
    %c0 = arith.constant 0 : index
    %c0_0 = arith.constant 0 : index
    %c0_1 = arith.constant 0 : index
    %c0_2 = arith.constant 0 : index
    %0 = vector.load %arg1[%c0, %c0_0, %c0_1, %c0_2] : memref<1x8x8x256xf32, #tpu.memory_space<vmem>>, vector<1x8x8x256xf32>
    %1 = vector.shape_cast %0 : vector<1x8x8x256xf32> to vector<64x256xf32>
    %2 = arith.truncf %1 : vector<64x256xf32> to vector<64x256xbf16>
    %c0_3 = arith.constant 0 : index
    %c0_4 = arith.constant 0 : index
    %3 = vector.load %arg2[%c0_3, %c0_4] : memref<256x96xbf16, #tpu.memory_space<vmem>>, vector<256x96xbf16>
    %cst = arith.constant dense<0.000000e+00> : vector<64x96xf32>
    %4 = tpu.matmul %2, %3, %cst {dimension_numbers = #tpu.dot_dimension_numbers<[1], [0], [0], [1], [0, 0, 1, 1], [], []>} : vector<64x256xbf16>, vector<256x96xbf16>, vector<64x96xf32> -> vector<64x96xf32>
    %c0_5 = arith.constant 0 : index
    %c0_6 = arith.constant 0 : index
    %5 = vector.load %arg3[%c0_5, %c0_6] : memref<1x96xf32, #tpu.memory_space<vmem>>, vector<1x96xf32>
    %6 = vector.broadcast %5 : vector<1x96xf32> to vector<64x96xf32>
    %7 = arith.addf %4, %6 : vector<64x96xf32>
    %cst_7 = arith.constant 0.000000e+00 : f32
    %8 = vector.broadcast %cst_7 : f32 to vector<64x96xf32>
    %9 = arith.maximumf %7, %8 : vector<64x96xf32>
    %c0_8 = arith.constant 0 : index
    %c0_9 = arith.constant 0 : index
    %10 = vector.load %arg15[%c0_8, %c0_9] : memref<64x96xf32, #tpu.memory_space<vmem>>, vector<64x96xf32>
    tpu.vector_store %arg15[%c0_8, %c0_9], %9 {strides = array<i32>} : memref<64x96xf32, #tpu.memory_space<vmem>>, vector<64x96xf32>,
    %cst_10 = arith.constant 0.000000e+00 : f32
    %11 = vector.broadcast %cst_10 : f32 to vector<10x10x32xf32>
    %c0_11 = arith.constant 0 : index
    %c0_12 = arith.constant 0 : index
    %c0_13 = arith.constant 0 : index
    %12 = vector.load %arg13[%c0_11, %c0_12, %c0_13] : memref<10x10x32xf32, #tpu.memory_space<vmem>>, vector<10x10x32xf32>
    tpu.vector_store %arg13[%c0_11, %c0_12, %c0_13], %11 {strides = array<i32>} : memref<10x10x32xf32, #tpu.memory_space<vmem>>, vector<10x10x32xf32>,
    %13 = vector.extract_strided_slice %9 {offsets = [0, 32], sizes = [64, 32], strides = [1, 1]} : vector<64x96xf32> to vector<64x32xf32>
    %14 = vector.shape_cast %13 : vector<64x32xf32> to vector<8x8x32xf32>
    %c1 = arith.constant 1 : index
    %c1_14 = arith.constant 1 : index
    %c0_15 = arith.constant 0 : index
    %15 = vector.load %arg13[%c1, %c1_14, %c0_15] : memref<10x10x32xf32, #tpu.memory_space<vmem>>, vector<8x8x32xf32>
    tpu.vector_store %arg13[%c1, %c1_14, %c0_15], %14 {strides = array<i32>} : memref<10x10x32xf32, #tpu.memory_space<vmem>>, vector<8x8x32xf32>,
    %c0_16 = arith.constant 0 : index
    %c0_17 = arith.constant 0 : index
    %c0_18 = arith.constant 0 : index
    %16 = vector.load %arg13[%c0_16, %c0_17, %c0_18] : memref<10x10x32xf32, #tpu.memory_space<vmem>>, vector<8x8x32xf32>
    %17 = vector.shape_cast %16 : vector<8x8x32xf32> to vector<64x32xf32>
    %c0_19 = arith.constant 0 : index
    %c0_20 = arith.constant 0 : index
    %18 = vector.load %arg14[%c0_19, %c0_20] : memref<64x288xf32, #tpu.memory_space<vmem>>, vector<64x32xf32>
    tpu.vector_store %arg14[%c0_19, %c0_20], %17 {strides = array<i32>} : memref<64x288xf32, #tpu.memory_space<vmem>>, vector<64x32xf32>,
    %c0_21 = arith.constant 0 : index
    %c1_22 = arith.constant 1 : index
    %c0_23 = arith.constant 0 : index
    %19 = vector.load %arg13[%c0_21, %c1_22, %c0_23] : memref<10x10x32xf32, #tpu.memory_space<vmem>>, vector<8x8x32xf32>
    %20 = vector.shape_cast %19 : vector<8x8x32xf32> to vector<64x32xf32>
    %c0_24 = arith.constant 0 : index
    %c32 = arith.constant 32 : index
    %21 = vector.load %arg14[%c0_24, %c32] : memref<64x288xf32, #tpu.memory_space<vmem>>, vector<64x32xf32>
    tpu.vector_store %arg14[%c0_24, %c32], %20 {strides = array<i32>} : memref<64x288xf32, #tpu.memory_space<vmem>>, vector<64x32xf32>,
    %c0_25 = arith.constant 0 : index
    %c2 = arith.constant 2 : index
    %c0_26 = arith.constant 0 : index
    %22 = vector.load %arg13[%c0_25, %c2, %c0_26] : memref<10x10x32xf32, #tpu.memory_space<vmem>>, vector<8x8x32xf32>
    %23 = vector.shape_cast %22 : vector<8x8x32xf32> to vector<64x32xf32>
    %c0_27 = arith.constant 0 : index
    %c64 = arith.constant 64 : index
    %24 = vector.load %arg14[%c0_27, %c64] : memref<64x288xf32, #tpu.memory_space<vmem>>, vector<64x32xf32>
    tpu.vector_store %arg14[%c0_27, %c64], %23 {strides = array<i32>} : memref<64x288xf32, #tpu.memory_space<vmem>>, vector<64x32xf32>,
    %c1_28 = arith.constant 1 : index
    %c0_29 = arith.constant 0 : index
    %c0_30 = arith.constant 0 : index
    %25 = vector.load %arg13[%c1_28, %c0_29, %c0_30] : memref<10x10x32xf32, #tpu.memory_space<vmem>>, vector<8x8x32xf32>
    %26 = vector.shape_cast %25 : vector<8x8x32xf32> to vector<64x32xf32>
    %c0_31 = arith.constant 0 : index
    %c96 = arith.constant 96 : index
    %27 = vector.load %arg14[%c0_31, %c96] : memref<64x288xf32, #tpu.memory_space<vmem>>, vector<64x32xf32>
    tpu.vector_store %arg14[%c0_31, %c96], %26 {strides = array<i32>} : memref<64x288xf32, #tpu.memory_space<vmem>>, vector<64x32xf32>,
    %c1_32 = arith.constant 1 : index
    %c1_33 = arith.constant 1 : index
    %c0_34 = arith.constant 0 : index
    %28 = vector.load %arg13[%c1_32, %c1_33, %c0_34] : memref<10x10x32xf32, #tpu.memory_space<vmem>>, vector<8x8x32xf32>
    %29 = vector.shape_cast %28 : vector<8x8x32xf32> to vector<64x32xf32>
    %c0_35 = arith.constant 0 : index
    %c128 = arith.constant 128 : index
    %30 = vector.load %arg14[%c0_35, %c128] : memref<64x288xf32, #tpu.memory_space<vmem>>, vector<64x32xf32>
    tpu.vector_store %arg14[%c0_35, %c128], %29 {strides = array<i32>} : memref<64x288xf32, #tpu.memory_space<vmem>>, vector<64x32xf32>,
    %c1_36 = arith.constant 1 : index
    %c2_37 = arith.constant 2 : index
    %c0_38 = arith.constant 0 : index
    %31 = vector.load %arg13[%c1_36, %c2_37, %c0_38] : memref<10x10x32xf32, #tpu.memory_space<vmem>>, vector<8x8x32xf32>
    %32 = vector.shape_cast %31 : vector<8x8x32xf32> to vector<64x32xf32>
    %c0_39 = arith.constant 0 : index
    %c160 = arith.constant 160 : index
    %33 = vector.load %arg14[%c0_39, %c160] : memref<64x288xf32, #tpu.memory_space<vmem>>, vector<64x32xf32>
    tpu.vector_store %arg14[%c0_39, %c160], %32 {strides = array<i32>} : memref<64x288xf32, #tpu.memory_space<vmem>>, vector<64x32xf32>,
    %c2_40 = arith.constant 2 : index
    %c0_41 = arith.constant 0 : index
    %c0_42 = arith.constant 0 : index
    %34 = vector.load %arg13[%c2_40, %c0_41, %c0_42] : memref<10x10x32xf32, #tpu.memory_space<vmem>>, vector<8x8x32xf32>
    %35 = vector.shape_cast %34 : vector<8x8x32xf32> to vector<64x32xf32>
    %c0_43 = arith.constant 0 : index
    %c192 = arith.constant 192 : index
    %36 = vector.load %arg14[%c0_43, %c192] : memref<64x288xf32, #tpu.memory_space<vmem>>, vector<64x32xf32>
    tpu.vector_store %arg14[%c0_43, %c192], %35 {strides = array<i32>} : memref<64x288xf32, #tpu.memory_space<vmem>>, vector<64x32xf32>,
    %c2_44 = arith.constant 2 : index
    %c1_45 = arith.constant 1 : index
    %c0_46 = arith.constant 0 : index
    %37 = vector.load %arg13[%c2_44, %c1_45, %c0_46] : memref<10x10x32xf32, #tpu.memory_space<vmem>>, vector<8x8x32xf32>
    %38 = vector.shape_cast %37 : vector<8x8x32xf32> to vector<64x32xf32>
    %c0_47 = arith.constant 0 : index
    %c224 = arith.constant 224 : index
    %39 = vector.load %arg14[%c0_47, %c224] : memref<64x288xf32, #tpu.memory_space<vmem>>, vector<64x32xf32>
    tpu.vector_store %arg14[%c0_47, %c224], %38 {strides = array<i32>} : memref<64x288xf32, #tpu.memory_space<vmem>>, vector<64x32xf32>,
    %c2_48 = arith.constant 2 : index
    %c2_49 = arith.constant 2 : index
    %c0_50 = arith.constant 0 : index
    %40 = vector.load %arg13[%c2_48, %c2_49, %c0_50] : memref<10x10x32xf32, #tpu.memory_space<vmem>>, vector<8x8x32xf32>
    %41 = vector.shape_cast %40 : vector<8x8x32xf32> to vector<64x32xf32>
    %c0_51 = arith.constant 0 : index
    %c256 = arith.constant 256 : index
    %42 = vector.load %arg14[%c0_51, %c256] : memref<64x288xf32, #tpu.memory_space<vmem>>, vector<64x32xf32>
    tpu.vector_store %arg14[%c0_51, %c256], %41 {strides = array<i32>} : memref<64x288xf32, #tpu.memory_space<vmem>>, vector<64x32xf32>,
    %c0_52 = arith.constant 0 : index
    %c0_53 = arith.constant 0 : index
    %43 = vector.load %arg14[%c0_52, %c0_53] : memref<64x288xf32, #tpu.memory_space<vmem>>, vector<64x288xf32>
    %44 = arith.truncf %43 : vector<64x288xf32> to vector<64x288xbf16>
    %c0_54 = arith.constant 0 : index
    %c0_55 = arith.constant 0 : index
    %45 = vector.load %arg4[%c0_54, %c0_55] : memref<288x32xbf16, #tpu.memory_space<vmem>>, vector<288x32xbf16>
    %cst_56 = arith.constant dense<0.000000e+00> : vector<64x32xf32>
    %46 = tpu.matmul %44, %45, %cst_56 {dimension_numbers = #tpu.dot_dimension_numbers<[1], [0], [0], [1], [0, 0, 1, 1], [], []>} : vector<64x288xbf16>, vector<288x32xbf16>, vector<64x32xf32> -> vector<64x32xf32>
    %c0_57 = arith.constant 0 : index
    %c0_58 = arith.constant 0 : index
    %47 = vector.load %arg5[%c0_57, %c0_58] : memref<1x32xf32, #tpu.memory_space<vmem>>, vector<1x32xf32>
    %48 = vector.broadcast %47 : vector<1x32xf32> to vector<64x32xf32>
    %49 = arith.addf %46, %48 : vector<64x32xf32>
    %cst_59 = arith.constant 0.000000e+00 : f32
    %50 = vector.broadcast %cst_59 : f32 to vector<64x32xf32>
    %51 = arith.maximumf %49, %50 : vector<64x32xf32>
    %52 = vector.extract_strided_slice %9 {offsets = [0, 64], sizes = [64, 32], strides = [1, 1]} : vector<64x96xf32> to vector<64x32xf32>
    %53 = vector.shape_cast %52 : vector<64x32xf32> to vector<8x8x32xf32>
    %c1_60 = arith.constant 1 : index
    %c1_61 = arith.constant 1 : index
    %c0_62 = arith.constant 0 : index
    %54 = vector.load %arg13[%c1_60, %c1_61, %c0_62] : memref<10x10x32xf32, #tpu.memory_space<vmem>>, vector<8x8x32xf32>
    tpu.vector_store %arg13[%c1_60, %c1_61, %c0_62], %53 {strides = array<i32>} : memref<10x10x32xf32, #tpu.memory_space<vmem>>, vector<8x8x32xf32>,
    %c0_63 = arith.constant 0 : index
    %c0_64 = arith.constant 0 : index
    %c0_65 = arith.constant 0 : index
    %55 = vector.load %arg13[%c0_63, %c0_64, %c0_65] : memref<10x10x32xf32, #tpu.memory_space<vmem>>, vector<8x8x32xf32>
    %56 = vector.shape_cast %55 : vector<8x8x32xf32> to vector<64x32xf32>
    %c0_66 = arith.constant 0 : index
    %c0_67 = arith.constant 0 : index
    %57 = vector.load %arg14[%c0_66, %c0_67] : memref<64x288xf32, #tpu.memory_space<vmem>>, vector<64x32xf32>
    tpu.vector_store %arg14[%c0_66, %c0_67], %56 {strides = array<i32>} : memref<64x288xf32, #tpu.memory_space<vmem>>, vector<64x32xf32>,
    %c0_68 = arith.constant 0 : index
    %c1_69 = arith.constant 1 : index
    %c0_70 = arith.constant 0 : index
    %58 = vector.load %arg13[%c0_68, %c1_69, %c0_70] : memref<10x10x32xf32, #tpu.memory_space<vmem>>, vector<8x8x32xf32>
    %59 = vector.shape_cast %58 : vector<8x8x32xf32> to vector<64x32xf32>
    %c0_71 = arith.constant 0 : index
    %c32_72 = arith.constant 32 : index
    %60 = vector.load %arg14[%c0_71, %c32_72] : memref<64x288xf32, #tpu.memory_space<vmem>>, vector<64x32xf32>
    tpu.vector_store %arg14[%c0_71, %c32_72], %59 {strides = array<i32>} : memref<64x288xf32, #tpu.memory_space<vmem>>, vector<64x32xf32>,
    %c0_73 = arith.constant 0 : index
    %c2_74 = arith.constant 2 : index
    %c0_75 = arith.constant 0 : index
    %61 = vector.load %arg13[%c0_73, %c2_74, %c0_75] : memref<10x10x32xf32, #tpu.memory_space<vmem>>, vector<8x8x32xf32>
    %62 = vector.shape_cast %61 : vector<8x8x32xf32> to vector<64x32xf32>
    %c0_76 = arith.constant 0 : index
    %c64_77 = arith.constant 64 : index
    %63 = vector.load %arg14[%c0_76, %c64_77] : memref<64x288xf32, #tpu.memory_space<vmem>>, vector<64x32xf32>
    tpu.vector_store %arg14[%c0_76, %c64_77], %62 {strides = array<i32>} : memref<64x288xf32, #tpu.memory_space<vmem>>, vector<64x32xf32>,
    %c1_78 = arith.constant 1 : index
    %c0_79 = arith.constant 0 : index
    %c0_80 = arith.constant 0 : index
    %64 = vector.load %arg13[%c1_78, %c0_79, %c0_80] : memref<10x10x32xf32, #tpu.memory_space<vmem>>, vector<8x8x32xf32>
    %65 = vector.shape_cast %64 : vector<8x8x32xf32> to vector<64x32xf32>
    %c0_81 = arith.constant 0 : index
    %c96_82 = arith.constant 96 : index
    %66 = vector.load %arg14[%c0_81, %c96_82] : memref<64x288xf32, #tpu.memory_space<vmem>>, vector<64x32xf32>
    tpu.vector_store %arg14[%c0_81, %c96_82], %65 {strides = array<i32>} : memref<64x288xf32, #tpu.memory_space<vmem>>, vector<64x32xf32>,
    %c1_83 = arith.constant 1 : index
    %c1_84 = arith.constant 1 : index
    %c0_85 = arith.constant 0 : index
    %67 = vector.load %arg13[%c1_83, %c1_84, %c0_85] : memref<10x10x32xf32, #tpu.memory_space<vmem>>, vector<8x8x32xf32>
    %68 = vector.shape_cast %67 : vector<8x8x32xf32> to vector<64x32xf32>
    %c0_86 = arith.constant 0 : index
    %c128_87 = arith.constant 128 : index
    %69 = vector.load %arg14[%c0_86, %c128_87] : memref<64x288xf32, #tpu.memory_space<vmem>>, vector<64x32xf32>
    tpu.vector_store %arg14[%c0_86, %c128_87], %68 {strides = array<i32>} : memref<64x288xf32, #tpu.memory_space<vmem>>, vector<64x32xf32>,
    %c1_88 = arith.constant 1 : index
    %c2_89 = arith.constant 2 : index
    %c0_90 = arith.constant 0 : index
    %70 = vector.load %arg13[%c1_88, %c2_89, %c0_90] : memref<10x10x32xf32, #tpu.memory_space<vmem>>, vector<8x8x32xf32>
    %71 = vector.shape_cast %70 : vector<8x8x32xf32> to vector<64x32xf32>
    %c0_91 = arith.constant 0 : index
    %c160_92 = arith.constant 160 : index
    %72 = vector.load %arg14[%c0_91, %c160_92] : memref<64x288xf32, #tpu.memory_space<vmem>>, vector<64x32xf32>
    tpu.vector_store %arg14[%c0_91, %c160_92], %71 {strides = array<i32>} : memref<64x288xf32, #tpu.memory_space<vmem>>, vector<64x32xf32>,
    %c2_93 = arith.constant 2 : index
    %c0_94 = arith.constant 0 : index
    %c0_95 = arith.constant 0 : index
    %73 = vector.load %arg13[%c2_93, %c0_94, %c0_95] : memref<10x10x32xf32, #tpu.memory_space<vmem>>, vector<8x8x32xf32>
    %74 = vector.shape_cast %73 : vector<8x8x32xf32> to vector<64x32xf32>
    %c0_96 = arith.constant 0 : index
    %c192_97 = arith.constant 192 : index
    %75 = vector.load %arg14[%c0_96, %c192_97] : memref<64x288xf32, #tpu.memory_space<vmem>>, vector<64x32xf32>
    tpu.vector_store %arg14[%c0_96, %c192_97], %74 {strides = array<i32>} : memref<64x288xf32, #tpu.memory_space<vmem>>, vector<64x32xf32>,
    %c2_98 = arith.constant 2 : index
    %c1_99 = arith.constant 1 : index
    %c0_100 = arith.constant 0 : index
    %76 = vector.load %arg13[%c2_98, %c1_99, %c0_100] : memref<10x10x32xf32, #tpu.memory_space<vmem>>, vector<8x8x32xf32>
    %77 = vector.shape_cast %76 : vector<8x8x32xf32> to vector<64x32xf32>
    %c0_101 = arith.constant 0 : index
    %c224_102 = arith.constant 224 : index
    %78 = vector.load %arg14[%c0_101, %c224_102] : memref<64x288xf32, #tpu.memory_space<vmem>>, vector<64x32xf32>
    tpu.vector_store %arg14[%c0_101, %c224_102], %77 {strides = array<i32>} : memref<64x288xf32, #tpu.memory_space<vmem>>, vector<64x32xf32>,
    %c2_103 = arith.constant 2 : index
    %c2_104 = arith.constant 2 : index
    %c0_105 = arith.constant 0 : index
    %79 = vector.load %arg13[%c2_103, %c2_104, %c0_105] : memref<10x10x32xf32, #tpu.memory_space<vmem>>, vector<8x8x32xf32>
    %80 = vector.shape_cast %79 : vector<8x8x32xf32> to vector<64x32xf32>
    %c0_106 = arith.constant 0 : index
    %c256_107 = arith.constant 256 : index
    %81 = vector.load %arg14[%c0_106, %c256_107] : memref<64x288xf32, #tpu.memory_space<vmem>>, vector<64x32xf32>
    tpu.vector_store %arg14[%c0_106, %c256_107], %80 {strides = array<i32>} : memref<64x288xf32, #tpu.memory_space<vmem>>, vector<64x32xf32>,
    %c0_108 = arith.constant 0 : index
    %c0_109 = arith.constant 0 : index
    %82 = vector.load %arg14[%c0_108, %c0_109] : memref<64x288xf32, #tpu.memory_space<vmem>>, vector<64x288xf32>
    %83 = arith.truncf %82 : vector<64x288xf32> to vector<64x288xbf16>
    %c0_110 = arith.constant 0 : index
    %c0_111 = arith.constant 0 : index
    %84 = vector.load %arg6[%c0_110, %c0_111] : memref<288x32xbf16, #tpu.memory_space<vmem>>, vector<288x32xbf16>
    %cst_112 = arith.constant dense<0.000000e+00> : vector<64x32xf32>
    %85 = tpu.matmul %83, %84, %cst_112 {dimension_numbers = #tpu.dot_dimension_numbers<[1], [0], [0], [1], [0, 0, 1, 1], [], []>} : vector<64x288xbf16>, vector<288x32xbf16>, vector<64x32xf32> -> vector<64x32xf32>
    %c0_113 = arith.constant 0 : index
    %c0_114 = arith.constant 0 : index
    %86 = vector.load %arg7[%c0_113, %c0_114] : memref<1x32xf32, #tpu.memory_space<vmem>>, vector<1x32xf32>
    %87 = vector.broadcast %86 : vector<1x32xf32> to vector<64x32xf32>
    %88 = arith.addf %85, %87 : vector<64x32xf32>
    %cst_115 = arith.constant 0.000000e+00 : f32
    %89 = vector.broadcast %cst_115 : f32 to vector<64x32xf32>
    %90 = arith.maximumf %88, %89 : vector<64x32xf32>
    %91 = vector.shape_cast %90 : vector<64x32xf32> to vector<8x8x32xf32>
    %c1_116 = arith.constant 1 : index
    %c1_117 = arith.constant 1 : index
    %c0_118 = arith.constant 0 : index
    %92 = vector.load %arg13[%c1_116, %c1_117, %c0_118] : memref<10x10x32xf32, #tpu.memory_space<vmem>>, vector<8x8x32xf32>
    tpu.vector_store %arg13[%c1_116, %c1_117, %c0_118], %91 {strides = array<i32>} : memref<10x10x32xf32, #tpu.memory_space<vmem>>, vector<8x8x32xf32>,
    %c0_119 = arith.constant 0 : index
    %c0_120 = arith.constant 0 : index
    %c0_121 = arith.constant 0 : index
    %93 = vector.load %arg13[%c0_119, %c0_120, %c0_121] : memref<10x10x32xf32, #tpu.memory_space<vmem>>, vector<8x8x32xf32>
    %94 = vector.shape_cast %93 : vector<8x8x32xf32> to vector<64x32xf32>
    %c0_122 = arith.constant 0 : index
    %c0_123 = arith.constant 0 : index
    %95 = vector.load %arg14[%c0_122, %c0_123] : memref<64x288xf32, #tpu.memory_space<vmem>>, vector<64x32xf32>
    tpu.vector_store %arg14[%c0_122, %c0_123], %94 {strides = array<i32>} : memref<64x288xf32, #tpu.memory_space<vmem>>, vector<64x32xf32>,
    %c0_124 = arith.constant 0 : index
    %c1_125 = arith.constant 1 : index
    %c0_126 = arith.constant 0 : index
    %96 = vector.load %arg13[%c0_124, %c1_125, %c0_126] : memref<10x10x32xf32, #tpu.memory_space<vmem>>, vector<8x8x32xf32>
    %97 = vector.shape_cast %96 : vector<8x8x32xf32> to vector<64x32xf32>
    %c0_127 = arith.constant 0 : index
    %c32_128 = arith.constant 32 : index
    %98 = vector.load %arg14[%c0_127, %c32_128] : memref<64x288xf32, #tpu.memory_space<vmem>>, vector<64x32xf32>
    tpu.vector_store %arg14[%c0_127, %c32_128], %97 {strides = array<i32>} : memref<64x288xf32, #tpu.memory_space<vmem>>, vector<64x32xf32>,
    %c0_129 = arith.constant 0 : index
    %c2_130 = arith.constant 2 : index
    %c0_131 = arith.constant 0 : index
    %99 = vector.load %arg13[%c0_129, %c2_130, %c0_131] : memref<10x10x32xf32, #tpu.memory_space<vmem>>, vector<8x8x32xf32>
    %100 = vector.shape_cast %99 : vector<8x8x32xf32> to vector<64x32xf32>
    %c0_132 = arith.constant 0 : index
    %c64_133 = arith.constant 64 : index
    %101 = vector.load %arg14[%c0_132, %c64_133] : memref<64x288xf32, #tpu.memory_space<vmem>>, vector<64x32xf32>
    tpu.vector_store %arg14[%c0_132, %c64_133], %100 {strides = array<i32>} : memref<64x288xf32, #tpu.memory_space<vmem>>, vector<64x32xf32>,
    %c1_134 = arith.constant 1 : index
    %c0_135 = arith.constant 0 : index
    %c0_136 = arith.constant 0 : index
    %102 = vector.load %arg13[%c1_134, %c0_135, %c0_136] : memref<10x10x32xf32, #tpu.memory_space<vmem>>, vector<8x8x32xf32>
    %103 = vector.shape_cast %102 : vector<8x8x32xf32> to vector<64x32xf32>
    %c0_137 = arith.constant 0 : index
    %c96_138 = arith.constant 96 : index
    %104 = vector.load %arg14[%c0_137, %c96_138] : memref<64x288xf32, #tpu.memory_space<vmem>>, vector<64x32xf32>
    tpu.vector_store %arg14[%c0_137, %c96_138], %103 {strides = array<i32>} : memref<64x288xf32, #tpu.memory_space<vmem>>, vector<64x32xf32>,
    %c1_139 = arith.constant 1 : index
    %c1_140 = arith.constant 1 : index
    %c0_141 = arith.constant 0 : index
    %105 = vector.load %arg13[%c1_139, %c1_140, %c0_141] : memref<10x10x32xf32, #tpu.memory_space<vmem>>, vector<8x8x32xf32>
    %106 = vector.shape_cast %105 : vector<8x8x32xf32> to vector<64x32xf32>
    %c0_142 = arith.constant 0 : index
    %c128_143 = arith.constant 128 : index
    %107 = vector.load %arg14[%c0_142, %c128_143] : memref<64x288xf32, #tpu.memory_space<vmem>>, vector<64x32xf32>
    tpu.vector_store %arg14[%c0_142, %c128_143], %106 {strides = array<i32>} : memref<64x288xf32, #tpu.memory_space<vmem>>, vector<64x32xf32>,
    %c1_144 = arith.constant 1 : index
    %c2_145 = arith.constant 2 : index
    %c0_146 = arith.constant 0 : index
    %108 = vector.load %arg13[%c1_144, %c2_145, %c0_146] : memref<10x10x32xf32, #tpu.memory_space<vmem>>, vector<8x8x32xf32>
    %109 = vector.shape_cast %108 : vector<8x8x32xf32> to vector<64x32xf32>
    %c0_147 = arith.constant 0 : index
    %c160_148 = arith.constant 160 : index
    %110 = vector.load %arg14[%c0_147, %c160_148] : memref<64x288xf32, #tpu.memory_space<vmem>>, vector<64x32xf32>
    tpu.vector_store %arg14[%c0_147, %c160_148], %109 {strides = array<i32>} : memref<64x288xf32, #tpu.memory_space<vmem>>, vector<64x32xf32>,
    %c2_149 = arith.constant 2 : index
    %c0_150 = arith.constant 0 : index
    %c0_151 = arith.constant 0 : index
    %111 = vector.load %arg13[%c2_149, %c0_150, %c0_151] : memref<10x10x32xf32, #tpu.memory_space<vmem>>, vector<8x8x32xf32>
    %112 = vector.shape_cast %111 : vector<8x8x32xf32> to vector<64x32xf32>
    %c0_152 = arith.constant 0 : index
    %c192_153 = arith.constant 192 : index
    %113 = vector.load %arg14[%c0_152, %c192_153] : memref<64x288xf32, #tpu.memory_space<vmem>>, vector<64x32xf32>
    tpu.vector_store %arg14[%c0_152, %c192_153], %112 {strides = array<i32>} : memref<64x288xf32, #tpu.memory_space<vmem>>, vector<64x32xf32>,
    %c2_154 = arith.constant 2 : index
    %c1_155 = arith.constant 1 : index
    %c0_156 = arith.constant 0 : index
    %114 = vector.load %arg13[%c2_154, %c1_155, %c0_156] : memref<10x10x32xf32, #tpu.memory_space<vmem>>, vector<8x8x32xf32>
    %115 = vector.shape_cast %114 : vector<8x8x32xf32> to vector<64x32xf32>
    %c0_157 = arith.constant 0 : index
    %c224_158 = arith.constant 224 : index
    %116 = vector.load %arg14[%c0_157, %c224_158] : memref<64x288xf32, #tpu.memory_space<vmem>>, vector<64x32xf32>
    tpu.vector_store %arg14[%c0_157, %c224_158], %115 {strides = array<i32>} : memref<64x288xf32, #tpu.memory_space<vmem>>, vector<64x32xf32>,
    %c2_159 = arith.constant 2 : index
    %c2_160 = arith.constant 2 : index
    %c0_161 = arith.constant 0 : index
    %117 = vector.load %arg13[%c2_159, %c2_160, %c0_161] : memref<10x10x32xf32, #tpu.memory_space<vmem>>, vector<8x8x32xf32>
    %118 = vector.shape_cast %117 : vector<8x8x32xf32> to vector<64x32xf32>
    %c0_162 = arith.constant 0 : index
    %c256_163 = arith.constant 256 : index
    %119 = vector.load %arg14[%c0_162, %c256_163] : memref<64x288xf32, #tpu.memory_space<vmem>>, vector<64x32xf32>
    tpu.vector_store %arg14[%c0_162, %c256_163], %118 {strides = array<i32>} : memref<64x288xf32, #tpu.memory_space<vmem>>, vector<64x32xf32>,
    %c0_164 = arith.constant 0 : index
    %c0_165 = arith.constant 0 : index
    %120 = vector.load %arg14[%c0_164, %c0_165] : memref<64x288xf32, #tpu.memory_space<vmem>>, vector<64x288xf32>
    %121 = arith.truncf %120 : vector<64x288xf32> to vector<64x288xbf16>
    %c0_166 = arith.constant 0 : index
    %c0_167 = arith.constant 0 : index
    %122 = vector.load %arg8[%c0_166, %c0_167] : memref<288x32xbf16, #tpu.memory_space<vmem>>, vector<288x32xbf16>
    %cst_168 = arith.constant dense<0.000000e+00> : vector<64x32xf32>
    %123 = tpu.matmul %121, %122, %cst_168 {dimension_numbers = #tpu.dot_dimension_numbers<[1], [0], [0], [1], [0, 0, 1, 1], [], []>} : vector<64x288xbf16>, vector<288x32xbf16>, vector<64x32xf32> -> vector<64x32xf32>
    %c0_169 = arith.constant 0 : index
    %c0_170 = arith.constant 0 : index
    %124 = vector.load %arg9[%c0_169, %c0_170] : memref<1x32xf32, #tpu.memory_space<vmem>>, vector<1x32xf32>
    %125 = vector.broadcast %124 : vector<1x32xf32> to vector<64x32xf32>
    %126 = arith.addf %123, %125 : vector<64x32xf32>
    %cst_171 = arith.constant 0.000000e+00 : f32
    %127 = vector.broadcast %cst_171 : f32 to vector<64x32xf32>
    %128 = arith.maximumf %126, %127 : vector<64x32xf32>
    %c0_172 = arith.constant 0 : index
    %c32_173 = arith.constant 32 : index
    %129 = vector.load %arg15[%c0_172, %c32_173] : memref<64x96xf32, #tpu.memory_space<vmem>>, vector<64x32xf32>
    tpu.vector_store %arg15[%c0_172, %c32_173], %51 {strides = array<i32>} : memref<64x96xf32, #tpu.memory_space<vmem>>, vector<64x32xf32>,
    %c0_174 = arith.constant 0 : index
    %c64_175 = arith.constant 64 : index
    %130 = vector.load %arg15[%c0_174, %c64_175] : memref<64x96xf32, #tpu.memory_space<vmem>>, vector<64x32xf32>
    tpu.vector_store %arg15[%c0_174, %c64_175], %128 {strides = array<i32>} : memref<64x96xf32, #tpu.memory_space<vmem>>, vector<64x32xf32>,
    %c0_176 = arith.constant 0 : index
    %c0_177 = arith.constant 0 : index
    %131 = vector.load %arg15[%c0_176, %c0_177] : memref<64x96xf32, #tpu.memory_space<vmem>>, vector<64x96xf32>
    %132 = arith.truncf %131 : vector<64x96xf32> to vector<64x96xbf16>
    %c0_178 = arith.constant 0 : index
    %c0_179 = arith.constant 0 : index
    %133 = vector.load %arg10[%c0_178, %c0_179] : memref<96x256xbf16, #tpu.memory_space<vmem>>, vector<96x256xbf16>
    %cst_180 = arith.constant dense<0.000000e+00> : vector<64x256xf32>
    %134 = tpu.matmul %132, %133, %cst_180 {dimension_numbers = #tpu.dot_dimension_numbers<[1], [0], [0], [1], [0, 0, 1, 1], [], []>} : vector<64x96xbf16>, vector<96x256xbf16>, vector<64x256xf32> -> vector<64x256xf32>
    %c0_181 = arith.constant 0 : index
    %c0_182 = arith.constant 0 : index
    %135 = vector.load %arg11[%c0_181, %c0_182] : memref<1x256xf32, #tpu.memory_space<vmem>>, vector<1x256xf32>
    %136 = vector.broadcast %135 : vector<1x256xf32> to vector<64x256xf32>
    %137 = arith.addf %134, %136 : vector<64x256xf32>
    %cst_183 = arith.constant 1.700000e-01 : f32
    %138 = vector.broadcast %cst_183 : f32 to vector<64x256xf32>
    %139 = arith.mulf %137, %138 : vector<64x256xf32>
    %140 = arith.addf %139, %1 : vector<64x256xf32>
    %cst_184 = arith.constant 0.000000e+00 : f32
    %141 = vector.broadcast %cst_184 : f32 to vector<64x256xf32>
    %142 = arith.maximumf %140, %141 : vector<64x256xf32>
    %143 = vector.shape_cast %142 : vector<64x256xf32> to vector<1x8x8x256xf32>
    %c0_185 = arith.constant 0 : index
    %c0_186 = arith.constant 0 : index
    %c0_187 = arith.constant 0 : index
    %c0_188 = arith.constant 0 : index
    %144 = vector.load %arg12[%c0_185, %c0_186, %c0_187, %c0_188] : memref<1x8x8x256xf32, #tpu.memory_space<vmem>>, vector<1x8x8x256xf32>
    tpu.vector_store %arg12[%c0_185, %c0_186, %c0_187, %c0_188], %143 {strides = array<i32>} : memref<1x8x8x256xf32, #tpu.memory_space<vmem>>, vector<1x8x8x256xf32>,
    return
  }
  func.func @transform_0(%arg0: i32) -> (i32, i32, i32, i32) {
    %c0_i32 = arith.constant 0 : i32
    %c0_i32_0 = arith.constant 0 : i32
    %c0_i32_1 = arith.constant 0 : i32
    %c0_i32_2 = arith.constant 0 : i32
    return %arg0, %c0_i32, %c0_i32_0, %c0_i32_1 : i32, i32, i32, i32
  }
  func.func @transform_1(%arg0: i32) -> (i32, i32) {
    %c0_i32 = arith.constant 0 : i32
    %c0_i32_0 = arith.constant 0 : i32
    %c0_i32_1 = arith.constant 0 : i32
    return %c0_i32, %c0_i32_0 : i32, i32
  }
  func.func @transform_2(%arg0: i32) -> (i32, i32) {
    %c0_i32 = arith.constant 0 : i32
    %c0_i32_0 = arith.constant 0 : i32
    %c0_i32_1 = arith.constant 0 : i32
    return %c0_i32, %c0_i32_0 : i32, i32
  }
  func.func @transform_3(%arg0: i32) -> (i32, i32) {
    %c0_i32 = arith.constant 0 : i32
    %c0_i32_0 = arith.constant 0 : i32
    %c0_i32_1 = arith.constant 0 : i32
    return %c0_i32, %c0_i32_0 : i32, i32
  }
  func.func @transform_4(%arg0: i32) -> (i32, i32) {
    %c0_i32 = arith.constant 0 : i32
    %c0_i32_0 = arith.constant 0 : i32
    %c0_i32_1 = arith.constant 0 : i32
    return %c0_i32, %c0_i32_0 : i32, i32
  }
  func.func @transform_5(%arg0: i32) -> (i32, i32) {
    %c0_i32 = arith.constant 0 : i32
    %c0_i32_0 = arith.constant 0 : i32
    %c0_i32_1 = arith.constant 0 : i32
    return %c0_i32, %c0_i32_0 : i32, i32
  }
  func.func @transform_6(%arg0: i32) -> (i32, i32) {
    %c0_i32 = arith.constant 0 : i32
    %c0_i32_0 = arith.constant 0 : i32
    %c0_i32_1 = arith.constant 0 : i32
    return %c0_i32, %c0_i32_0 : i32, i32
  }
  func.func @transform_7(%arg0: i32) -> (i32, i32) {
    %c0_i32 = arith.constant 0 : i32
    %c0_i32_0 = arith.constant 0 : i32
    %c0_i32_1 = arith.constant 0 : i32
    return %c0_i32, %c0_i32_0 : i32, i32
  }
  func.func @transform_8(%arg0: i32) -> (i32, i32) {
    %c0_i32 = arith.constant 0 : i32
    %c0_i32_0 = arith.constant 0 : i32
    %c0_i32_1 = arith.constant 0 : i32
    return %c0_i32, %c0_i32_0 : i32, i32
  }
  func.func @transform_9(%arg0: i32) -> (i32, i32) {
    %c0_i32 = arith.constant 0 : i32
    %c0_i32_0 = arith.constant 0 : i32
    %c0_i32_1 = arith.constant 0 : i32
    return %c0_i32, %c0_i32_0 : i32, i32
  }
  func.func @transform_10(%arg0: i32) -> (i32, i32) {
    %c0_i32 = arith.constant 0 : i32
    %c0_i32_0 = arith.constant 0 : i32
    %c0_i32_1 = arith.constant 0 : i32
    return %c0_i32, %c0_i32_0 : i32, i32
  }
  func.func @transform_11(%arg0: i32) -> (i32, i32, i32, i32) {
    %c0_i32 = arith.constant 0 : i32
    %c0_i32_0 = arith.constant 0 : i32
    %c0_i32_1 = arith.constant 0 : i32
    %c0_i32_2 = arith.constant 0 : i32
    return %arg0, %c0_i32, %c0_i32_0, %c0_i32_1 : i32, i32, i32, i32
  }
}

</mosaic_0001>

<llo_original>
// kernel: block35_forward.1
$region0: #{block35_forward.1}
  #allocation0 [shape = 'u32[]', space=smem, size = 0x4, offset = 0x4, fixed_abs, tag = 'smem constant byte address 0x4 - core index']
  #allocation1 [shape = 'u32[144,128]{1,0:T(1,128)}', space=vmem, size = 0x12000, scoped, tag = 'internal scratch']
  #allocation2 [shape = 'f32[10,10,32]{2,1,0:T(8,128)}', space=vmem, size = 0x14000, scoped, tag = 'scratch operand']
  #allocation3 [shape = 'f32[64,288]{1,0:T(8,128)}', space=vmem, size = 0x18000, scoped, tag = 'scratch operand']
  #allocation4 [shape = 'f32[64,96]{1,0:T(8,128)}', space=vmem, size = 0x8000, scoped, tag = 'scratch operand']
  %s0 = inlined_call_operand.vmem [shape: f32[2,8,8,256], index: 0, kind: input, shape index: {}]
  %s1 = inlined_call_operand.vmem [shape: bf16[256,96], index: 1, kind: input, shape index: {}]
  %s2 = inlined_call_operand.vmem [shape: f32[1,96], index: 2, kind: input, shape index: {}]
  %s3 = inlined_call_operand.vmem [shape: bf16[288,32], index: 3, kind: input, shape index: {}]
  %s4 = inlined_call_operand.vmem [shape: f32[1,32], index: 4, kind: input, shape index: {}]
  %s5 = inlined_call_operand.vmem [shape: bf16[288,32], index: 5, kind: input, shape index: {}]
  %s6 = inlined_call_operand.vmem [shape: f32[1,32], index: 6, kind: input, shape index: {}]
  %s7 = inlined_call_operand.vmem [shape: bf16[288,32], index: 7, kind: input, shape index: {}]
  %s8 = inlined_call_operand.vmem [shape: f32[1,32], index: 8, kind: input, shape index: {}]
  %s9 = inlined_call_operand.vmem [shape: bf16[96,256], index: 9, kind: input, shape index: {}]
  %s10 = inlined_call_operand.vmem [shape: f32[1,256], index: 10, kind: input, shape index: {}]
  %s11 = inlined_call_operand.hbm [shape: f32[2,8,8,256], index: 11, kind: output, shape index: {}]
  %s12 = sld [smem:[#allocation0]]
  $region77: #{block35_forward.1} parent=0
    _
  %s14 = ssub.s32 1, %s12
  %s15 = scalar_select 0, %s14, %s12
  $region1: #{block35_forward.1} parent=0
    #allocation5 [shape = 'u8[131072]{0}', space=vmem, size = 0x20000, scoped, tag = 'output window, operand 0']
    #allocation6 [shape = 's32[2]{0}', space=sflag, size = 0x8, scoped, tag = 'scoped memory for block35_forward.1']
    %16 = vsyncpa [#allocation6], 0
    %s17 = scalar_lea.sflag [#allocation6], 1
    %18 = vsyncpa %s17, 0
    loop: start=0, step=1, limit=4
    $region2: #{block35_forward.1} parent=1 // loop_pre_header
      _
    $region3: #{block35_forward.1} parent=1 // loop_header
      %s20 = sphi 0, %s24
      %p21 = scmp.ge.s32.totalorder %s20, 4
      %s30 = sphi 0, %s32
      %s33 = sphi 0, %s30
      %s34 = sphi 0, %s33
      %s50 = sphi 0, %s34
      %s54 = sphi 0, %s54
      %s56 = sphi 0, %s54
      %s57 = sphi 0, %s56
      %s71 = sphi 0, %s57
      %s75 = sphi 0, %s75
      %s77 = sphi 0, %s75
      %s78 = sphi 0, %s77
      %s92 = sphi 0, %s78
      %s96 = sphi 0, %s96
      %s98 = sphi 0, %s96
      %s99 = sphi 0, %s98
      %s113 = sphi 0, %s99
      %s117 = sphi 0, %s117
      %s119 = sphi 0, %s117
      %s120 = sphi 0, %s119
      %s134 = sphi 0, %s120
      %s138 = sphi 0, %s138
      %s140 = sphi 0, %s138
      %s141 = sphi 0, %s140
      %s155 = sphi 0, %s141
      %s159 = sphi 0, %s159
      %s161 = sphi 0, %s159
      %s162 = sphi 0, %s161
      %s176 = sphi 0, %s162
      %s180 = sphi 0, %s180
      %s182 = sphi 0, %s180
      %s183 = sphi 0, %s182
      %s197 = sphi 0, %s183
      %s201 = sphi 0, %s201
      %s203 = sphi 0, %s201
      %s204 = sphi 0, %s203
      %s218 = sphi 0, %s204
      %s222 = sphi 0, %s222
      %s224 = sphi 0, %s222
      %s225 = sphi 0, %s224
      %s239 = sphi 0, %s225
      %s243 = sphi 0, %s243
      %s245 = sphi 0, %s243
      %s246 = sphi 0, %s245
      %s260 = sphi 0, %s246
      %s266 = sphi 0, %s268
      %s269 = sphi 0, %s266
      %s270 = sphi 0, %s269
      %s286 = sphi 0, %s270
    $region4: #{block35_forward.1} parent=1 // loop_header_branch
      %23 = sbr.rel (%p21) target = $region8
    $region5: #{block35_forward.1} parent=1 // loop_body
      %s25 = ssub.s32 %s20, 1
      %s26 = ssub.s32 %s20, 2
      %s27 = sadd.s32 %s20, 1
      %s28 = ssub.s32 %s20, %s27
      %p29 = scmp.eq.s32.totalorder %s28, 0
      %s31 = sadd.s32 %s30, 1
      %s32 = scalar_select %p29, %s30, %s31
      %p35 = pneg %p29
      %p36 = scmp.eq.s32.totalorder %s20, 1
      %p37 = por %p35, %p36
      %p38 = scmp.ne.s32.totalorder %s30, %s33
      %p39 = scmp.eq.s32.totalorder %s20, 0
      %p40 = por %p38, %p39
      %p41 = scmp.ne.s32.totalorder %s30, %s33
      %p42 = scmp.eq.s32.totalorder %s25, 1
      %p43 = por %p41, %p42
      %p44 = scmp.ne.s32.totalorder %s33, %s34
      %p45 = scmp.eq.s32.totalorder %s25, 0
      %p46 = por %p44, %p45
      %p47 = scmp.ne.s32.totalorder %s33, %s34
      %p48 = scmp.eq.s32.totalorder %s26, 1
      %p49 = por %p47, %p48
      %p51 = scmp.ne.s32.totalorder %s34, %s50
      %p52 = scmp.eq.s32.totalorder %s26, 0
      %p53 = por %p51, %p52
      %s55 = sadd.s32 %s54, 1
      %p58 = scmp.eq.s32.totalorder %s20, 1
      %p59 = scmp.ne.s32.totalorder %s54, %s56
      %p60 = scmp.eq.s32.totalorder %s20, 0
      %p61 = por %p59, %p60
      %p62 = scmp.ne.s32.totalorder %s54, %s56
      %p63 = scmp.eq.s32.totalorder %s25, 1
      %p64 = por %p62, %p63
      %p65 = scmp.ne.s32.totalorder %s56, %s57
      %p66 = scmp.eq.s32.totalorder %s25, 0
      %p67 = por %p65, %p66
      %p68 = scmp.ne.s32.totalorder %s56, %s57
      %p69 = scmp.eq.s32.totalorder %s26, 1
      %p70 = por %p68, %p69
      %p72 = scmp.ne.s32.totalorder %s57, %s71
      %p73 = scmp.eq.s32.totalorder %s26, 0
      %p74 = por %p72, %p73
      %s76 = sadd.s32 %s75, 1
      %p79 = scmp.eq.s32.totalorder %s20, 1
      %p80 = scmp.ne.s32.totalorder %s75, %s77
      %p81 = scmp.eq.s32.totalorder %s20, 0
      %p82 = por %p80, %p81
      %p83 = scmp.ne.s32.totalorder %s75, %s77
      %p84 = scmp.eq.s32.totalorder %s25, 1
      %p85 = por %p83, %p84
      %p86 = scmp.ne.s32.totalorder %s77, %s78
      %p87 = scmp.eq.s32.totalorder %s25, 0
      %p88 = por %p86, %p87
      %p89 = scmp.ne.s32.totalorder %s77, %s78
      %p90 = scmp.eq.s32.totalorder %s26, 1
      %p91 = por %p89, %p90
      %p93 = scmp.ne.s32.totalorder %s78, %s92
      %p94 = scmp.eq.s32.totalorder %s26, 0
      %p95 = por %p93, %p94
      %s97 = sadd.s32 %s96, 1
      %p100 = scmp.eq.s32.totalorder %s20, 1
      %p101 = scmp.ne.s32.totalorder %s96, %s98
      %p102 = scmp.eq.s32.totalorder %s20, 0
      %p103 = por %p101, %p102
      %p104 = scmp.ne.s32.totalorder %s96, %s98
      %p105 = scmp.eq.s32.totalorder %s25, 1
      %p106 = por %p104, %p105
      %p107 = scmp.ne.s32.totalorder %s98, %s99
      %p108 = scmp.eq.s32.totalorder %s25, 0
      %p109 = por %p107, %p108
      %p110 = scmp.ne.s32.totalorder %s98, %s99
      %p111 = scmp.eq.s32.totalorder %s26, 1
      %p112 = por %p110, %p111
      %p114 = scmp.ne.s32.totalorder %s99, %s113
      %p115 = scmp.eq.s32.totalorder %s26, 0
      %p116 = por %p114, %p115
      %s118 = sadd.s32 %s117, 1
      %p121 = scmp.eq.s32.totalorder %s20, 1
      %p122 = scmp.ne.s32.totalorder %s117, %s119
      %p123 = scmp.eq.s32.totalorder %s20, 0
      %p124 = por %p122, %p123
      %p125 = scmp.ne.s32.totalorder %s117, %s119
      %p126 = scmp.eq.s32.totalorder %s25, 1
      %p127 = por %p125, %p126
      %p128 = scmp.ne.s32.totalorder %s119, %s120
      %p129 = scmp.eq.s32.totalorder %s25, 0
      %p130 = por %p128, %p129
      %p131 = scmp.ne.s32.totalorder %s119, %s120
      %p132 = scmp.eq.s32.totalorder %s26, 1
      %p133 = por %p131, %p132
      %p135 = scmp.ne.s32.totalorder %s120, %s134
      %p136 = scmp.eq.s32.totalorder %s26, 0
      %p137 = por %p135, %p136
      %s139 = sadd.s32 %s138, 1
      %p142 = scmp.eq.s32.totalorder %s20, 1
      %p143 = scmp.ne.s32.totalorder %s138, %s140
      %p144 = scmp.eq.s32.totalorder %s20, 0
      %p145 = por %p143, %p144
      %p146 = scmp.ne.s32.totalorder %s138, %s140
      %p147 = scmp.eq.s32.totalorder %s25, 1
      %p148 = por %p146, %p147
      %p149 = scmp.ne.s32.totalorder %s140, %s141
      %p150 = scmp.eq.s32.totalorder %s25, 0
      %p151 = por %p149, %p150
      %p152 = scmp.ne.s32.totalorder %s140, %s141
      %p153 = scmp.eq.s32.totalorder %s26, 1
      %p154 = por %p152, %p153
      %p156 = scmp.ne.s32.totalorder %s141, %s155
      %p157 = scmp.eq.s32.totalorder %s26, 0
      %p158 = por %p156, %p157
      %s160 = sadd.s32 %s159, 1
      %p163 = scmp.eq.s32.totalorder %s20, 1
      %p164 = scmp.ne.s32.totalorder %s159, %s161
      %p165 = scmp.eq.s32.totalorder %s20, 0
      %p166 = por %p164, %p165
      %p167 = scmp.ne.s32.totalorder %s159, %s161
      %p168 = scmp.eq.s32.totalorder %s25, 1
      %p169 = por %p167, %p168
      %p170 = scmp.ne.s32.totalorder %s161, %s162
      %p171 = scmp.eq.s32.totalorder %s25, 0
      %p172 = por %p170, %p171
      %p173 = scmp.ne.s32.totalorder %s161, %s162
      %p174 = scmp.eq.s32.totalorder %s26, 1
      %p175 = por %p173, %p174
      %p177 = scmp.ne.s32.totalorder %s162, %s176
      %p178 = scmp.eq.s32.totalorder %s26, 0
      %p179 = por %p177, %p178
      %s181 = sadd.s32 %s180, 1
      %p184 = scmp.eq.s32.totalorder %s20, 1
      %p185 = scmp.ne.s32.totalorder %s180, %s182
      %p186 = scmp.eq.s32.totalorder %s20, 0
      %p187 = por %p185, %p186
      %p188 = scmp.ne.s32.totalorder %s180, %s182
      %p189 = scmp.eq.s32.totalorder %s25, 1
      %p190 = por %p188, %p189
      %p191 = scmp.ne.s32.totalorder %s182, %s183
      %p192 = scmp.eq.s32.totalorder %s25, 0
      %p193 = por %p191, %p192
      %p194 = scmp.ne.s32.totalorder %s182, %s183
      %p195 = scmp.eq.s32.totalorder %s26, 1
      %p196 = por %p194, %p195
      %p198 = scmp.ne.s32.totalorder %s183, %s197
      %p199 = scmp.eq.s32.totalorder %s26, 0
      %p200 = por %p198, %p199
      %s202 = sadd.s32 %s201, 1
      %p205 = scmp.eq.s32.totalorder %s20, 1
      %p206 = scmp.ne.s32.totalorder %s201, %s203
      %p207 = scmp.eq.s32.totalorder %s20, 0
      %p208 = por %p206, %p207
      %p209 = scmp.ne.s32.totalorder %s201, %s203
      %p210 = scmp.eq.s32.totalorder %s25, 1
      %p211 = por %p209, %p210
      %p212 = scmp.ne.s32.totalorder %s203, %s204
      %p213 = scmp.eq.s32.totalorder %s25, 0
      %p214 = por %p212, %p213
      %p215 = scmp.ne.s32.totalorder %s203, %s204
      %p216 = scmp.eq.s32.totalorder %s26, 1
      %p217 = por %p215, %p216
      %p219 = scmp.ne.s32.totalorder %s204, %s218
      %p220 = scmp.eq.s32.totalorder %s26, 0
      %p221 = por %p219, %p220
      %s223 = sadd.s32 %s222, 1
      %p226 = scmp.eq.s32.totalorder %s20, 1
      %p227 = scmp.ne.s32.totalorder %s222, %s224
      %p228 = scmp.eq.s32.totalorder %s20, 0
      %p229 = por %p227, %p228
      %p230 = scmp.ne.s32.totalorder %s222, %s224
      %p231 = scmp.eq.s32.totalorder %s25, 1
      %p232 = por %p230, %p231
      %p233 = scmp.ne.s32.totalorder %s224, %s225
      %p234 = scmp.eq.s32.totalorder %s25, 0
      %p235 = por %p233, %p234
      %p236 = scmp.ne.s32.totalorder %s224, %s225
      %p237 = scmp.eq.s32.totalorder %s26, 1
      %p238 = por %p236, %p237
      %p240 = scmp.ne.s32.totalorder %s225, %s239
      %p241 = scmp.eq.s32.totalorder %s26, 0
      %p242 = por %p240, %p241
      %s244 = sadd.s32 %s243, 1
      %p247 = scmp.eq.s32.totalorder %s20, 1
      %p248 = scmp.ne.s32.totalorder %s243, %s245
      %p249 = scmp.eq.s32.totalorder %s20, 0
      %p250 = por %p248, %p249
      %p251 = scmp.ne.s32.totalorder %s243, %s245
      %p252 = scmp.eq.s32.totalorder %s25, 1
      %p253 = por %p251, %p252
      %p254 = scmp.ne.s32.totalorder %s245, %s246
      %p255 = scmp.eq.s32.totalorder %s25, 0
      %p256 = por %p254, %p255
      %p257 = scmp.ne.s32.totalorder %s245, %s246
      %p258 = scmp.eq.s32.totalorder %s26, 1
      %p259 = por %p257, %p258
      %p261 = scmp.ne.s32.totalorder %s246, %s260
      %p262 = scmp.eq.s32.totalorder %s26, 0
      %p263 = por %p261, %p262
      %s264 = ssub.s32 %s20, %s27
      %p265 = scmp.eq.s32.totalorder %s264, 0
      %s267 = sadd.s32 %s266, 1
      %s268 = scalar_select %p265, %s266, %s267
      %p271 = pneg %p265
      %p272 = scmp.eq.s32.totalorder %s20, 1
      %p273 = por %p271, %p272
      %p274 = scmp.ne.s32.totalorder %s266, %s269
      %p275 = scmp.eq.s32.totalorder %s20, 0
      %p276 = por %p274, %p275
      %p277 = scmp.ne.s32.totalorder %s266, %s269
      %p278 = scmp.eq.s32.totalorder %s25, 1
      %p279 = por %p277, %p278
      %p280 = scmp.ne.s32.totalorder %s269, %s270
      %p281 = scmp.eq.s32.totalorder %s25, 0
      %p282 = por %p280, %p281
      %p283 = scmp.ne.s32.totalorder %s269, %s270
      %p284 = scmp.eq.s32.totalorder %s26, 1
      %p285 = por %p283, %p284
      %p287 = scmp.ne.s32.totalorder %s270, %s286
      %p288 = scmp.eq.s32.totalorder %s26, 0
      %p289 = por %p287, %p288
      %p290 = scmp.le.s32.totalorder 1, %s20
      %p291 = scmp.lt.s32.totalorder %s20, 3
      %p292 = pnand %p290, %p291
      %p293 = pneg %p292
      // Predicated region
      $region9: #{block35_forward.1} parent=5 // pred_check
        _
      $region10: #{block35_forward.1} parent=5 // pred_check_branch
        %295 = sbr.rel (%p292) target = $region12
      $region11: #{block35_forward.1} parent=5 // pred_region
        %s296 = ssub.s32 %s20, 1
        // Predicated region
        $region13: #{block35_forward.1} parent=11 // pred_check
          %p297 = pneg %p67
        $region14: #{block35_forward.1} parent=11 // pred_check_branch
          %299 = sbr.rel (%p297) target = $region16
        $region15: #{block35_forward.1} parent=11 // pred_region
          _
        $region16: #{block35_forward.1} parent=11 // pred_fallthru
          _
        // Predicated region
        $region17: #{block35_forward.1} parent=11 // pred_check
          %p300 = pneg %p88
        $region18: #{block35_forward.1} parent=11 // pred_check_branch
          %302 = sbr.rel (%p300) target = $region20
        $region19: #{block35_forward.1} parent=11 // pred_region
          _
        $region20: #{block35_forward.1} parent=11 // pred_fallthru
          _
        // Predicated region
        $region21: #{block35_forward.1} parent=11 // pred_check
          %p303 = pneg %p109
        $region22: #{block35_forward.1} parent=11 // pred_check_branch
          %305 = sbr.rel (%p303) target = $region24
        $region23: #{block35_forward.1} parent=11 // pred_region
          _
        $region24: #{block35_forward.1} parent=11 // pred_fallthru
          _
        // Predicated region
        $region25: #{block35_forward.1} parent=11 // pred_check
          %p306 = pneg %p130
        $region26: #{block35_forward.1} parent=11 // pred_check_branch
          %308 = sbr.rel (%p306) target = $region28
        $region27: #{block35_forward.1} parent=11 // pred_region
          _
        $region28: #{block35_forward.1} parent=11 // pred_fallthru
          _
        // Predicated region
        $region29: #{block35_forward.1} parent=11 // pred_check
          %p309 = pneg %p151
        $region30: #{block35_forward.1} parent=11 // pred_check_branch
          %311 = sbr.rel (%p309) target = $region32
        $region31: #{block35_forward.1} parent=11 // pred_region
          _
        $region32: #{block35_forward.1} parent=11 // pred_fallthru
          _
        // Predicated region
        $region33: #{block35_forward.1} parent=11 // pred_check
          %p312 = pneg %p172
        $region34: #{block35_forward.1} parent=11 // pred_check_branch
          %314 = sbr.rel (%p312) target = $region36
        $region35: #{block35_forward.1} parent=11 // pred_region
          _
        $region36: #{block35_forward.1} parent=11 // pred_fallthru
          _
        // Predicated region
        $region37: #{block35_forward.1} parent=11 // pred_check
          %p315 = pneg %p193
        $region38: #{block35_forward.1} parent=11 // pred_check_branch
          %317 = sbr.rel (%p315) target = $region40
        $region39: #{block35_forward.1} parent=11 // pred_region
          _
        $region40: #{block35_forward.1} parent=11 // pred_fallthru
          _
        // Predicated region
        $region41: #{block35_forward.1} parent=11 // pred_check
          %p318 = pneg %p214
        $region42: #{block35_forward.1} parent=11 // pred_check_branch
          %320 = sbr.rel (%p318) target = $region44
        $region43: #{block35_forward.1} parent=11 // pred_region
          _
        $region44: #{block35_forward.1} parent=11 // pred_fallthru
          _
        // Predicated region
        $region45: #{block35_forward.1} parent=11 // pred_check
          %p321 = pneg %p235
        $region46: #{block35_forward.1} parent=11 // pred_check_branch
          %323 = sbr.rel (%p321) target = $region48
        $region47: #{block35_forward.1} parent=11 // pred_region
          _
        $region48: #{block35_forward.1} parent=11 // pred_fallthru
          _
        // Predicated region
        $region49: #{block35_forward.1} parent=11 // pred_check
          %p324 = pneg %p256
        $region50: #{block35_forward.1} parent=11 // pred_check_branch
          %326 = sbr.rel (%p324) target = $region52
        $region51: #{block35_forward.1} parent=11 // pred_region
          _
        $region52: #{block35_forward.1} parent=11 // pred_fallthru
          _
      $region12: #{block35_forward.1} parent=5 // pred_fallthru
        _
      %p327 = scmp.lt.s32.totalorder %s20, 2
      // Predicated region
      $region53: #{block35_forward.1} parent=5 // pred_check
        %p328 = pneg %p327
      $region54: #{block35_forward.1} parent=5 // pred_check_branch
        %330 = sbr.rel (%p328) target = $region56
      $region55: #{block35_forward.1} parent=5 // pred_region
        // Predicated region
        $region57: #{block35_forward.1} parent=55 // pred_check
          %p331 = pneg %p40
        $region58: #{block35_forward.1} parent=55 // pred_check_branch
          %333 = sbr.rel (%p331) target = $region60
        $region59: #{block35_forward.1} parent=55 // pred_region
          %p334 = scmp.lt.s32.totalorder %s20, 1
          %s335 = scalar_select %p334, %s20, 1
          %s336 = smul.addr %s335, 16
          %s337 = smul.addr %s336, 8
          %s338 = scalar_lea.vmem %s0, %s337
        $region60: #{block35_forward.1} parent=55 // pred_fallthru
          _
      $region56: #{block35_forward.1} parent=5 // pred_fallthru
        _
      %p339 = scmp.le.s32.totalorder 1, %s20
      %p340 = scmp.lt.s32.totalorder %s20, 3
      %p341 = pnand %p339, %p340
      %p342 = pneg %p341
      // Predicated region
      $region61: #{block35_forward.1} parent=5 // pred_check
        _
      $region62: #{block35_forward.1} parent=5 // pred_check_branch
        %344 = sbr.rel (%p341) target = $region64
      $region63: #{block35_forward.1} parent=5 // pred_region
        %s345 = ssub.s32 %s20, 1
        %p346 = scmp.lt.s32.totalorder %s25, 1
        %s347 = scalar_select %p346, %s25, 1
        %s348 = smul.addr %s347, 16
        %s349 = smul.addr %s348, 8
        %s350 = scalar_lea.vmem %s0, %s349
        %p351 = pneg %p46
        %p352 = pneg %p43
        %p353 = pneg %p67
        %p354 = pneg %p64
        %p355 = pneg %p88
        %p356 = pneg %p85
        %p357 = pneg %p109
        %p358 = pneg %p106
        %p359 = pneg %p130
        %p360 = pneg %p127
        %p361 = pneg %p151
        %p362 = pneg %p148
        %p363 = pneg %p172
        %p364 = pneg %p169
        %p365 = pneg %p193
        %p366 = pneg %p190
        %p367 = pneg %p214
        %p368 = pneg %p211
        %p369 = pneg %p235
        %p370 = pneg %p232
        %p371 = pneg %p256
        %p372 = pneg %p253
        %p373 = pneg %p282
        %p374 = pneg %p279
        %s375 = sand.u32 %s269, 1
        %s376 = scalar_lea.sflag [#allocation6], %s375
        %s377 = sand.u32 %s269, 1
        %s378 = smul.addr %s377, 128
        %s379 = scalar_lea.vmem [#allocation5], %s378
        %p380 = scmp.lt.s32.totalorder %s25, 1
        %s381 = scalar_select %p380, %s25, 1
        %s382 = smul.addr %s381, 16
        %s383 = smul.addr %s382, 8
        %s384 = scalar_lea.vmem %s0, %s383
        %v386 = vld [vmem:[%s384] sm:$0xff]
        %v387 = vld [vmem:[%s384 + $0x8] sm:$0xff]
        %v388 = vld [vmem:[%s384 + $0x10] sm:$0xff]
        %v389 = vld [vmem:[%s384 + $0x18] sm:$0xff]
        %v390 = vld [vmem:[%s384 + $0x20] sm:$0xff]
        %v391 = vld [vmem:[%s384 + $0x28] sm:$0xff]
        %v392 = vld [vmem:[%s384 + $0x30] sm:$0xff]
        %v393 = vld [vmem:[%s384 + $0x38] sm:$0xff]
        %v394 = vld [vmem:[%s384 + $0x40] sm:$0xff]
        %v395 = vld [vmem:[%s384 + $0x48] sm:$0xff]
        %v396 = vld [vmem:[%s384 + $0x50] sm:$0xff]
        %v397 = vld [vmem:[%s384 + $0x58] sm:$0xff]
        %v398 = vld [vmem:[%s384 + $0x60] sm:$0xff]
        %v399 = vld [vmem:[%s384 + $0x68] sm:$0xff]
        %v400 = vld [vmem:[%s384 + $0x70] sm:$0xff]
        %v401 = vld [vmem:[%s384 + $0x78] sm:$0xff]
        %v402 = vpack.c.bf16 %v388, %v386
        %v403 = vpack.c.bf16 %v389, %v387
        %v404 = vpack.c.bf16 %v392, %v390
        %v405 = vpack.c.bf16 %v393, %v391
        %v406 = vpack.c.bf16 %v396, %v394
        %v407 = vpack.c.bf16 %v397, %v395
        %v408 = vpack.c.bf16 %v400, %v398
        %v409 = vpack.c.bf16 %v401, %v399
        %v410 = vld [vmem:[%s1] sm:$0xf]
        %v411 = vld [vmem:[%s1 + $0x4] sm:$0xf]
        %v412 = vld [vmem:[%s1 + $0x8] sm:$0xf]
        %v413 = vld [vmem:[%s1 + $0xc] sm:$0xf]
        %v414 = vld [vmem:[%s1 + $0x10] sm:$0xf]
        %v415 = vld [vmem:[%s1 + $0x14] sm:$0xf]
        %v416 = vld [vmem:[%s1 + $0x18] sm:$0xf]
        %v417 = vld [vmem:[%s1 + $0x1c] sm:$0xf]
        %v418 = vld [vmem:[%s1 + $0x20] sm:$0xf]
        %v419 = vld [vmem:[%s1 + $0x24] sm:$0xf]
        %v420 = vld [vmem:[%s1 + $0x28] sm:$0xf]
        %v421 = vld [vmem:[%s1 + $0x2c] sm:$0xf]
        %v422 = vld [vmem:[%s1 + $0x30] sm:$0xf]
        %v423 = vld [vmem:[%s1 + $0x34] sm:$0xf]
        %v424 = vld [vmem:[%s1 + $0x38] sm:$0xf]
        %v425 = vld [vmem:[%s1 + $0x3c] sm:$0xf]
        %v426 = vld [vmem:[%s1 + $0x40] sm:$0xf]
        %v427 = vld [vmem:[%s1 + $0x44] sm:$0xf]
        %v428 = vld [vmem:[%s1 + $0x48] sm:$0xf]
        %v429 = vld [vmem:[%s1 + $0x4c] sm:$0xf]
        %v430 = vld [vmem:[%s1 + $0x50] sm:$0xf]
        %v431 = vld [vmem:[%s1 + $0x54] sm:$0xf]
        %v432 = vld [vmem:[%s1 + $0x58] sm:$0xf]
        %v433 = vld [vmem:[%s1 + $0x5c] sm:$0xf]
        %v434 = vld [vmem:[%s1 + $0x60] sm:$0xf]
        %v435 = vld [vmem:[%s1 + $0x64] sm:$0xf]
        %v436 = vld [vmem:[%s1 + $0x68] sm:$0xf]
        %v437 = vld [vmem:[%s1 + $0x6c] sm:$0xf]
        %v438 = vld [vmem:[%s1 + $0x70] sm:$0xf]
        %v439 = vld [vmem:[%s1 + $0x74] sm:$0xf]
        %v440 = vld [vmem:[%s1 + $0x78] sm:$0xf]
        %v441 = vld [vmem:[%s1 + $0x7c] sm:$0xf]
        %v442 = vld [vmem:[%s2] sm:$0x1]
        %v444 = vlaneseq
        %v445 = vshrl.u32 %v444, 7
        %v446 = vsub.s32 0, %v445
        %v447 = vrot.slane %v442, %v446
        %v481 = vunpack.c.l.b16 %v410
        %v482 = vunpack.c.l.b16 %v411
        %v483 = vunpack.c.l.b16 %v412
        %v484 = vunpack.c.l.b16 %v413
        %v485 = vunpack.c.l.b16 %v414
        %v486 = vunpack.c.l.b16 %v415
        %v487 = vunpack.c.l.b16 %v416
        %v488 = vunpack.c.l.b16 %v417
        %v489 = vunpack.c.l.b16 %v418
        %v490 = vunpack.c.l.b16 %v419
        %v491 = vunpack.c.l.b16 %v420
        %v492 = vunpack.c.l.b16 %v421
        %v493 = vunpack.c.l.b16 %v422
        %v494 = vunpack.c.l.b16 %v423
        %v495 = vunpack.c.l.b16 %v424
        %v496 = vunpack.c.l.b16 %v425
        %v497 = vunpack.c.l.b16 %v426
        %v498 = vunpack.c.l.b16 %v427
        %v499 = vunpack.c.l.b16 %v428
        %v500 = vunpack.c.l.b16 %v429
        %v501 = vunpack.c.l.b16 %v430
        %v502 = vunpack.c.l.b16 %v431
        %v503 = vunpack.c.l.b16 %v432
        %v504 = vunpack.c.l.b16 %v433
        %v505 = vunpack.c.l.b16 %v434
        %v506 = vunpack.c.l.b16 %v435
        %v507 = vunpack.c.l.b16 %v436
        %v508 = vunpack.c.l.b16 %v437
        %v509 = vunpack.c.l.b16 %v438
        %v510 = vunpack.c.l.b16 %v439
        %v511 = vunpack.c.l.b16 %v440
        %v512 = vunpack.c.l.b16 %v441
        %v513 = vpack.c.b16 %v482, %v481
        %v514 = vpack.c.b16 %v484, %v483
        %v515 = vpack.c.b16 %v486, %v485
        %v516 = vpack.c.b16 %v488, %v487
        %v517 = vpack.c.b16 %v490, %v489
        %v518 = vpack.c.b16 %v492, %v491
        %v519 = vpack.c.b16 %v494, %v493
        %v520 = vpack.c.b16 %v496, %v495
        %v521 = vpack.c.b16 %v498, %v497
        %v522 = vpack.c.b16 %v500, %v499
        %v523 = vpack.c.b16 %v502, %v501
        %v524 = vpack.c.b16 %v504, %v503
        %v525 = vpack.c.b16 %v506, %v505
        %v526 = vpack.c.b16 %v508, %v507
        %v527 = vpack.c.b16 %v510, %v509
        %v528 = vpack.c.b16 %v512, %v511
        %545 = vmatprep.subr.bf16.mxu0 0
        %546 = vmatpush1.bf16.msra.mxu0 %v513
        %547 = vmatprep.subr.bf16.mxu0 0
        %548 = vmatpush1.bf16.msra.mxu0 %v514
        %549 = vmatprep.subr.bf16.mxu0 0
        %550 = vmatpush1.bf16.msra.mxu0 %v515
        %551 = vmatprep.subr.bf16.mxu0 0
        %552 = vmatpush1.bf16.msra.mxu0 %v516
        %553 = vmatprep.subr.bf16.mxu0 0
        %554 = vmatpush1.bf16.msra.mxu0 %v517
        %555 = vmatprep.subr.bf16.mxu0 0
        %556 = vmatpush1.bf16.msra.mxu0 %v518
        %557 = vmatprep.subr.bf16.mxu0 0
        %558 = vmatpush1.bf16.msra.mxu0 %v519
        %559 = vmatprep.subr.bf16.mxu0 0
        %560 = vmatpush1.bf16.msra.mxu0 %v520
        %561 = vmatprep.subr.bf16.mxu0 0
        %562 = vmatpush1.bf16.msra.mxu0 %v521
        %563 = vmatprep.subr.bf16.mxu0 0
        %564 = vmatpush1.bf16.msra.mxu0 %v522
        %565 = vmatprep.subr.bf16.mxu0 0
        %566 = vmatpush1.bf16.msra.mxu0 %v523
        %567 = vmatprep.subr.bf16.mxu0 0
        %568 = vmatpush1.bf16.msra.mxu0 %v524
        %569 = vmatprep.subr.bf16.mxu0 0
        %570 = vmatpush1.bf16.msra.mxu0 %v525
        %571 = vmatprep.subr.bf16.mxu0 0
        %572 = vmatpush1.bf16.msra.mxu0 %v526
        %573 = vmatprep.subr.bf16.mxu0 0
        %574 = vmatpush1.bf16.msra.mxu0 %v527
        %575 = vmatprep.subr.bf16.mxu0 0
        %576 = vmatpush1.bf16.msra.mxu0 %v528
        %577 = vmatprep.mubr.bf16.mxu0 %v403
        %578 = vmatmul.mubr.bf16.gmra.mrb[0].mxu0 %v402
        %v579 = vpop.f32.mrb[0].mxu0
        %v580 = vadd.f32 %v447, %v579
        %v581 = vpop.f32.mrb[0].mxu0
        %v582 = vpop.f32.mrb[0].mxu0
        %v583 = vadd.f32 %v447, %v582
        %v584 = vpop.f32.mrb[0].mxu0
        %585 = vmatprep.mubr.bf16.mxu0 %v405
        %586 = vmatmul.mubr.bf16.gmra.mrb[0].mxu0 %v404
        %v587 = vpop.f32.mrb[0].mxu0
        %v588 = vadd.f32 %v447, %v587
        %v589 = vpop.f32.mrb[0].mxu0
        %v590 = vpop.f32.mrb[0].mxu0
        %v591 = vadd.f32 %v447, %v590
        %v592 = vpop.f32.mrb[0].mxu0
        %593 = vmatprep.mubr.bf16.mxu0 %v407
        %594 = vmatmul.mubr.bf16.gmra.mrb[0].mxu0 %v406
        %v595 = vpop.f32.mrb[0].mxu0
        %v596 = vadd.f32 %v447, %v595
        %v597 = vpop.f32.mrb[0].mxu0
        %v598 = vpop.f32.mrb[0].mxu0
        %v599 = vadd.f32 %v447, %v598
        %v600 = vpop.f32.mrb[0].mxu0
        %601 = vmatprep.mubr.bf16.mxu0 %v409
        %602 = vmatmul.mubr.bf16.gmra.mrb[0].mxu0 %v408
        %v603 = vpop.f32.mrb[0].mxu0
        %v604 = vadd.f32 %v447, %v603
        %v605 = vpop.f32.mrb[0].mxu0
        %v606 = vpop.f32.mrb[0].mxu0
        %v607 = vadd.f32 %v447, %v606
        %v608 = vpop.f32.mrb[0].mxu0
        %609 = vdwg.mxu0
        %v610 = vmax.f32 %v580, 0.0
        %v611 = vmax.f32 %v583, 0.0
        %v612 = vmax.f32 %v588, 0.0
        %v613 = vmax.f32 %v591, 0.0
        %v614 = vmax.f32 %v596, 0.0
        %v615 = vmax.f32 %v599, 0.0
        %v616 = vmax.f32 %v604, 0.0
        %v617 = vmax.f32 %v607, 0.0
        %vm618 = vcmask 785408
        %619 = vst.msk [vmem:[#allocation4] sm:$0xff] %vm618, %v610
        %620 = vst.msk [vmem:[#allocation4 + $0x8] sm:$0xff] %vm618, %v611
        %621 = vst.msk [vmem:[#allocation4 + $0x10] sm:$0xff] %vm618, %v612
        %622 = vst.msk [vmem:[#allocation4 + $0x18] sm:$0xff] %vm618, %v613
        %623 = vst.msk [vmem:[#allocation4 + $0x20] sm:$0xff] %vm618, %v614
        %624 = vst.msk [vmem:[#allocation4 + $0x28] sm:$0xff] %vm618, %v615
        %625 = vst.msk [vmem:[#allocation4 + $0x30] sm:$0xff] %vm618, %v616
        %626 = vst.msk [vmem:[#allocation4 + $0x38] sm:$0xff] %vm618, %v617
        %vm627 = vcmask 261120
        %628 = vst.msk [vmem:[#allocation2] sm:$0xff] %vm627, 0.0
        %vm629 = vcmask 254976
        %630 = vst.msk [vmem:[#allocation2 + $0x8] sm:$0x3] %vm629, 0.0
        %631 = vst.msk [vmem:[#allocation2 + $0x10] sm:$0xff] %vm627, 0.0
        %632 = vst.msk [vmem:[#allocation2 + $0x18] sm:$0x3] %vm629, 0.0
        %633 = vst.msk [vmem:[#allocation2 + $0x20] sm:$0xff] %vm627, 0.0
        %634 = vst.msk [vmem:[#allocation2 + $0x28] sm:$0x3] %vm629, 0.0
        %635 = vst.msk [vmem:[#allocation2 + $0x30] sm:$0xff] %vm627, 0.0
        %636 = vst.msk [vmem:[#allocation2 + $0x38] sm:$0x3] %vm629, 0.0
        %637 = vst.msk [vmem:[#allocation2 + $0x40] sm:$0xff] %vm627, 0.0
        %638 = vst.msk [vmem:[#allocation2 + $0x48] sm:$0x3] %vm629, 0.0
        %639 = vst.msk [vmem:[#allocation2 + $0x50] sm:$0xff] %vm627, 0.0
        %640 = vst.msk [vmem:[#allocation2 + $0x58] sm:$0x3] %vm629, 0.0
        %641 = vst.msk [vmem:[#allocation2 + $0x60] sm:$0xff] %vm627, 0.0
        %642 = vst.msk [vmem:[#allocation2 + $0x68] sm:$0x3] %vm629, 0.0
        %643 = vst.msk [vmem:[#allocation2 + $0x70] sm:$0xff] %vm627, 0.0
        %644 = vst.msk [vmem:[#allocation2 + $0x78] sm:$0x3] %vm629, 0.0
        %645 = vst.msk [vmem:[#allocation2 + $0x80] sm:$0xff] %vm627, 0.0
        %646 = vst.msk [vmem:[#allocation2 + $0x88] sm:$0x3] %vm629, 0.0
        %647 = vst.msk [vmem:[#allocation2 + $0x90] sm:$0xff] %vm627, 0.0
        %648 = vst.msk [vmem:[#allocation2 + $0x98] sm:$0x3] %vm629, 0.0
        %657 = vrot.lane.b32.xlu0 %v610, 96
        %v658 = vpop.permute.xlu0 %657
        %659 = vrot.lane.b32.xlu0 %v611, 96
        %v660 = vpop.permute.xlu0 %659
        %661 = vrot.lane.b32.xlu0 %v612, 96
        %v662 = vpop.permute.xlu0 %661
        %663 = vrot.lane.b32.xlu0 %v613, 96
        %v664 = vpop.permute.xlu0 %663
        %665 = vrot.lane.b32.xlu0 %v614, 96
        %v666 = vpop.permute.xlu0 %665
        %667 = vrot.lane.b32.xlu0 %v615, 96
        %v668 = vpop.permute.xlu0 %667
        %669 = vrot.lane.b32.xlu0 %v616, 96
        %v670 = vpop.permute.xlu0 %669
        %671 = vrot.lane.b32.xlu0 %v617, 96
        %v672 = vpop.permute.xlu0 %671
        %s681 = scalar_lea.vmem [#allocation2], 16
        %682 = vst.msk [vmem:[%s681 + $0x1] sm:$0xff] %vm627, %v658
        %683 = vst.msk [vmem:[%s681 + $0x11] sm:$0xff] %vm627, %v660
        %684 = vst.msk [vmem:[%s681 + $0x21] sm:$0xff] %vm627, %v662
        %685 = vst.msk [vmem:[%s681 + $0x31] sm:$0xff] %vm627, %v664
        %686 = vst.msk [vmem:[%s681 + $0x41] sm:$0xff] %vm627, %v666
        %687 = vst.msk [vmem:[%s681 + $0x51] sm:$0xff] %vm627, %v668
        %688 = vst.msk [vmem:[%s681 + $0x61] sm:$0xff] %vm627, %v670
        %689 = vst.msk [vmem:[%s681 + $0x71] sm:$0xff] %vm627, %v672
        %v690 = vld [vmem:[#allocation2] sm:$0xff]
        %v691 = vld [vmem:[#allocation2 + $0x10] sm:$0xff]
        %v692 = vld [vmem:[#allocation2 + $0x20] sm:$0xff]
        %v693 = vld [vmem:[#allocation2 + $0x30] sm:$0xff]
        %v694 = vld [vmem:[#allocation2 + $0x40] sm:$0xff]
        %v695 = vld [vmem:[#allocation2 + $0x50] sm:$0xff]
        %v696 = vld [vmem:[#allocation2 + $0x60] sm:$0xff]
        %v697 = vld [vmem:[#allocation2 + $0x70] sm:$0xff]
        %698 = vst.msk [vmem:[#allocation3] sm:$0xff] %vm627, %v690
        %699 = vst.msk [vmem:[#allocation3 + $0x18] sm:$0xff] %vm627, %v691
        %700 = vst.msk [vmem:[#allocation3 + $0x30] sm:$0xff] %vm627, %v692
        %701 = vst.msk [vmem:[#allocation3 + $0x48] sm:$0xff] %vm627, %v693
        %702 = vst.msk [vmem:[#allocation3 + $0x60] sm:$0xff] %vm627, %v694
        %703 = vst.msk [vmem:[#allocation3 + $0x78] sm:$0xff] %vm627, %v695
        %704 = vst.msk [vmem:[#allocation3 + $0x90] sm:$0xff] %vm627, %v696
        %705 = vst.msk [vmem:[#allocation3 + $0xa8] sm:$0xff] %vm627, %v697
        %v706 = vld [vmem:[#allocation2 + $0x1] sm:$0xff]
        %v707 = vld [vmem:[#allocation2 + $0x11] sm:$0xff]
        %v708 = vld [vmem:[#allocation2 + $0x21] sm:$0xff]
        %v709 = vld [vmem:[#allocation2 + $0x31] sm:$0xff]
        %v710 = vld [vmem:[#allocation2 + $0x41] sm:$0xff]
        %v711 = vld [vmem:[#allocation2 + $0x51] sm:$0xff]
        %v712 = vld [vmem:[#allocation2 + $0x61] sm:$0xff]
        %v713 = vld [vmem:[#allocation2 + $0x71] sm:$0xff]
        %722 = vrot.lane.b32.xlu0 %v706, 32
        %v723 = vpop.permute.xlu0 %722
        %724 = vrot.lane.b32.xlu0 %v707, 32
        %v725 = vpop.permute.xlu0 %724
        %726 = vrot.lane.b32.xlu0 %v708, 32
        %v727 = vpop.permute.xlu0 %726
        %728 = vrot.lane.b32.xlu0 %v709, 32
        %v729 = vpop.permute.xlu0 %728
        %730 = vrot.lane.b32.xlu0 %v710, 32
        %v731 = vpop.permute.xlu0 %730
        %732 = vrot.lane.b32.xlu0 %v711, 32
        %v733 = vpop.permute.xlu0 %732
        %734 = vrot.lane.b32.xlu0 %v712, 32
        %v735 = vpop.permute.xlu0 %734
        %736 = vrot.lane.b32.xlu0 %v713, 32
        %v737 = vpop.permute.xlu0 %736
        %vm746 = vcmask 523520
        %747 = vst.msk [vmem:[#allocation3] sm:$0xff] %vm746, %v723
        %748 = vst.msk [vmem:[#allocation3 + $0x18] sm:$0xff] %vm746, %v725
        %749 = vst.msk [vmem:[#allocation3 + $0x30] sm:$0xff] %vm746, %v727
        %750 = vst.msk [vmem:[#allocation3 + $0x48] sm:$0xff] %vm746, %v729
        %751 = vst.msk [vmem:[#allocation3 + $0x60] sm:$0xff] %vm746, %v731
        %752 = vst.msk [vmem:[#allocation3 + $0x78] sm:$0xff] %vm746, %v733
        %753 = vst.msk [vmem:[#allocation3 + $0x90] sm:$0xff] %vm746, %v735
        %754 = vst.msk [vmem:[#allocation3 + $0xa8] sm:$0xff] %vm746, %v737
        %v755 = vld [vmem:[#allocation2 + $0x2] sm:$0xff]
        %v756 = vld [vmem:[#allocation2 + $0x12] sm:$0xff]
        %v757 = vld [vmem:[#allocation2 + $0x22] sm:$0xff]
        %v758 = vld [vmem:[#allocation2 + $0x32] sm:$0xff]
        %v759 = vld [vmem:[#allocation2 + $0x42] sm:$0xff]
        %v760 = vld [vmem:[#allocation2 + $0x52] sm:$0xff]
        %v761 = vld [vmem:[#allocation2 + $0x62] sm:$0xff]
        %v762 = vld [vmem:[#allocation2 + $0x72] sm:$0xff]
        %771 = vrot.lane.b32.xlu0 %v755, 64
        %v772 = vpop.permute.xlu0 %771
        %773 = vrot.lane.b32.xlu0 %v756, 64
        %v774 = vpop.permute.xlu0 %773
        %775 = vrot.lane.b32.xlu0 %v757, 64
        %v776 = vpop.permute.xlu0 %775
        %777 = vrot.lane.b32.xlu0 %v758, 64
        %v778 = vpop.permute.xlu0 %777
        %779 = vrot.lane.b32.xlu0 %v759, 64
        %v780 = vpop.permute.xlu0 %779
        %781 = vrot.lane.b32.xlu0 %v760, 64
        %v782 = vpop.permute.xlu0 %781
        %783 = vrot.lane.b32.xlu0 %v761, 64
        %v784 = vpop.permute.xlu0 %783
        %785 = vrot.lane.b32.xlu0 %v762, 64
        %v786 = vpop.permute.xlu0 %785
        %vm795 = vcmask 785920
        %796 = vst.msk [vmem:[#allocation3] sm:$0xff] %vm795, %v772
        %797 = vst.msk [vmem:[#allocation3 + $0x18] sm:$0xff] %vm795, %v774
        %798 = vst.msk [vmem:[#allocation3 + $0x30] sm:$0xff] %vm795, %v776
        %799 = vst.msk [vmem:[#allocation3 + $0x48] sm:$0xff] %vm795, %v778
        %800 = vst.msk [vmem:[#allocation3 + $0x60] sm:$0xff] %vm795, %v780
        %801 = vst.msk [vmem:[#allocation3 + $0x78] sm:$0xff] %vm795, %v782
        %802 = vst.msk [vmem:[#allocation3 + $0x90] sm:$0xff] %vm795, %v784
        %803 = vst.msk [vmem:[#allocation3 + $0xa8] sm:$0xff] %vm795, %v786
        %v804 = vld [vmem:[%s681] sm:$0xff]
        %v805 = vld [vmem:[%s681 + $0x10] sm:$0xff]
        %v806 = vld [vmem:[%s681 + $0x20] sm:$0xff]
        %v807 = vld [vmem:[%s681 + $0x30] sm:$0xff]
        %v808 = vld [vmem:[%s681 + $0x40] sm:$0xff]
        %v809 = vld [vmem:[%s681 + $0x50] sm:$0xff]
        %v810 = vld [vmem:[%s681 + $0x60] sm:$0xff]
        %v811 = vld [vmem:[%s681 + $0x70] sm:$0xff]
        %820 = vrot.lane.b32.xlu0 %v804, 96
        %v821 = vpop.permute.xlu0 %820
        %822 = vrot.lane.b32.xlu0 %v805, 96
        %v823 = vpop.permute.xlu0 %822
        %824 = vrot.lane.b32.xlu0 %v806, 96
        %v825 = vpop.permute.xlu0 %824
        %826 = vrot.lane.b32.xlu0 %v807, 96
        %v827 = vpop.permute.xlu0 %826
        %828 = vrot.lane.b32.xlu0 %v808, 96
        %v829 = vpop.permute.xlu0 %828
        %830 = vrot.lane.b32.xlu0 %v809, 96
        %v831 = vpop.permute.xlu0 %830
        %832 = vrot.lane.b32.xlu0 %v810, 96
        %v833 = vpop.permute.xlu0 %832
        %834 = vrot.lane.b32.xlu0 %v811, 96
        %v835 = vpop.permute.xlu0 %834
        %vm844 = vcmask 1048320
        %845 = vst.msk [vmem:[#allocation3] sm:$0xff] %vm844, %v821
        %846 = vst.msk [vmem:[#allocation3 + $0x18] sm:$0xff] %vm844, %v823
        %847 = vst.msk [vmem:[#allocation3 + $0x30] sm:$0xff] %vm844, %v825
        %848 = vst.msk [vmem:[#allocation3 + $0x48] sm:$0xff] %vm844, %v827
        %849 = vst.msk [vmem:[#allocation3 + $0x60] sm:$0xff] %vm844, %v829
        %850 = vst.msk [vmem:[#allocation3 + $0x78] sm:$0xff] %vm844, %v831
        %851 = vst.msk [vmem:[#allocation3 + $0x90] sm:$0xff] %vm844, %v833
        %852 = vst.msk [vmem:[#allocation3 + $0xa8] sm:$0xff] %vm844, %v835
        %v853 = vld [vmem:[%s681 + $0x1] sm:$0xff]
        %v854 = vld [vmem:[%s681 + $0x11] sm:$0xff]
        %v855 = vld [vmem:[%s681 + $0x21] sm:$0xff]
        %v856 = vld [vmem:[%s681 + $0x31] sm:$0xff]
        %v857 = vld [vmem:[%s681 + $0x41] sm:$0xff]
        %v858 = vld [vmem:[%s681 + $0x51] sm:$0xff]
        %v859 = vld [vmem:[%s681 + $0x61] sm:$0xff]
        %v860 = vld [vmem:[%s681 + $0x71] sm:$0xff]
        %861 = vst.msk [vmem:[#allocation3 + $0x8] sm:$0xff] %vm627, %v853
        %862 = vst.msk [vmem:[#allocation3 + $0x20] sm:$0xff] %vm627, %v854
        %863 = vst.msk [vmem:[#allocation3 + $0x38] sm:$0xff] %vm627, %v855
        %864 = vst.msk [vmem:[#allocation3 + $0x50] sm:$0xff] %vm627, %v856
        %865 = vst.msk [vmem:[#allocation3 + $0x68] sm:$0xff] %vm627, %v857
        %866 = vst.msk [vmem:[#allocation3 + $0x80] sm:$0xff] %vm627, %v858
        %867 = vst.msk [vmem:[#allocation3 + $0x98] sm:$0xff] %vm627, %v859
        %868 = vst.msk [vmem:[#allocation3 + $0xb0] sm:$0xff] %vm627, %v860
        %v869 = vld [vmem:[%s681 + $0x2] sm:$0xff]
        %v870 = vld [vmem:[%s681 + $0x12] sm:$0xff]
        %v871 = vld [vmem:[%s681 + $0x22] sm:$0xff]
        %v872 = vld [vmem:[%s681 + $0x32] sm:$0xff]
        %v873 = vld [vmem:[%s681 + $0x42] sm:$0xff]
        %v874 = vld [vmem:[%s681 + $0x52] sm:$0xff]
        %v875 = vld [vmem:[%s681 + $0x62] sm:$0xff]
        %v876 = vld [vmem:[%s681 + $0x72] sm:$0xff]
        %885 = vrot.lane.b32.xlu0 %v869, 32
        %v886 = vpop.permute.xlu0 %885
        %887 = vrot.lane.b32.xlu0 %v870, 32
        %v888 = vpop.permute.xlu0 %887
        %889 = vrot.lane.b32.xlu0 %v871, 32
        %v890 = vpop.permute.xlu0 %889
        %891 = vrot.lane.b32.xlu0 %v872, 32
        %v892 = vpop.permute.xlu0 %891
        %893 = vrot.lane.b32.xlu0 %v873, 32
        %v894 = vpop.permute.xlu0 %893
        %895 = vrot.lane.b32.xlu0 %v874, 32
        %v896 = vpop.permute.xlu0 %895
        %897 = vrot.lane.b32.xlu0 %v875, 32
        %v898 = vpop.permute.xlu0 %897
        %899 = vrot.lane.b32.xlu0 %v876, 32
        %v900 = vpop.permute.xlu0 %899
        %909 = vst.msk [vmem:[#allocation3 + $0x8] sm:$0xff] %vm746, %v886
        %910 = vst.msk [vmem:[#allocation3 + $0x20] sm:$0xff] %vm746, %v888
        %911 = vst.msk [vmem:[#allocation3 + $0x38] sm:$0xff] %vm746, %v890
        %912 = vst.msk [vmem:[#allocation3 + $0x50] sm:$0xff] %vm746, %v892
        %913 = vst.msk [vmem:[#allocation3 + $0x68] sm:$0xff] %vm746, %v894
        %914 = vst.msk [vmem:[#allocation3 + $0x80] sm:$0xff] %vm746, %v896
        %915 = vst.msk [vmem:[#allocation3 + $0x98] sm:$0xff] %vm746, %v898
        %916 = vst.msk [vmem:[#allocation3 + $0xb0] sm:$0xff] %vm746, %v900
        %s917 = scalar_lea.vmem [#allocation2], 32
        %v918 = vld [vmem:[%s917] sm:$0xff]
        %v919 = vld [vmem:[%s917 + $0x10] sm:$0xff]
        %v920 = vld [vmem:[%s917 + $0x20] sm:$0xff]
        %v921 = vld [vmem:[%s917 + $0x30] sm:$0xff]
        %v922 = vld [vmem:[%s917 + $0x40] sm:$0xff]
        %v923 = vld [vmem:[%s917 + $0x50] sm:$0xff]
        %v924 = vld [vmem:[%s917 + $0x60] sm:$0xff]
        %v925 = vld [vmem:[%s917 + $0x70] sm:$0xff]
        %934 = vrot.lane.b32.xlu0 %v918, 64
        %v935 = vpop.permute.xlu0 %934
        %936 = vrot.lane.b32.xlu0 %v919, 64
        %v937 = vpop.permute.xlu0 %936
        %938 = vrot.lane.b32.xlu0 %v920, 64
        %v939 = vpop.permute.xlu0 %938
        %940 = vrot.lane.b32.xlu0 %v921, 64
        %v941 = vpop.permute.xlu0 %940
        %942 = vrot.lane.b32.xlu0 %v922, 64
        %v943 = vpop.permute.xlu0 %942
        %944 = vrot.lane.b32.xlu0 %v923, 64
        %v945 = vpop.permute.xlu0 %944
        %946 = vrot.lane.b32.xlu0 %v924, 64
        %v947 = vpop.permute.xlu0 %946
        %948 = vrot.lane.b32.xlu0 %v925, 64
        %v949 = vpop.permute.xlu0 %948
        %958 = vst.msk [vmem:[#allocation3 + $0x8] sm:$0xff] %vm795, %v935
        %959 = vst.msk [vmem:[#allocation3 + $0x20] sm:$0xff] %vm795, %v937
        %960 = vst.msk [vmem:[#allocation3 + $0x38] sm:$0xff] %vm795, %v939
        %961 = vst.msk [vmem:[#allocation3 + $0x50] sm:$0xff] %vm795, %v941
        %962 = vst.msk [vmem:[#allocation3 + $0x68] sm:$0xff] %vm795, %v943
        %963 = vst.msk [vmem:[#allocation3 + $0x80] sm:$0xff] %vm795, %v945
        %964 = vst.msk [vmem:[#allocation3 + $0x98] sm:$0xff] %vm795, %v947
        %965 = vst.msk [vmem:[#allocation3 + $0xb0] sm:$0xff] %vm795, %v949
        %v966 = vld [vmem:[%s917 + $0x1] sm:$0xff]
        %v967 = vld [vmem:[%s917 + $0x11] sm:$0xff]
        %v968 = vld [vmem:[%s917 + $0x21] sm:$0xff]
        %v969 = vld [vmem:[%s917 + $0x31] sm:$0xff]
        %v970 = vld [vmem:[%s917 + $0x41] sm:$0xff]
        %v971 = vld [vmem:[%s917 + $0x51] sm:$0xff]
        %v972 = vld [vmem:[%s917 + $0x61] sm:$0xff]
        %v973 = vld [vmem:[%s917 + $0x71] sm:$0xff]
        %982 = vrot.lane.b32.xlu0 %v966, 96
        %v983 = vpop.permute.xlu0 %982
        %984 = vrot.lane.b32.xlu0 %v967, 96
        %v985 = vpop.permute.xlu0 %984
        %986 = vrot.lane.b32.xlu0 %v968, 96
        %v987 = vpop.permute.xlu0 %986
        %988 = vrot.lane.b32.xlu0 %v969, 96
        %v989 = vpop.permute.xlu0 %988
        %990 = vrot.lane.b32.xlu0 %v970, 96
        %v991 = vpop.permute.xlu0 %990
        %992 = vrot.lane.b32.xlu0 %v971, 96
        %v993 = vpop.permute.xlu0 %992
        %994 = vrot.lane.b32.xlu0 %v972, 96
        %v995 = vpop.permute.xlu0 %994
        %996 = vrot.lane.b32.xlu0 %v973, 96
        %v997 = vpop.permute.xlu0 %996
        %1006 = vst.msk [vmem:[#allocation3 + $0x8] sm:$0xff] %vm844, %v983
        %1007 = vst.msk [vmem:[#allocation3 + $0x20] sm:$0xff] %vm844, %v985
        %1008 = vst.msk [vmem:[#allocation3 + $0x38] sm:$0xff] %vm844, %v987
        %1009 = vst.msk [vmem:[#allocation3 + $0x50] sm:$0xff] %vm844, %v989
        %1010 = vst.msk [vmem:[#allocation3 + $0x68] sm:$0xff] %vm844, %v991
        %1011 = vst.msk [vmem:[#allocation3 + $0x80] sm:$0xff] %vm844, %v993
        %1012 = vst.msk [vmem:[#allocation3 + $0x98] sm:$0xff] %vm844, %v995
        %1013 = vst.msk [vmem:[#allocation3 + $0xb0] sm:$0xff] %vm844, %v997
        %v1014 = vld [vmem:[%s917 + $0x2] sm:$0xff]
        %v1015 = vld [vmem:[%s917 + $0x12] sm:$0xff]
        %v1016 = vld [vmem:[%s917 + $0x22] sm:$0xff]
        %v1017 = vld [vmem:[%s917 + $0x32] sm:$0xff]
        %v1018 = vld [vmem:[%s917 + $0x42] sm:$0xff]
        %v1019 = vld [vmem:[%s917 + $0x52] sm:$0xff]
        %v1020 = vld [vmem:[%s917 + $0x62] sm:$0xff]
        %v1021 = vld [vmem:[%s917 + $0x72] sm:$0xff]
        %1022 = vst.msk [vmem:[#allocation3 + $0x10] sm:$0xff] %vm627, %v1014
        %1023 = vst.msk [vmem:[#allocation3 + $0x28] sm:$0xff] %vm627, %v1015
        %1024 = vst.msk [vmem:[#allocation3 + $0x40] sm:$0xff] %vm627, %v1016
        %1025 = vst.msk [vmem:[#allocation3 + $0x58] sm:$0xff] %vm627, %v1017
        %1026 = vst.msk [vmem:[#allocation3 + $0x70] sm:$0xff] %vm627, %v1018
        %1027 = vst.msk [vmem:[#allocation3 + $0x88] sm:$0xff] %vm627, %v1019
        %1028 = vst.msk [vmem:[#allocation3 + $0xa0] sm:$0xff] %vm627, %v1020
        %1029 = vst.msk [vmem:[#allocation3 + $0xb8] sm:$0xff] %vm627, %v1021
        %v1030 = vld [vmem:[#allocation3] sm:$0xff]
        %v1031 = vld [vmem:[#allocation3 + $0x8] sm:$0xff]
        %v1032 = vld [vmem:[#allocation3 + $0x10] sm:$0xff]
        %v1033 = vld [vmem:[#allocation3 + $0x18] sm:$0xff]
        %v1034 = vld [vmem:[#allocation3 + $0x20] sm:$0xff]
        %v1035 = vld [vmem:[#allocation3 + $0x28] sm:$0xff]
        %v1036 = vld [vmem:[#allocation3 + $0x30] sm:$0xff]
        %v1037 = vld [vmem:[#allocation3 + $0x38] sm:$0xff]
        %v1038 = vld [vmem:[#allocation3 + $0x40] sm:$0xff]
        %v1039 = vld [vmem:[#allocation3 + $0x48] sm:$0xff]
        %v1040 = vld [vmem:[#allocation3 + $0x50] sm:$0xff]
        %v1041 = vld [vmem:[#allocation3 + $0x58] sm:$0xff]
        %v1042 = vld [vmem:[#allocation3 + $0x60] sm:$0xff]
        %v1043 = vld [vmem:[#allocation3 + $0x68] sm:$0xff]
        %v1044 = vld [vmem:[#allocation3 + $0x70] sm:$0xff]
        %v1045 = vld [vmem:[#allocation3 + $0x78] sm:$0xff]
        %v1046 = vld [vmem:[#allocation3 + $0x80] sm:$0xff]
        %v1047 = vld [vmem:[#allocation3 + $0x88] sm:$0xff]
        %v1048 = vld [vmem:[#allocation3 + $0x90] sm:$0xff]
        %v1049 = vld [vmem:[#allocation3 + $0x98] sm:$0xff]
        %v1050 = vld [vmem:[#allocation3 + $0xa0] sm:$0xff]
        %v1051 = vld [vmem:[#allocation3 + $0xa8] sm:$0xff]
        %v1052 = vld [vmem:[#allocation3 + $0xb0] sm:$0xff]
        %v1053 = vld [vmem:[#allocation3 + $0xb8] sm:$0xff]
        %v1054 = vpack.c.bf16 %v1033, %v1030
        %v1055 = vpack.c.bf16 %v1034, %v1031
        %v1056 = vpack.c.bf16 %v1035, %v1032
        %v1057 = vpack.c.bf16 %v1039, %v1036
        %v1058 = vpack.c.bf16 %v1040, %v1037
        %v1059 = vpack.c.bf16 %v1041, %v1038
        %v1060 = vpack.c.bf16 %v1045, %v1042
        %v1061 = vpack.c.bf16 %v1046, %v1043
        %v1062 = vpack.c.bf16 %v1047, %v1044
        %v1063 = vpack.c.bf16 %v1051, %v1048
        %v1064 = vpack.c.bf16 %v1052, %v1049
        %v1065 = vpack.c.bf16 %v1053, %v1050
        %v1066 = vld [vmem:[%s3] sm:$0xf]
        %v1067 = vld [vmem:[%s3 + $0x4] sm:$0xf]
        %v1068 = vld [vmem:[%s3 + $0x8] sm:$0xf]
        %v1069 = vld [vmem:[%s3 + $0xc] sm:$0xf]
        %v1070 = vld [vmem:[%s3 + $0x10] sm:$0xf]
        %v1071 = vld [vmem:[%s3 + $0x14] sm:$0xf]
        %v1072 = vld [vmem:[%s3 + $0x18] sm:$0xf]
        %v1073 = vld [vmem:[%s3 + $0x1c] sm:$0xf]
        %v1074 = vld [vmem:[%s3 + $0x20] sm:$0xf]
        %v1075 = vld [vmem:[%s3 + $0x24] sm:$0xf]
        %v1076 = vld [vmem:[%s3 + $0x28] sm:$0xf]
        %v1077 = vld [vmem:[%s3 + $0x2c] sm:$0xf]
        %v1078 = vld [vmem:[%s3 + $0x30] sm:$0xf]
        %v1079 = vld [vmem:[%s3 + $0x34] sm:$0xf]
        %v1080 = vld [vmem:[%s3 + $0x38] sm:$0xf]
        %v1081 = vld [vmem:[%s3 + $0x3c] sm:$0xf]
        %v1082 = vld [vmem:[%s3 + $0x40] sm:$0xf]
        %v1083 = vld [vmem:[%s3 + $0x44] sm:$0xf]
        %v1084 = vld [vmem:[%s3 + $0x48] sm:$0xf]
        %v1085 = vld [vmem:[%s3 + $0x4c] sm:$0xf]
        %v1086 = vld [vmem:[%s3 + $0x50] sm:$0xf]
        %v1087 = vld [vmem:[%s3 + $0x54] sm:$0xf]
        %v1088 = vld [vmem:[%s3 + $0x58] sm:$0xf]
        %v1089 = vld [vmem:[%s3 + $0x5c] sm:$0xf]
        %v1090 = vld [vmem:[%s3 + $0x60] sm:$0xf]
        %v1091 = vld [vmem:[%s3 + $0x64] sm:$0xf]
        %v1092 = vld [vmem:[%s3 + $0x68] sm:$0xf]
        %v1093 = vld [vmem:[%s3 + $0x6c] sm:$0xf]
        %v1094 = vld [vmem:[%s3 + $0x70] sm:$0xf]
        %v1095 = vld [vmem:[%s3 + $0x74] sm:$0xf]
        %v1096 = vld [vmem:[%s3 + $0x78] sm:$0xf]
        %v1097 = vld [vmem:[%s3 + $0x7c] sm:$0xf]
        %v1098 = vld [vmem:[%s3 + $0x80] sm:$0xf]
        %v1099 = vld [vmem:[%s3 + $0x84] sm:$0xf]
        %v1100 = vld [vmem:[%s3 + $0x88] sm:$0xf]
        %v1101 = vld [vmem:[%s3 + $0x8c] sm:$0xf]
        %v1102 = vld [vmem:[%s4] sm:$0x1]
        %v1104 = vlaneseq
        %v1105 = vshrl.u32 %v1104, 7
        %v1106 = vsub.s32 0, %v1105
        %v1107 = vrot.slane %v1102, %v1106
        %v1145 = vunpack.c.l.b16 %v1066
        %v1146 = vunpack.c.l.b16 %v1067
        %v1147 = vunpack.c.l.b16 %v1068
        %v1148 = vunpack.c.l.b16 %v1069
        %v1149 = vunpack.c.l.b16 %v1070
        %v1150 = vunpack.c.l.b16 %v1071
        %v1151 = vunpack.c.l.b16 %v1072
        %v1152 = vunpack.c.l.b16 %v1073
        %v1153 = vunpack.c.l.b16 %v1074
        %v1154 = vunpack.c.l.b16 %v1075
        %v1155 = vunpack.c.l.b16 %v1076
        %v1156 = vunpack.c.l.b16 %v1077
        %v1157 = vunpack.c.l.b16 %v1078
        %v1158 = vunpack.c.l.b16 %v1079
        %v1159 = vunpack.c.l.b16 %v1080
        %v1160 = vunpack.c.l.b16 %v1081
        %v1161 = vunpack.c.l.b16 %v1082
        %v1162 = vunpack.c.l.b16 %v1083
        %v1163 = vunpack.c.l.b16 %v1084
        %v1164 = vunpack.c.l.b16 %v1085
        %v1165 = vunpack.c.l.b16 %v1086
        %v1166 = vunpack.c.l.b16 %v1087
        %v1167 = vunpack.c.l.b16 %v1088
        %v1168 = vunpack.c.l.b16 %v1089
        %v1169 = vunpack.c.l.b16 %v1090
        %v1170 = vunpack.c.l.b16 %v1091
        %v1171 = vunpack.c.l.b16 %v1092
        %v1172 = vunpack.c.l.b16 %v1093
        %v1173 = vunpack.c.l.b16 %v1094
        %v1174 = vunpack.c.l.b16 %v1095
        %v1175 = vunpack.c.l.b16 %v1096
        %v1176 = vunpack.c.l.b16 %v1097
        %v1177 = vunpack.c.l.b16 %v1098
        %v1178 = vunpack.c.l.b16 %v1099
        %v1179 = vunpack.c.l.b16 %v1100
        %v1180 = vunpack.c.l.b16 %v1101
        %v1181 = vpack.c.b16 %v1146, %v1145
        %v1182 = vpack.c.b16 %v1148, %v1147
        %v1183 = vpack.c.b16 %v1150, %v1149
        %v1184 = vpack.c.b16 %v1152, %v1151
        %v1185 = vpack.c.b16 %v1154, %v1153
        %v1186 = vpack.c.b16 %v1156, %v1155
        %v1187 = vpack.c.b16 %v1158, %v1157
        %v1188 = vpack.c.b16 %v1160, %v1159
        %v1189 = vpack.c.b16 %v1162, %v1161
        %v1190 = vpack.c.b16 %v1164, %v1163
        %v1191 = vpack.c.b16 %v1166, %v1165
        %v1192 = vpack.c.b16 %v1168, %v1167
        %v1193 = vpack.c.b16 %v1170, %v1169
        %v1194 = vpack.c.b16 %v1172, %v1171
        %v1195 = vpack.c.b16 %v1174, %v1173
        %v1196 = vpack.c.b16 %v1176, %v1175
        %v1197 = vpack.c.b16 %v1178, %v1177
        %v1198 = vpack.c.b16 %v1180, %v1179
        %v1218 = vsel %vm627, %v1056, 0
        %v1221 = vsel %vm627, %v1059, 0
        %v1224 = vsel %vm627, %v1062, 0
        %v1227 = vsel %vm627, %v1065, 0
        %1229 = vmatprep.subr.bf16.mxu0 0
        %1230 = vmatpush1.bf16.msra.mxu0 %v1181
        %1231 = vmatprep.subr.bf16.mxu0 0
        %1232 = vmatpush1.bf16.msra.mxu0 %v1182
        %1233 = vmatprep.subr.bf16.mxu0 0
        %1234 = vmatpush1.bf16.msra.mxu0 %v1183
        %1235 = vmatprep.subr.bf16.mxu0 0
        %1236 = vmatpush1.bf16.msra.mxu0 %v1184
        %1237 = vmatprep.subr.bf16.mxu0 0
        %1238 = vmatpush1.bf16.msra.mxu0 %v1185
        %1239 = vmatprep.subr.bf16.mxu0 0
        %1240 = vmatpush1.bf16.msra.mxu0 %v1186
        %1241 = vmatprep.subr.bf16.mxu0 0
        %1242 = vmatpush1.bf16.msra.mxu0 %v1187
        %1243 = vmatprep.subr.bf16.mxu0 0
        %1244 = vmatpush1.bf16.msra.mxu0 %v1188
        %1245 = vmatprep.subr.bf16.mxu0 0
        %1246 = vmatpush1.bf16.msra.mxu0 %v1189
        %1247 = vmatprep.subr.bf16.mxu0 0
        %1248 = vmatpush1.bf16.msra.mxu0 %v1190
        %1249 = vmatprep.subr.bf16.mxu0 0
        %1250 = vmatpush1.bf16.msra.mxu0 %v1191
        %1251 = vmatprep.subr.bf16.mxu0 0
        %1252 = vmatpush1.bf16.msra.mxu0 %v1192
        %1253 = vmatprep.subr.bf16.mxu0 0
        %1254 = vmatpush1.bf16.msra.mxu0 %v1193
        %1255 = vmatprep.subr.bf16.mxu0 0
        %1256 = vmatpush1.bf16.msra.mxu0 %v1194
        %1257 = vmatprep.subr.bf16.mxu0 0
        %1258 = vmatpush1.bf16.msra.mxu0 %v1195
        %1259 = vmatprep.subr.bf16.mxu0 0
        %1260 = vmatpush1.bf16.msra.mxu0 %v1196
        %1261 = vmatprep.mubr.bf16.mxu0 %v1055
        %1262 = vmatmul.mubr.bf16.gmra.mrb[0].mxu0 %v1054
        %v1263 = vpop.f32.mrb[0].mxu0
        %v1264 = vadd.f32 %v1107, %v1263
        %v1265 = vpop.f32.mrb[0].mxu0
        %v1266 = vpop.f32.mrb[0].mxu0
        %v1267 = vadd.f32 %v1107, %v1266
        %v1268 = vpop.f32.mrb[0].mxu0
        %1269 = vmatprep.mubr.bf16.mxu0 %v1058
        %1270 = vmatmul.mubr.bf16.gmra.mrb[0].mxu0 %v1057
        %v1271 = vpop.f32.mrb[0].mxu0
        %v1272 = vadd.f32 %v1107, %v1271
        %v1273 = vpop.f32.mrb[0].mxu0
        %v1274 = vpop.f32.mrb[0].mxu0
        %v1275 = vadd.f32 %v1107, %v1274
        %v1276 = vpop.f32.mrb[0].mxu0
        %1277 = vmatprep.mubr.bf16.mxu0 %v1061
        %1278 = vmatmul.mubr.bf16.gmra.mrb[0].mxu0 %v1060
        %v1279 = vpop.f32.mrb[0].mxu0
        %v1280 = vadd.f32 %v1107, %v1279
        %v1281 = vpop.f32.mrb[0].mxu0
        %v1282 = vpop.f32.mrb[0].mxu0
        %v1283 = vadd.f32 %v1107, %v1282
        %v1284 = vpop.f32.mrb[0].mxu0
        %1285 = vmatprep.mubr.bf16.mxu0 %v1064
        %1286 = vmatmul.mubr.bf16.gmra.mrb[0].mxu0 %v1063
        %v1287 = vpop.f32.mrb[0].mxu0
        %v1288 = vadd.f32 %v1107, %v1287
        %v1289 = vpop.f32.mrb[0].mxu0
        %v1290 = vpop.f32.mrb[0].mxu0
        %v1291 = vadd.f32 %v1107, %v1290
        %v1292 = vpop.f32.mrb[0].mxu0
        %1293 = vdwg.mxu0
        %1294 = vmatprep.subr.bf16.mxu0 0
        %1295 = vmatpush1.bf16.msra.mxu0 %v1197
        %1296 = vmatprep.subr.bf16.mxu0 0
        %1297 = vmatpush1.bf16.msra.mxu0 %v1198
        %1298 = vmatprep.subr.bf16.mxu0 0
        %1299 = vmatpush1.bf16.msra.mxu0 0
        %1300 = vmatprep.subr.bf16.mxu0 0
        %1301 = vmatpush1.bf16.msra.mxu0 0
        %1302 = vmatprep.subr.bf16.mxu0 0
        %1303 = vmatpush1.bf16.msra.mxu0 0
        %1304 = vmatprep.subr.bf16.mxu0 0
        %1305 = vmatpush1.bf16.msra.mxu0 0
        %1306 = vmatprep.subr.bf16.mxu0 0
        %1307 = vmatpush1.bf16.msra.mxu0 0
        %1308 = vmatprep.subr.bf16.mxu0 0
        %1309 = vmatpush1.bf16.msra.mxu0 0
        %1310 = vmatprep.subr.bf16.mxu0 0
        %1311 = vmatpush1.bf16.msra.mxu0 0
        %1312 = vmatprep.subr.bf16.mxu0 0
        %1313 = vmatpush1.bf16.msra.mxu0 0
        %1314 = vmatprep.subr.bf16.mxu0 0
        %1315 = vmatpush1.bf16.msra.mxu0 0
        %1316 = vmatprep.subr.bf16.mxu0 0
        %1317 = vmatpush1.bf16.msra.mxu0 0
        %1318 = vmatprep.subr.bf16.mxu0 0
        %1319 = vmatpush1.bf16.msra.mxu0 0
        %1320 = vmatprep.subr.bf16.mxu0 0
        %1321 = vmatpush1.bf16.msra.mxu0 0
        %1322 = vmatprep.subr.bf16.mxu0 0
        %1323 = vmatpush1.bf16.msra.mxu0 0
        %1324 = vmatprep.subr.bf16.mxu0 0
        %1325 = vmatpush1.bf16.msra.mxu0 0
        %1326 = vmatprep.mubr.bf16.mxu0 0
        %1327 = vmatmul.mubr.bf16.gmra.mrb[0].mxu0 %v1218
        %v1328 = vpop.f32.mrb[0].mxu0
        %v1329 = vadd.f32 %v1264, %v1328
        %v1330 = vpop.f32.mrb[0].mxu0
        %v1331 = vpop.f32.mrb[0].mxu0
        %v1332 = vadd.f32 %v1267, %v1331
        %v1333 = vpop.f32.mrb[0].mxu0
        %1334 = vmatprep.mubr.bf16.mxu0 0
        %1335 = vmatmul.mubr.bf16.gmra.mrb[0].mxu0 %v1221
        %v1336 = vpop.f32.mrb[0].mxu0
        %v1337 = vadd.f32 %v1272, %v1336
        %v1338 = vpop.f32.mrb[0].mxu0
        %v1339 = vpop.f32.mrb[0].mxu0
        %v1340 = vadd.f32 %v1275, %v1339
        %v1341 = vpop.f32.mrb[0].mxu0
        %1342 = vmatprep.mubr.bf16.mxu0 0
        %1343 = vmatmul.mubr.bf16.gmra.mrb[0].mxu0 %v1224
        %v1344 = vpop.f32.mrb[0].mxu0
        %v1345 = vadd.f32 %v1280, %v1344
        %v1346 = vpop.f32.mrb[0].mxu0
        %v1347 = vpop.f32.mrb[0].mxu0
        %v1348 = vadd.f32 %v1283, %v1347
        %v1349 = vpop.f32.mrb[0].mxu0
        %1350 = vmatprep.mubr.bf16.mxu0 0
        %1351 = vmatmul.mubr.bf16.gmra.mrb[0].mxu0 %v1227
        %v1352 = vpop.f32.mrb[0].mxu0
        %v1353 = vadd.f32 %v1288, %v1352
        %v1354 = vpop.f32.mrb[0].mxu0
        %v1355 = vpop.f32.mrb[0].mxu0
        %v1356 = vadd.f32 %v1291, %v1355
        %v1357 = vpop.f32.mrb[0].mxu0
        %1358 = vdwg.mxu0
        %v1359 = vmax.f32 %v1329, 0.0
        %v1360 = vmax.f32 %v1332, 0.0
        %v1361 = vmax.f32 %v1337, 0.0
        %v1362 = vmax.f32 %v1340, 0.0
        %v1363 = vmax.f32 %v1345, 0.0
        %v1364 = vmax.f32 %v1348, 0.0
        %v1365 = vmax.f32 %v1353, 0.0
        %v1366 = vmax.f32 %v1356, 0.0
        %1367 = vrot.lane.b32.xlu0 %v610, 64
        %v1368 = vpop.permute.xlu0 %1367
        %1369 = vrot.lane.b32.xlu0 %v611, 64
        %v1370 = vpop.permute.xlu0 %1369
        %1371 = vrot.lane.b32.xlu0 %v612, 64
        %v1372 = vpop.permute.xlu0 %1371
        %1373 = vrot.lane.b32.xlu0 %v613, 64
        %v1374 = vpop.permute.xlu0 %1373
        %1375 = vrot.lane.b32.xlu0 %v614, 64
        %v1376 = vpop.permute.xlu0 %1375
        %1377 = vrot.lane.b32.xlu0 %v615, 64
        %v1378 = vpop.permute.xlu0 %1377
        %1379 = vrot.lane.b32.xlu0 %v616, 64
        %v1380 = vpop.permute.xlu0 %1379
        %1381 = vrot.lane.b32.xlu0 %v617, 64
        %v1382 = vpop.permute.xlu0 %1381
        %1391 = vst.msk [vmem:[%s681 + $0x1] sm:$0xff] %vm627, %v1368
        %1392 = vst.msk [vmem:[%s681 + $0x11] sm:$0xff] %vm627, %v1370
        %1393 = vst.msk [vmem:[%s681 + $0x21] sm:$0xff] %vm627, %v1372
        %1394 = vst.msk [vmem:[%s681 + $0x31] sm:$0xff] %vm627, %v1374
        %1395 = vst.msk [vmem:[%s681 + $0x41] sm:$0xff] %vm627, %v1376
        %1396 = vst.msk [vmem:[%s681 + $0x51] sm:$0xff] %vm627, %v1378
        %1397 = vst.msk [vmem:[%s681 + $0x61] sm:$0xff] %vm627, %v1380
        %1398 = vst.msk [vmem:[%s681 + $0x71] sm:$0xff] %vm627, %v1382
        %v1399 = vld [vmem:[#allocation2] sm:$0xff]
        %v1400 = vld [vmem:[#allocation2 + $0x10] sm:$0xff]
        %v1401 = vld [vmem:[#allocation2 + $0x20] sm:$0xff]
        %v1402 = vld [vmem:[#allocation2 + $0x30] sm:$0xff]
        %v1403 = vld [vmem:[#allocation2 + $0x40] sm:$0xff]
        %v1404 = vld [vmem:[#allocation2 + $0x50] sm:$0xff]
        %v1405 = vld [vmem:[#allocation2 + $0x60] sm:$0xff]
        %v1406 = vld [vmem:[#allocation2 + $0x70] sm:$0xff]
        %1407 = vst.msk [vmem:[#allocation3] sm:$0xff] %vm627, %v1399
        %1408 = vst.msk [vmem:[#allocation3 + $0x18] sm:$0xff] %vm627, %v1400
        %1409 = vst.msk [vmem:[#allocation3 + $0x30] sm:$0xff] %vm627, %v1401
        %1410 = vst.msk [vmem:[#allocation3 + $0x48] sm:$0xff] %vm627, %v1402
        %1411 = vst.msk [vmem:[#allocation3 + $0x60] sm:$0xff] %vm627, %v1403
        %1412 = vst.msk [vmem:[#allocation3 + $0x78] sm:$0xff] %vm627, %v1404
        %1413 = vst.msk [vmem:[#allocation3 + $0x90] sm:$0xff] %vm627, %v1405
        %1414 = vst.msk [vmem:[#allocation3 + $0xa8] sm:$0xff] %vm627, %v1406
        %v1415 = vld [vmem:[#allocation2 + $0x1] sm:$0xff]
        %v1416 = vld [vmem:[#allocation2 + $0x11] sm:$0xff]
        %v1417 = vld [vmem:[#allocation2 + $0x21] sm:$0xff]
        %v1418 = vld [vmem:[#allocation2 + $0x31] sm:$0xff]
        %v1419 = vld [vmem:[#allocation2 + $0x41] sm:$0xff]
        %v1420 = vld [vmem:[#allocation2 + $0x51] sm:$0xff]
        %v1421 = vld [vmem:[#allocation2 + $0x61] sm:$0xff]
        %v1422 = vld [vmem:[#allocation2 + $0x71] sm:$0xff]
        %1431 = vrot.lane.b32.xlu0 %v1415, 32
        %v1432 = vpop.permute.xlu0 %1431
        %1433 = vrot.lane.b32.xlu0 %v1416, 32
        %v1434 = vpop.permute.xlu0 %1433
        %1435 = vrot.lane.b32.xlu0 %v1417, 32
        %v1436 = vpop.permute.xlu0 %1435
        %1437 = vrot.lane.b32.xlu0 %v1418, 32
        %v1438 = vpop.permute.xlu0 %1437
        %1439 = vrot.lane.b32.xlu0 %v1419, 32
        %v1440 = vpop.permute.xlu0 %1439
        %1441 = vrot.lane.b32.xlu0 %v1420, 32
        %v1442 = vpop.permute.xlu0 %1441
        %1443 = vrot.lane.b32.xlu0 %v1421, 32
        %v1444 = vpop.permute.xlu0 %1443
        %1445 = vrot.lane.b32.xlu0 %v1422, 32
        %v1446 = vpop.permute.xlu0 %1445
        %1455 = vst.msk [vmem:[#allocation3] sm:$0xff] %vm746, %v1432
        %1456 = vst.msk [vmem:[#allocation3 + $0x18] sm:$0xff] %vm746, %v1434
        %1457 = vst.msk [vmem:[#allocation3 + $0x30] sm:$0xff] %vm746, %v1436
        %1458 = vst.msk [vmem:[#allocation3 + $0x48] sm:$0xff] %vm746, %v1438
        %1459 = vst.msk [vmem:[#allocation3 + $0x60] sm:$0xff] %vm746, %v1440
        %1460 = vst.msk [vmem:[#allocation3 + $0x78] sm:$0xff] %vm746, %v1442
        %1461 = vst.msk [vmem:[#allocation3 + $0x90] sm:$0xff] %vm746, %v1444
        %1462 = vst.msk [vmem:[#allocation3 + $0xa8] sm:$0xff] %vm746, %v1446
        %v1463 = vld [vmem:[#allocation2 + $0x2] sm:$0xff]
        %v1464 = vld [vmem:[#allocation2 + $0x12] sm:$0xff]
        %v1465 = vld [vmem:[#allocation2 + $0x22] sm:$0xff]
        %v1466 = vld [vmem:[#allocation2 + $0x32] sm:$0xff]
        %v1467 = vld [vmem:[#allocation2 + $0x42] sm:$0xff]
        %v1468 = vld [vmem:[#allocation2 + $0x52] sm:$0xff]
        %v1469 = vld [vmem:[#allocation2 + $0x62] sm:$0xff]
        %v1470 = vld [vmem:[#allocation2 + $0x72] sm:$0xff]
        %1479 = vrot.lane.b32.xlu0 %v1463, 64
        %v1480 = vpop.permute.xlu0 %1479
        %1481 = vrot.lane.b32.xlu0 %v1464, 64
        %v1482 = vpop.permute.xlu0 %1481
        %1483 = vrot.lane.b32.xlu0 %v1465, 64
        %v1484 = vpop.permute.xlu0 %1483
        %1485 = vrot.lane.b32.xlu0 %v1466, 64
        %v1486 = vpop.permute.xlu0 %1485
        %1487 = vrot.lane.b32.xlu0 %v1467, 64
        %v1488 = vpop.permute.xlu0 %1487
        %1489 = vrot.lane.b32.xlu0 %v1468, 64
        %v1490 = vpop.permute.xlu0 %1489
        %1491 = vrot.lane.b32.xlu0 %v1469, 64
        %v1492 = vpop.permute.xlu0 %1491
        %1493 = vrot.lane.b32.xlu0 %v1470, 64
        %v1494 = vpop.permute.xlu0 %1493
        %1503 = vst.msk [vmem:[#allocation3] sm:$0xff] %vm795, %v1480
        %1504 = vst.msk [vmem:[#allocation3 + $0x18] sm:$0xff] %vm795, %v1482
        %1505 = vst.msk [vmem:[#allocation3 + $0x30] sm:$0xff] %vm795, %v1484
        %1506 = vst.msk [vmem:[#allocation3 + $0x48] sm:$0xff] %vm795, %v1486
        %1507 = vst.msk [vmem:[#allocation3 + $0x60] sm:$0xff] %vm795, %v1488
        %1508 = vst.msk [vmem:[#allocation3 + $0x78] sm:$0xff] %vm795, %v1490
        %1509 = vst.msk [vmem:[#allocation3 + $0x90] sm:$0xff] %vm795, %v1492
        %1510 = vst.msk [vmem:[#allocation3 + $0xa8] sm:$0xff] %vm795, %v1494
        %v1511 = vld [vmem:[%s681] sm:$0xff]
        %v1512 = vld [vmem:[%s681 + $0x10] sm:$0xff]
        %v1513 = vld [vmem:[%s681 + $0x20] sm:$0xff]
        %v1514 = vld [vmem:[%s681 + $0x30] sm:$0xff]
        %v1515 = vld [vmem:[%s681 + $0x40] sm:$0xff]
        %v1516 = vld [vmem:[%s681 + $0x50] sm:$0xff]
        %v1517 = vld [vmem:[%s681 + $0x60] sm:$0xff]
        %v1518 = vld [vmem:[%s681 + $0x70] sm:$0xff]
        %1527 = vrot.lane.b32.xlu0 %v1511, 96
        %v1528 = vpop.permute.xlu0 %1527
        %1529 = vrot.lane.b32.xlu0 %v1512, 96
        %v1530 = vpop.permute.xlu0 %1529
        %1531 = vrot.lane.b32.xlu0 %v1513, 96
        %v1532 = vpop.permute.xlu0 %1531
        %1533 = vrot.lane.b32.xlu0 %v1514, 96
        %v1534 = vpop.permute.xlu0 %1533
        %1535 = vrot.lane.b32.xlu0 %v1515, 96
        %v1536 = vpop.permute.xlu0 %1535
        %1537 = vrot.lane.b32.xlu0 %v1516, 96
        %v1538 = vpop.permute.xlu0 %1537
        %1539 = vrot.lane.b32.xlu0 %v1517, 96
        %v1540 = vpop.permute.xlu0 %1539
        %1541 = vrot.lane.b32.xlu0 %v1518, 96
        %v1542 = vpop.permute.xlu0 %1541
        %1551 = vst.msk [vmem:[#allocation3] sm:$0xff] %vm844, %v1528
        %1552 = vst.msk [vmem:[#allocation3 + $0x18] sm:$0xff] %vm844, %v1530
        %1553 = vst.msk [vmem:[#allocation3 + $0x30] sm:$0xff] %vm844, %v1532
        %1554 = vst.msk [vmem:[#allocation3 + $0x48] sm:$0xff] %vm844, %v1534
        %1555 = vst.msk [vmem:[#allocation3 + $0x60] sm:$0xff] %vm844, %v1536
        %1556 = vst.msk [vmem:[#allocation3 + $0x78] sm:$0xff] %vm844, %v1538
        %1557 = vst.msk [vmem:[#allocation3 + $0x90] sm:$0xff] %vm844, %v1540
        %1558 = vst.msk [vmem:[#allocation3 + $0xa8] sm:$0xff] %vm844, %v1542
        %v1559 = vld [vmem:[%s681 + $0x1] sm:$0xff]
        %v1560 = vld [vmem:[%s681 + $0x11] sm:$0xff]
        %v1561 = vld [vmem:[%s681 + $0x21] sm:$0xff]
        %v1562 = vld [vmem:[%s681 + $0x31] sm:$0xff]
        %v1563 = vld [vmem:[%s681 + $0x41] sm:$0xff]
        %v1564 = vld [vmem:[%s681 + $0x51] sm:$0xff]
        %v1565 = vld [vmem:[%s681 + $0x61] sm:$0xff]
        %v1566 = vld [vmem:[%s681 + $0x71] sm:$0xff]
        %1567 = vst.msk [vmem:[#allocation3 + $0x8] sm:$0xff] %vm627, %v1559
        %1568 = vst.msk [vmem:[#allocation3 + $0x20] sm:$0xff] %vm627, %v1560
        %1569 = vst.msk [vmem:[#allocation3 + $0x38] sm:$0xff] %vm627, %v1561
        %1570 = vst.msk [vmem:[#allocation3 + $0x50] sm:$0xff] %vm627, %v1562
        %1571 = vst.msk [vmem:[#allocation3 + $0x68] sm:$0xff] %vm627, %v1563
        %1572 = vst.msk [vmem:[#allocation3 + $0x80] sm:$0xff] %vm627, %v1564
        %1573 = vst.msk [vmem:[#allocation3 + $0x98] sm:$0xff] %vm627, %v1565
        %1574 = vst.msk [vmem:[#allocation3 + $0xb0] sm:$0xff] %vm627, %v1566
        %v1575 = vld [vmem:[%s681 + $0x2] sm:$0xff]
        %v1576 = vld [vmem:[%s681 + $0x12] sm:$0xff]
        %v1577 = vld [vmem:[%s681 + $0x22] sm:$0xff]
        %v1578 = vld [vmem:[%s681 + $0x32] sm:$0xff]
        %v1579 = vld [vmem:[%s681 + $0x42] sm:$0xff]
        %v1580 = vld [vmem:[%s681 + $0x52] sm:$0xff]
        %v1581 = vld [vmem:[%s681 + $0x62] sm:$0xff]
        %v1582 = vld [vmem:[%s681 + $0x72] sm:$0xff]
        %1591 = vrot.lane.b32.xlu0 %v1575, 32
        %v1592 = vpop.permute.xlu0 %1591
        %1593 = vrot.lane.b32.xlu0 %v1576, 32
        %v1594 = vpop.permute.xlu0 %1593
        %1595 = vrot.lane.b32.xlu0 %v1577, 32
        %v1596 = vpop.permute.xlu0 %1595
        %1597 = vrot.lane.b32.xlu0 %v1578, 32
        %v1598 = vpop.permute.xlu0 %1597
        %1599 = vrot.lane.b32.xlu0 %v1579, 32
        %v1600 = vpop.permute.xlu0 %1599
        %1601 = vrot.lane.b32.xlu0 %v1580, 32
        %v1602 = vpop.permute.xlu0 %1601
        %1603 = vrot.lane.b32.xlu0 %v1581, 32
        %v1604 = vpop.permute.xlu0 %1603
        %1605 = vrot.lane.b32.xlu0 %v1582, 32
        %v1606 = vpop.permute.xlu0 %1605
        %1615 = vst.msk [vmem:[#allocation3 + $0x8] sm:$0xff] %vm746, %v1592
        %1616 = vst.msk [vmem:[#allocation3 + $0x20] sm:$0xff] %vm746, %v1594
        %1617 = vst.msk [vmem:[#allocation3 + $0x38] sm:$0xff] %vm746, %v1596
        %1618 = vst.msk [vmem:[#allocation3 + $0x50] sm:$0xff] %vm746, %v1598
        %1619 = vst.msk [vmem:[#allocation3 + $0x68] sm:$0xff] %vm746, %v1600
        %1620 = vst.msk [vmem:[#allocation3 + $0x80] sm:$0xff] %vm746, %v1602
        %1621 = vst.msk [vmem:[#allocation3 + $0x98] sm:$0xff] %vm746, %v1604
        %1622 = vst.msk [vmem:[#allocation3 + $0xb0] sm:$0xff] %vm746, %v1606
        %v1623 = vld [vmem:[%s917] sm:$0xff]
        %v1624 = vld [vmem:[%s917 + $0x10] sm:$0xff]
        %v1625 = vld [vmem:[%s917 + $0x20] sm:$0xff]
        %v1626 = vld [vmem:[%s917 + $0x30] sm:$0xff]
        %v1627 = vld [vmem:[%s917 + $0x40] sm:$0xff]
        %v1628 = vld [vmem:[%s917 + $0x50] sm:$0xff]
        %v1629 = vld [vmem:[%s917 + $0x60] sm:$0xff]
        %v1630 = vld [vmem:[%s917 + $0x70] sm:$0xff]
        %1639 = vrot.lane.b32.xlu0 %v1623, 64
        %v1640 = vpop.permute.xlu0 %1639
        %1641 = vrot.lane.b32.xlu0 %v1624, 64
        %v1642 = vpop.permute.xlu0 %1641
        %1643 = vrot.lane.b32.xlu0 %v1625, 64
        %v1644 = vpop.permute.xlu0 %1643
        %1645 = vrot.lane.b32.xlu0 %v1626, 64
        %v1646 = vpop.permute.xlu0 %1645
        %1647 = vrot.lane.b32.xlu0 %v1627, 64
        %v1648 = vpop.permute.xlu0 %1647
        %1649 = vrot.lane.b32.xlu0 %v1628, 64
        %v1650 = vpop.permute.xlu0 %1649
        %1651 = vrot.lane.b32.xlu0 %v1629, 64
        %v1652 = vpop.permute.xlu0 %1651
        %1653 = vrot.lane.b32.xlu0 %v1630, 64
        %v1654 = vpop.permute.xlu0 %1653
        %1663 = vst.msk [vmem:[#allocation3 + $0x8] sm:$0xff] %vm795, %v1640
        %1664 = vst.msk [vmem:[#allocation3 + $0x20] sm:$0xff] %vm795, %v1642
        %1665 = vst.msk [vmem:[#allocation3 + $0x38] sm:$0xff] %vm795, %v1644
        %1666 = vst.msk [vmem:[#allocation3 + $0x50] sm:$0xff] %vm795, %v1646
        %1667 = vst.msk [vmem:[#allocation3 + $0x68] sm:$0xff] %vm795, %v1648
        %1668 = vst.msk [vmem:[#allocation3 + $0x80] sm:$0xff] %vm795, %v1650
        %1669 = vst.msk [vmem:[#allocation3 + $0x98] sm:$0xff] %vm795, %v1652
        %1670 = vst.msk [vmem:[#allocation3 + $0xb0] sm:$0xff] %vm795, %v1654
        %v1671 = vld [vmem:[%s917 + $0x1] sm:$0xff]
        %v1672 = vld [vmem:[%s917 + $0x11] sm:$0xff]
        %v1673 = vld [vmem:[%s917 + $0x21] sm:$0xff]
        %v1674 = vld [vmem:[%s917 + $0x31] sm:$0xff]
        %v1675 = vld [vmem:[%s917 + $0x41] sm:$0xff]
        %v1676 = vld [vmem:[%s917 + $0x51] sm:$0xff]
        %v1677 = vld [vmem:[%s917 + $0x61] sm:$0xff]
        %v1678 = vld [vmem:[%s917 + $0x71] sm:$0xff]
        %1687 = vrot.lane.b32.xlu0 %v1671, 96
        %v1688 = vpop.permute.xlu0 %1687
        %1689 = vrot.lane.b32.xlu0 %v1672, 96
        %v1690 = vpop.permute.xlu0 %1689
        %1691 = vrot.lane.b32.xlu0 %v1673, 96
        %v1692 = vpop.permute.xlu0 %1691
        %1693 = vrot.lane.b32.xlu0 %v1674, 96
        %v1694 = vpop.permute.xlu0 %1693
        %1695 = vrot.lane.b32.xlu0 %v1675, 96
        %v1696 = vpop.permute.xlu0 %1695
        %1697 = vrot.lane.b32.xlu0 %v1676, 96
        %v1698 = vpop.permute.xlu0 %1697
        %1699 = vrot.lane.b32.xlu0 %v1677, 96
        %v1700 = vpop.permute.xlu0 %1699
        %1701 = vrot.lane.b32.xlu0 %v1678, 96
        %v1702 = vpop.permute.xlu0 %1701
        %1711 = vst.msk [vmem:[#allocation3 + $0x8] sm:$0xff] %vm844, %v1688
        %1712 = vst.msk [vmem:[#allocation3 + $0x20] sm:$0xff] %vm844, %v1690
        %1713 = vst.msk [vmem:[#allocation3 + $0x38] sm:$0xff] %vm844, %v1692
        %1714 = vst.msk [vmem:[#allocation3 + $0x50] sm:$0xff] %vm844, %v1694
        %1715 = vst.msk [vmem:[#allocation3 + $0x68] sm:$0xff] %vm844, %v1696
        %1716 = vst.msk [vmem:[#allocation3 + $0x80] sm:$0xff] %vm844, %v1698
        %1717 = vst.msk [vmem:[#allocation3 + $0x98] sm:$0xff] %vm844, %v1700
        %1718 = vst.msk [vmem:[#allocation3 + $0xb0] sm:$0xff] %vm844, %v1702
        %v1719 = vld [vmem:[%s917 + $0x2] sm:$0xff]
        %v1720 = vld [vmem:[%s917 + $0x12] sm:$0xff]
        %v1721 = vld [vmem:[%s917 + $0x22] sm:$0xff]
        %v1722 = vld [vmem:[%s917 + $0x32] sm:$0xff]
        %v1723 = vld [vmem:[%s917 + $0x42] sm:$0xff]
        %v1724 = vld [vmem:[%s917 + $0x52] sm:$0xff]
        %v1725 = vld [vmem:[%s917 + $0x62] sm:$0xff]
        %v1726 = vld [vmem:[%s917 + $0x72] sm:$0xff]
        %1727 = vst.msk [vmem:[#allocation3 + $0x10] sm:$0xff] %vm627, %v1719
        %1728 = vst.msk [vmem:[#allocation3 + $0x28] sm:$0xff] %vm627, %v1720
        %1729 = vst.msk [vmem:[#allocation3 + $0x40] sm:$0xff] %vm627, %v1721
        %1730 = vst.msk [vmem:[#allocation3 + $0x58] sm:$0xff] %vm627, %v1722
        %1731 = vst.msk [vmem:[#allocation3 + $0x70] sm:$0xff] %vm627, %v1723
        %1732 = vst.msk [vmem:[#allocation3 + $0x88] sm:$0xff] %vm627, %v1724
        %1733 = vst.msk [vmem:[#allocation3 + $0xa0] sm:$0xff] %vm627, %v1725
        %1734 = vst.msk [vmem:[#allocation3 + $0xb8] sm:$0xff] %vm627, %v1726
        %v1735 = vld [vmem:[#allocation3] sm:$0xff]
        %v1736 = vld [vmem:[#allocation3 + $0x8] sm:$0xff]
        %v1737 = vld [vmem:[#allocation3 + $0x10] sm:$0xff]
        %v1738 = vld [vmem:[#allocation3 + $0x18] sm:$0xff]
        %v1739 = vld [vmem:[#allocation3 + $0x20] sm:$0xff]
        %v1740 = vld [vmem:[#allocation3 + $0x28] sm:$0xff]
        %v1741 = vld [vmem:[#allocation3 + $0x30] sm:$0xff]
        %v1742 = vld [vmem:[#allocation3 + $0x38] sm:$0xff]
        %v1743 = vld [vmem:[#allocation3 + $0x40] sm:$0xff]
        %v1744 = vld [vmem:[#allocation3 + $0x48] sm:$0xff]
        %v1745 = vld [vmem:[#allocation3 + $0x50] sm:$0xff]
        %v1746 = vld [vmem:[#allocation3 + $0x58] sm:$0xff]
        %v1747 = vld [vmem:[#allocation3 + $0x60] sm:$0xff]
        %v1748 = vld [vmem:[#allocation3 + $0x68] sm:$0xff]
        %v1749 = vld [vmem:[#allocation3 + $0x70] sm:$0xff]
        %v1750 = vld [vmem:[#allocation3 + $0x78] sm:$0xff]
        %v1751 = vld [vmem:[#allocation3 + $0x80] sm:$0xff]
        %v1752 = vld [vmem:[#allocation3 + $0x88] sm:$0xff]
        %v1753 = vld [vmem:[#allocation3 + $0x90] sm:$0xff]
        %v1754 = vld [vmem:[#allocation3 + $0x98] sm:$0xff]
        %v1755 = vld [vmem:[#allocation3 + $0xa0] sm:$0xff]
        %v1756 = vld [vmem:[#allocation3 + $0xa8] sm:$0xff]
        %v1757 = vld [vmem:[#allocation3 + $0xb0] sm:$0xff]
        %v1758 = vld [vmem:[#allocation3 + $0xb8] sm:$0xff]
        %v1759 = vpack.c.bf16 %v1738, %v1735
        %v1760 = vpack.c.bf16 %v1739, %v1736
        %v1761 = vpack.c.bf16 %v1740, %v1737
        %v1762 = vpack.c.bf16 %v1744, %v1741
        %v1763 = vpack.c.bf16 %v1745, %v1742
        %v1764 = vpack.c.bf16 %v1746, %v1743
        %v1765 = vpack.c.bf16 %v1750, %v1747
        %v1766 = vpack.c.bf16 %v1751, %v1748
        %v1767 = vpack.c.bf16 %v1752, %v1749
        %v1768 = vpack.c.bf16 %v1756, %v1753
        %v1769 = vpack.c.bf16 %v1757, %v1754
        %v1770 = vpack.c.bf16 %v1758, %v1755
        %v1771 = vld [vmem:[%s5] sm:$0xf]
        %v1772 = vld [vmem:[%s5 + $0x4] sm:$0xf]
        %v1773 = vld [vmem:[%s5 + $0x8] sm:$0xf]
        %v1774 = vld [vmem:[%s5 + $0xc] sm:$0xf]
        %v1775 = vld [vmem:[%s5 + $0x10] sm:$0xf]
        %v1776 = vld [vmem:[%s5 + $0x14] sm:$0xf]
        %v1777 = vld [vmem:[%s5 + $0x18] sm:$0xf]
        %v1778 = vld [vmem:[%s5 + $0x1c] sm:$0xf]
        %v1779 = vld [vmem:[%s5 + $0x20] sm:$0xf]
        %v1780 = vld [vmem:[%s5 + $0x24] sm:$0xf]
        %v1781 = vld [vmem:[%s5 + $0x28] sm:$0xf]
        %v1782 = vld [vmem:[%s5 + $0x2c] sm:$0xf]
        %v1783 = vld [vmem:[%s5 + $0x30] sm:$0xf]
        %v1784 = vld [vmem:[%s5 + $0x34] sm:$0xf]
        %v1785 = vld [vmem:[%s5 + $0x38] sm:$0xf]
        %v1786 = vld [vmem:[%s5 + $0x3c] sm:$0xf]
        %v1787 = vld [vmem:[%s5 + $0x40] sm:$0xf]
        %v1788 = vld [vmem:[%s5 + $0x44] sm:$0xf]
        %v1789 = vld [vmem:[%s5 + $0x48] sm:$0xf]
        %v1790 = vld [vmem:[%s5 + $0x4c] sm:$0xf]
        %v1791 = vld [vmem:[%s5 + $0x50] sm:$0xf]
        %v1792 = vld [vmem:[%s5 + $0x54] sm:$0xf]
        %v1793 = vld [vmem:[%s5 + $0x58] sm:$0xf]
        %v1794 = vld [vmem:[%s5 + $0x5c] sm:$0xf]
        %v1795 = vld [vmem:[%s5 + $0x60] sm:$0xf]
        %v1796 = vld [vmem:[%s5 + $0x64] sm:$0xf]
        %v1797 = vld [vmem:[%s5 + $0x68] sm:$0xf]
        %v1798 = vld [vmem:[%s5 + $0x6c] sm:$0xf]
        %v1799 = vld [vmem:[%s5 + $0x70] sm:$0xf]
        %v1800 = vld [vmem:[%s5 + $0x74] sm:$0xf]
        %v1801 = vld [vmem:[%s5 + $0x78] sm:$0xf]
        %v1802 = vld [vmem:[%s5 + $0x7c] sm:$0xf]
        %v1803 = vld [vmem:[%s5 + $0x80] sm:$0xf]
        %v1804 = vld [vmem:[%s5 + $0x84] sm:$0xf]
        %v1805 = vld [vmem:[%s5 + $0x88] sm:$0xf]
        %v1806 = vld [vmem:[%s5 + $0x8c] sm:$0xf]
        %v1807 = vld [vmem:[%s6] sm:$0x1]
        %v1809 = vlaneseq
        %v1810 = vshrl.u32 %v1809, 7
        %v1811 = vsub.s32 0, %v1810
        %v1812 = vrot.slane %v1807, %v1811
        %v1850 = vunpack.c.l.b16 %v1771
        %v1851 = vunpack.c.l.b16 %v1772
        %v1852 = vunpack.c.l.b16 %v1773
        %v1853 = vunpack.c.l.b16 %v1774
        %v1854 = vunpack.c.l.b16 %v1775
        %v1855 = vunpack.c.l.b16 %v1776
        %v1856 = vunpack.c.l.b16 %v1777
        %v1857 = vunpack.c.l.b16 %v1778
        %v1858 = vunpack.c.l.b16 %v1779
        %v1859 = vunpack.c.l.b16 %v1780
        %v1860 = vunpack.c.l.b16 %v1781
        %v1861 = vunpack.c.l.b16 %v1782
        %v1862 = vunpack.c.l.b16 %v1783
        %v1863 = vunpack.c.l.b16 %v1784
        %v1864 = vunpack.c.l.b16 %v1785
        %v1865 = vunpack.c.l.b16 %v1786
        %v1866 = vunpack.c.l.b16 %v1787
        %v1867 = vunpack.c.l.b16 %v1788
        %v1868 = vunpack.c.l.b16 %v1789
        %v1869 = vunpack.c.l.b16 %v1790
        %v1870 = vunpack.c.l.b16 %v1791
        %v1871 = vunpack.c.l.b16 %v1792
        %v1872 = vunpack.c.l.b16 %v1793
        %v1873 = vunpack.c.l.b16 %v1794
        %v1874 = vunpack.c.l.b16 %v1795
        %v1875 = vunpack.c.l.b16 %v1796
        %v1876 = vunpack.c.l.b16 %v1797
        %v1877 = vunpack.c.l.b16 %v1798
        %v1878 = vunpack.c.l.b16 %v1799
        %v1879 = vunpack.c.l.b16 %v1800
        %v1880 = vunpack.c.l.b16 %v1801
        %v1881 = vunpack.c.l.b16 %v1802
        %v1882 = vunpack.c.l.b16 %v1803
        %v1883 = vunpack.c.l.b16 %v1804
        %v1884 = vunpack.c.l.b16 %v1805
        %v1885 = vunpack.c.l.b16 %v1806
        %v1886 = vpack.c.b16 %v1851, %v1850
        %v1887 = vpack.c.b16 %v1853, %v1852
        %v1888 = vpack.c.b16 %v1855, %v1854
        %v1889 = vpack.c.b16 %v1857, %v1856
        %v1890 = vpack.c.b16 %v1859, %v1858
        %v1891 = vpack.c.b16 %v1861, %v1860
        %v1892 = vpack.c.b16 %v1863, %v1862
        %v1893 = vpack.c.b16 %v1865, %v1864
        %v1894 = vpack.c.b16 %v1867, %v1866
        %v1895 = vpack.c.b16 %v1869, %v1868
        %v1896 = vpack.c.b16 %v1871, %v1870
        %v1897 = vpack.c.b16 %v1873, %v1872
        %v1898 = vpack.c.b16 %v1875, %v1874
        %v1899 = vpack.c.b16 %v1877, %v1876
        %v1900 = vpack.c.b16 %v1879, %v1878
        %v1901 = vpack.c.b16 %v1881, %v1880
        %v1902 = vpack.c.b16 %v1883, %v1882
        %v1903 = vpack.c.b16 %v1885, %v1884
        %v1923 = vsel %vm627, %v1761, 0
        %v1926 = vsel %vm627, %v1764, 0
        %v1929 = vsel %vm627, %v1767, 0
        %v1932 = vsel %vm627, %v1770, 0
        %1934 = vmatprep.subr.bf16.mxu0 0
        %1935 = vmatpush1.bf16.msra.mxu0 %v1886
        %1936 = vmatprep.subr.bf16.mxu0 0
        %1937 = vmatpush1.bf16.msra.mxu0 %v1887
        %1938 = vmatprep.subr.bf16.mxu0 0
        %1939 = vmatpush1.bf16.msra.mxu0 %v1888
        %1940 = vmatprep.subr.bf16.mxu0 0
        %1941 = vmatpush1.bf16.msra.mxu0 %v1889
        %1942 = vmatprep.subr.bf16.mxu0 0
        %1943 = vmatpush1.bf16.msra.mxu0 %v1890
        %1944 = vmatprep.subr.bf16.mxu0 0
        %1945 = vmatpush1.bf16.msra.mxu0 %v1891
        %1946 = vmatprep.subr.bf16.mxu0 0
        %1947 = vmatpush1.bf16.msra.mxu0 %v1892
        %1948 = vmatprep.subr.bf16.mxu0 0
        %1949 = vmatpush1.bf16.msra.mxu0 %v1893
        %1950 = vmatprep.subr.bf16.mxu0 0
        %1951 = vmatpush1.bf16.msra.mxu0 %v1894
        %1952 = vmatprep.subr.bf16.mxu0 0
        %1953 = vmatpush1.bf16.msra.mxu0 %v1895
        %1954 = vmatprep.subr.bf16.mxu0 0
        %1955 = vmatpush1.bf16.msra.mxu0 %v1896
        %1956 = vmatprep.subr.bf16.mxu0 0
        %1957 = vmatpush1.bf16.msra.mxu0 %v1897
        %1958 = vmatprep.subr.bf16.mxu0 0
        %1959 = vmatpush1.bf16.msra.mxu0 %v1898
        %1960 = vmatprep.subr.bf16.mxu0 0
        %1961 = vmatpush1.bf16.msra.mxu0 %v1899
        %1962 = vmatprep.subr.bf16.mxu0 0
        %1963 = vmatpush1.bf16.msra.mxu0 %v1900
        %1964 = vmatprep.subr.bf16.mxu0 0
        %1965 = vmatpush1.bf16.msra.mxu0 %v1901
        %1966 = vmatprep.mubr.bf16.mxu0 %v1760
        %1967 = vmatmul.mubr.bf16.gmra.mrb[0].mxu0 %v1759
        %v1968 = vpop.f32.mrb[0].mxu0
        %v1969 = vadd.f32 %v1812, %v1968
        %v1970 = vpop.f32.mrb[0].mxu0
        %v1971 = vpop.f32.mrb[0].mxu0
        %v1972 = vadd.f32 %v1812, %v1971
        %v1973 = vpop.f32.mrb[0].mxu0
        %1974 = vmatprep.mubr.bf16.mxu0 %v1763
        %1975 = vmatmul.mubr.bf16.gmra.mrb[0].mxu0 %v1762
        %v1976 = vpop.f32.mrb[0].mxu0
        %v1977 = vadd.f32 %v1812, %v1976
        %v1978 = vpop.f32.mrb[0].mxu0
        %v1979 = vpop.f32.mrb[0].mxu0
        %v1980 = vadd.f32 %v1812, %v1979
        %v1981 = vpop.f32.mrb[0].mxu0
        %1982 = vmatprep.mubr.bf16.mxu0 %v1766
        %1983 = vmatmul.mubr.bf16.gmra.mrb[0].mxu0 %v1765
        %v1984 = vpop.f32.mrb[0].mxu0
        %v1985 = vadd.f32 %v1812, %v1984
        %v1986 = vpop.f32.mrb[0].mxu0
        %v1987 = vpop.f32.mrb[0].mxu0
        %v1988 = vadd.f32 %v1812, %v1987
        %v1989 = vpop.f32.mrb[0].mxu0
        %1990 = vmatprep.mubr.bf16.mxu0 %v1769
        %1991 = vmatmul.mubr.bf16.gmra.mrb[0].mxu0 %v1768
        %v1992 = vpop.f32.mrb[0].mxu0
        %v1993 = vadd.f32 %v1812, %v1992
        %v1994 = vpop.f32.mrb[0].mxu0
        %v1995 = vpop.f32.mrb[0].mxu0
        %v1996 = vadd.f32 %v1812, %v1995
        %v1997 = vpop.f32.mrb[0].mxu0
        %1998 = vdwg.mxu0
        %1999 = vmatprep.subr.bf16.mxu0 0
        %2000 = vmatpush1.bf16.msra.mxu0 %v1902
        %2001 = vmatprep.subr.bf16.mxu0 0
        %2002 = vmatpush1.bf16.msra.mxu0 %v1903
        %2003 = vmatprep.subr.bf16.mxu0 0
        %2004 = vmatpush1.bf16.msra.mxu0 0
        %2005 = vmatprep.subr.bf16.mxu0 0
        %2006 = vmatpush1.bf16.msra.mxu0 0
        %2007 = vmatprep.subr.bf16.mxu0 0
        %2008 = vmatpush1.bf16.msra.mxu0 0
        %2009 = vmatprep.subr.bf16.mxu0 0
        %2010 = vmatpush1.bf16.msra.mxu0 0
        %2011 = vmatprep.subr.bf16.mxu0 0
        %2012 = vmatpush1.bf16.msra.mxu0 0
        %2013 = vmatprep.subr.bf16.mxu0 0
        %2014 = vmatpush1.bf16.msra.mxu0 0
        %2015 = vmatprep.subr.bf16.mxu0 0
        %2016 = vmatpush1.bf16.msra.mxu0 0
        %2017 = vmatprep.subr.bf16.mxu0 0
        %2018 = vmatpush1.bf16.msra.mxu0 0
        %2019 = vmatprep.subr.bf16.mxu0 0
        %2020 = vmatpush1.bf16.msra.mxu0 0
        %2021 = vmatprep.subr.bf16.mxu0 0
        %2022 = vmatpush1.bf16.msra.mxu0 0
        %2023 = vmatprep.subr.bf16.mxu0 0
        %2024 = vmatpush1.bf16.msra.mxu0 0
        %2025 = vmatprep.subr.bf16.mxu0 0
        %2026 = vmatpush1.bf16.msra.mxu0 0
        %2027 = vmatprep.subr.bf16.mxu0 0
        %2028 = vmatpush1.bf16.msra.mxu0 0
        %2029 = vmatprep.subr.bf16.mxu0 0
        %2030 = vmatpush1.bf16.msra.mxu0 0
        %2031 = vmatprep.mubr.bf16.mxu0 0
        %2032 = vmatmul.mubr.bf16.gmra.mrb[0].mxu0 %v1923
        %v2033 = vpop.f32.mrb[0].mxu0
        %v2034 = vadd.f32 %v1969, %v2033
        %v2035 = vpop.f32.mrb[0].mxu0
        %v2036 = vpop.f32.mrb[0].mxu0
        %v2037 = vadd.f32 %v1972, %v2036
        %v2038 = vpop.f32.mrb[0].mxu0
        %2039 = vmatprep.mubr.bf16.mxu0 0
        %2040 = vmatmul.mubr.bf16.gmra.mrb[0].mxu0 %v1926
        %v2041 = vpop.f32.mrb[0].mxu0
        %v2042 = vadd.f32 %v1977, %v2041
        %v2043 = vpop.f32.mrb[0].mxu0
        %v2044 = vpop.f32.mrb[0].mxu0
        %v2045 = vadd.f32 %v1980, %v2044
        %v2046 = vpop.f32.mrb[0].mxu0
        %2047 = vmatprep.mubr.bf16.mxu0 0
        %2048 = vmatmul.mubr.bf16.gmra.mrb[0].mxu0 %v1929
        %v2049 = vpop.f32.mrb[0].mxu0
        %v2050 = vadd.f32 %v1985, %v2049
        %v2051 = vpop.f32.mrb[0].mxu0
        %v2052 = vpop.f32.mrb[0].mxu0
        %v2053 = vadd.f32 %v1988, %v2052
        %v2054 = vpop.f32.mrb[0].mxu0
        %2055 = vmatprep.mubr.bf16.mxu0 0
        %2056 = vmatmul.mubr.bf16.gmra.mrb[0].mxu0 %v1932
        %v2057 = vpop.f32.mrb[0].mxu0
        %v2058 = vadd.f32 %v1993, %v2057
        %v2059 = vpop.f32.mrb[0].mxu0
        %v2060 = vpop.f32.mrb[0].mxu0
        %v2061 = vadd.f32 %v1996, %v2060
        %v2062 = vpop.f32.mrb[0].mxu0
        %2063 = vdwg.mxu0
        %v2064 = vmax.f32 %v2034, 0.0
        %v2065 = vmax.f32 %v2037, 0.0
        %v2066 = vmax.f32 %v2042, 0.0
        %v2067 = vmax.f32 %v2045, 0.0
        %v2068 = vmax.f32 %v2050, 0.0
        %v2069 = vmax.f32 %v2053, 0.0
        %v2070 = vmax.f32 %v2058, 0.0
        %v2071 = vmax.f32 %v2061, 0.0
        %2072 = vst.msk [vmem:[%s681 + $0x1] sm:$0xff] %vm627, %v2064
        %2073 = vst.msk [vmem:[%s681 + $0x11] sm:$0xff] %vm627, %v2065
        %2074 = vst.msk [vmem:[%s681 + $0x21] sm:$0xff] %vm627, %v2066
        %2075 = vst.msk [vmem:[%s681 + $0x31] sm:$0xff] %vm627, %v2067
        %2076 = vst.msk [vmem:[%s681 + $0x41] sm:$0xff] %vm627, %v2068
        %2077 = vst.msk [vmem:[%s681 + $0x51] sm:$0xff] %vm627, %v2069
        %2078 = vst.msk [vmem:[%s681 + $0x61] sm:$0xff] %vm627, %v2070
        %2079 = vst.msk [vmem:[%s681 + $0x71] sm:$0xff] %vm627, %v2071
        %v2080 = vld [vmem:[#allocation2] sm:$0xff]
        %v2081 = vld [vmem:[#allocation2 + $0x10] sm:$0xff]
        %v2082 = vld [vmem:[#allocation2 + $0x20] sm:$0xff]
        %v2083 = vld [vmem:[#allocation2 + $0x30] sm:$0xff]
        %v2084 = vld [vmem:[#allocation2 + $0x40] sm:$0xff]
        %v2085 = vld [vmem:[#allocation2 + $0x50] sm:$0xff]
        %v2086 = vld [vmem:[#allocation2 + $0x60] sm:$0xff]
        %v2087 = vld [vmem:[#allocation2 + $0x70] sm:$0xff]
        %2088 = vst.msk [vmem:[#allocation3] sm:$0xff] %vm627, %v2080
        %2089 = vst.msk [vmem:[#allocation3 + $0x18] sm:$0xff] %vm627, %v2081
        %2090 = vst.msk [vmem:[#allocation3 + $0x30] sm:$0xff] %vm627, %v2082
        %2091 = vst.msk [vmem:[#allocation3 + $0x48] sm:$0xff] %vm627, %v2083
        %2092 = vst.msk [vmem:[#allocation3 + $0x60] sm:$0xff] %vm627, %v2084
        %2093 = vst.msk [vmem:[#allocation3 + $0x78] sm:$0xff] %vm627, %v2085
        %2094 = vst.msk [vmem:[#allocation3 + $0x90] sm:$0xff] %vm627, %v2086
        %2095 = vst.msk [vmem:[#allocation3 + $0xa8] sm:$0xff] %vm627, %v2087
        %v2096 = vld [vmem:[#allocation2 + $0x1] sm:$0xff]
        %v2097 = vld [vmem:[#allocation2 + $0x11] sm:$0xff]
        %v2098 = vld [vmem:[#allocation2 + $0x21] sm:$0xff]
        %v2099 = vld [vmem:[#allocation2 + $0x31] sm:$0xff]
        %v2100 = vld [vmem:[#allocation2 + $0x41] sm:$0xff]
        %v2101 = vld [vmem:[#allocation2 + $0x51] sm:$0xff]
        %v2102 = vld [vmem:[#allocation2 + $0x61] sm:$0xff]
        %v2103 = vld [vmem:[#allocation2 + $0x71] sm:$0xff]
        %2112 = vrot.lane.b32.xlu0 %v2096, 32
        %v2113 = vpop.permute.xlu0 %2112
        %2114 = vrot.lane.b32.xlu0 %v2097, 32
        %v2115 = vpop.permute.xlu0 %2114
        %2116 = vrot.lane.b32.xlu0 %v2098, 32
        %v2117 = vpop.permute.xlu0 %2116
        %2118 = vrot.lane.b32.xlu0 %v2099, 32
        %v2119 = vpop.permute.xlu0 %2118
        %2120 = vrot.lane.b32.xlu0 %v2100, 32
        %v2121 = vpop.permute.xlu0 %2120
        %2122 = vrot.lane.b32.xlu0 %v2101, 32
        %v2123 = vpop.permute.xlu0 %2122
        %2124 = vrot.lane.b32.xlu0 %v2102, 32
        %v2125 = vpop.permute.xlu0 %2124
        %2126 = vrot.lane.b32.xlu0 %v2103, 32
        %v2127 = vpop.permute.xlu0 %2126
        %2136 = vst.msk [vmem:[#allocation3] sm:$0xff] %vm746, %v2113
        %2137 = vst.msk [vmem:[#allocation3 + $0x18] sm:$0xff] %vm746, %v2115
        %2138 = vst.msk [vmem:[#allocation3 + $0x30] sm:$0xff] %vm746, %v2117
        %2139 = vst.msk [vmem:[#allocation3 + $0x48] sm:$0xff] %vm746, %v2119
        %2140 = vst.msk [vmem:[#allocation3 + $0x60] sm:$0xff] %vm746, %v2121
        %2141 = vst.msk [vmem:[#allocation3 + $0x78] sm:$0xff] %vm746, %v2123
        %2142 = vst.msk [vmem:[#allocation3 + $0x90] sm:$0xff] %vm746, %v2125
        %2143 = vst.msk [vmem:[#allocation3 + $0xa8] sm:$0xff] %vm746, %v2127
        %v2144 = vld [vmem:[#allocation2 + $0x2] sm:$0xff]
        %v2145 = vld [vmem:[#allocation2 + $0x12] sm:$0xff]
        %v2146 = vld [vmem:[#allocation2 + $0x22] sm:$0xff]
        %v2147 = vld [vmem:[#allocation2 + $0x32] sm:$0xff]
        %v2148 = vld [vmem:[#allocation2 + $0x42] sm:$0xff]
        %v2149 = vld [vmem:[#allocation2 + $0x52] sm:$0xff]
        %v2150 = vld [vmem:[#allocation2 + $0x62] sm:$0xff]
        %v2151 = vld [vmem:[#allocation2 + $0x72] sm:$0xff]
        %2160 = vrot.lane.b32.xlu0 %v2144, 64
        %v2161 = vpop.permute.xlu0 %2160
        %2162 = vrot.lane.b32.xlu0 %v2145, 64
        %v2163 = vpop.permute.xlu0 %2162
        %2164 = vrot.lane.b32.xlu0 %v2146, 64
        %v2165 = vpop.permute.xlu0 %2164
        %2166 = vrot.lane.b32.xlu0 %v2147, 64
        %v2167 = vpop.permute.xlu0 %2166
        %2168 = vrot.lane.b32.xlu0 %v2148, 64
        %v2169 = vpop.permute.xlu0 %2168
        %2170 = vrot.lane.b32.xlu0 %v2149, 64
        %v2171 = vpop.permute.xlu0 %2170
        %2172 = vrot.lane.b32.xlu0 %v2150, 64
        %v2173 = vpop.permute.xlu0 %2172
        %2174 = vrot.lane.b32.xlu0 %v2151, 64
        %v2175 = vpop.permute.xlu0 %2174
        %2184 = vst.msk [vmem:[#allocation3] sm:$0xff] %vm795, %v2161
        %2185 = vst.msk [vmem:[#allocation3 + $0x18] sm:$0xff] %vm795, %v2163
        %2186 = vst.msk [vmem:[#allocation3 + $0x30] sm:$0xff] %vm795, %v2165
        %2187 = vst.msk [vmem:[#allocation3 + $0x48] sm:$0xff] %vm795, %v2167
        %2188 = vst.msk [vmem:[#allocation3 + $0x60] sm:$0xff] %vm795, %v2169
        %2189 = vst.msk [vmem:[#allocation3 + $0x78] sm:$0xff] %vm795, %v2171
        %2190 = vst.msk [vmem:[#allocation3 + $0x90] sm:$0xff] %vm795, %v2173
        %2191 = vst.msk [vmem:[#allocation3 + $0xa8] sm:$0xff] %vm795, %v2175
        %v2192 = vld [vmem:[%s681] sm:$0xff]
        %v2193 = vld [vmem:[%s681 + $0x10] sm:$0xff]
        %v2194 = vld [vmem:[%s681 + $0x20] sm:$0xff]
        %v2195 = vld [vmem:[%s681 + $0x30] sm:$0xff]
        %v2196 = vld [vmem:[%s681 + $0x40] sm:$0xff]
        %v2197 = vld [vmem:[%s681 + $0x50] sm:$0xff]
        %v2198 = vld [vmem:[%s681 + $0x60] sm:$0xff]
        %v2199 = vld [vmem:[%s681 + $0x70] sm:$0xff]
        %2208 = vrot.lane.b32.xlu0 %v2192, 96
        %v2209 = vpop.permute.xlu0 %2208
        %2210 = vrot.lane.b32.xlu0 %v2193, 96
        %v2211 = vpop.permute.xlu0 %2210
        %2212 = vrot.lane.b32.xlu0 %v2194, 96
        %v2213 = vpop.permute.xlu0 %2212
        %2214 = vrot.lane.b32.xlu0 %v2195, 96
        %v2215 = vpop.permute.xlu0 %2214
        %2216 = vrot.lane.b32.xlu0 %v2196, 96
        %v2217 = vpop.permute.xlu0 %2216
        %2218 = vrot.lane.b32.xlu0 %v2197, 96
        %v2219 = vpop.permute.xlu0 %2218
        %2220 = vrot.lane.b32.xlu0 %v2198, 96
        %v2221 = vpop.permute.xlu0 %2220
        %2222 = vrot.lane.b32.xlu0 %v2199, 96
        %v2223 = vpop.permute.xlu0 %2222
        %2232 = vst.msk [vmem:[#allocation3] sm:$0xff] %vm844, %v2209
        %2233 = vst.msk [vmem:[#allocation3 + $0x18] sm:$0xff] %vm844, %v2211
        %2234 = vst.msk [vmem:[#allocation3 + $0x30] sm:$0xff] %vm844, %v2213
        %2235 = vst.msk [vmem:[#allocation3 + $0x48] sm:$0xff] %vm844, %v2215
        %2236 = vst.msk [vmem:[#allocation3 + $0x60] sm:$0xff] %vm844, %v2217
        %2237 = vst.msk [vmem:[#allocation3 + $0x78] sm:$0xff] %vm844, %v2219
        %2238 = vst.msk [vmem:[#allocation3 + $0x90] sm:$0xff] %vm844, %v2221
        %2239 = vst.msk [vmem:[#allocation3 + $0xa8] sm:$0xff] %vm844, %v2223
        %v2240 = vld [vmem:[%s681 + $0x1] sm:$0xff]
        %v2241 = vld [vmem:[%s681 + $0x11] sm:$0xff]
        %v2242 = vld [vmem:[%s681 + $0x21] sm:$0xff]
        %v2243 = vld [vmem:[%s681 + $0x31] sm:$0xff]
        %v2244 = vld [vmem:[%s681 + $0x41] sm:$0xff]
        %v2245 = vld [vmem:[%s681 + $0x51] sm:$0xff]
        %v2246 = vld [vmem:[%s681 + $0x61] sm:$0xff]
        %v2247 = vld [vmem:[%s681 + $0x71] sm:$0xff]
        %2248 = vst.msk [vmem:[#allocation3 + $0x8] sm:$0xff] %vm627, %v2240
        %2249 = vst.msk [vmem:[#allocation3 + $0x20] sm:$0xff] %vm627, %v2241
        %2250 = vst.msk [vmem:[#allocation3 + $0x38] sm:$0xff] %vm627, %v2242
        %2251 = vst.msk [vmem:[#allocation3 + $0x50] sm:$0xff] %vm627, %v2243
        %2252 = vst.msk [vmem:[#allocation3 + $0x68] sm:$0xff] %vm627, %v2244
        %2253 = vst.msk [vmem:[#allocation3 + $0x80] sm:$0xff] %vm627, %v2245
        %2254 = vst.msk [vmem:[#allocation3 + $0x98] sm:$0xff] %vm627, %v2246
        %2255 = vst.msk [vmem:[#allocation3 + $0xb0] sm:$0xff] %vm627, %v2247
        %v2256 = vld [vmem:[%s681 + $0x2] sm:$0xff]
        %v2257 = vld [vmem:[%s681 + $0x12] sm:$0xff]
        %v2258 = vld [vmem:[%s681 + $0x22] sm:$0xff]
        %v2259 = vld [vmem:[%s681 + $0x32] sm:$0xff]
        %v2260 = vld [vmem:[%s681 + $0x42] sm:$0xff]
        %v2261 = vld [vmem:[%s681 + $0x52] sm:$0xff]
        %v2262 = vld [vmem:[%s681 + $0x62] sm:$0xff]
        %v2263 = vld [vmem:[%s681 + $0x72] sm:$0xff]
        %2272 = vrot.lane.b32.xlu0 %v2256, 32
        %v2273 = vpop.permute.xlu0 %2272
        %2274 = vrot.lane.b32.xlu0 %v2257, 32
        %v2275 = vpop.permute.xlu0 %2274
        %2276 = vrot.lane.b32.xlu0 %v2258, 32
        %v2277 = vpop.permute.xlu0 %2276
        %2278 = vrot.lane.b32.xlu0 %v2259, 32
        %v2279 = vpop.permute.xlu0 %2278
        %2280 = vrot.lane.b32.xlu0 %v2260, 32
        %v2281 = vpop.permute.xlu0 %2280
        %2282 = vrot.lane.b32.xlu0 %v2261, 32
        %v2283 = vpop.permute.xlu0 %2282
        %2284 = vrot.lane.b32.xlu0 %v2262, 32
        %v2285 = vpop.permute.xlu0 %2284
        %2286 = vrot.lane.b32.xlu0 %v2263, 32
        %v2287 = vpop.permute.xlu0 %2286
        %2296 = vst.msk [vmem:[#allocation3 + $0x8] sm:$0xff] %vm746, %v2273
        %2297 = vst.msk [vmem:[#allocation3 + $0x20] sm:$0xff] %vm746, %v2275
        %2298 = vst.msk [vmem:[#allocation3 + $0x38] sm:$0xff] %vm746, %v2277
        %2299 = vst.msk [vmem:[#allocation3 + $0x50] sm:$0xff] %vm746, %v2279
        %2300 = vst.msk [vmem:[#allocation3 + $0x68] sm:$0xff] %vm746, %v2281
        %2301 = vst.msk [vmem:[#allocation3 + $0x80] sm:$0xff] %vm746, %v2283
        %2302 = vst.msk [vmem:[#allocation3 + $0x98] sm:$0xff] %vm746, %v2285
        %2303 = vst.msk [vmem:[#allocation3 + $0xb0] sm:$0xff] %vm746, %v2287
        %v2304 = vld [vmem:[%s917] sm:$0xff]
        %v2305 = vld [vmem:[%s917 + $0x10] sm:$0xff]
        %v2306 = vld [vmem:[%s917 + $0x20] sm:$0xff]
        %v2307 = vld [vmem:[%s917 + $0x30] sm:$0xff]
        %v2308 = vld [vmem:[%s917 + $0x40] sm:$0xff]
        %v2309 = vld [vmem:[%s917 + $0x50] sm:$0xff]
        %v2310 = vld [vmem:[%s917 + $0x60] sm:$0xff]
        %v2311 = vld [vmem:[%s917 + $0x70] sm:$0xff]
        %2320 = vrot.lane.b32.xlu0 %v2304, 64
        %v2321 = vpop.permute.xlu0 %2320
        %2322 = vrot.lane.b32.xlu0 %v2305, 64
        %v2323 = vpop.permute.xlu0 %2322
        %2324 = vrot.lane.b32.xlu0 %v2306, 64
        %v2325 = vpop.permute.xlu0 %2324
        %2326 = vrot.lane.b32.xlu0 %v2307, 64
        %v2327 = vpop.permute.xlu0 %2326
        %2328 = vrot.lane.b32.xlu0 %v2308, 64
        %v2329 = vpop.permute.xlu0 %2328
        %2330 = vrot.lane.b32.xlu0 %v2309, 64
        %v2331 = vpop.permute.xlu0 %2330
        %2332 = vrot.lane.b32.xlu0 %v2310, 64
        %v2333 = vpop.permute.xlu0 %2332
        %2334 = vrot.lane.b32.xlu0 %v2311, 64
        %v2335 = vpop.permute.xlu0 %2334
        %2344 = vst.msk [vmem:[#allocation3 + $0x8] sm:$0xff] %vm795, %v2321
        %2345 = vst.msk [vmem:[#allocation3 + $0x20] sm:$0xff] %vm795, %v2323
        %2346 = vst.msk [vmem:[#allocation3 + $0x38] sm:$0xff] %vm795, %v2325
        %2347 = vst.msk [vmem:[#allocation3 + $0x50] sm:$0xff] %vm795, %v2327
        %2348 = vst.msk [vmem:[#allocation3 + $0x68] sm:$0xff] %vm795, %v2329
        %2349 = vst.msk [vmem:[#allocation3 + $0x80] sm:$0xff] %vm795, %v2331
        %2350 = vst.msk [vmem:[#allocation3 + $0x98] sm:$0xff] %vm795, %v2333
        %2351 = vst.msk [vmem:[#allocation3 + $0xb0] sm:$0xff] %vm795, %v2335
        %v2352 = vld [vmem:[%s917 + $0x1] sm:$0xff]
        %v2353 = vld [vmem:[%s917 + $0x11] sm:$0xff]
        %v2354 = vld [vmem:[%s917 + $0x21] sm:$0xff]
        %v2355 = vld [vmem:[%s917 + $0x31] sm:$0xff]
        %v2356 = vld [vmem:[%s917 + $0x41] sm:$0xff]
        %v2357 = vld [vmem:[%s917 + $0x51] sm:$0xff]
        %v2358 = vld [vmem:[%s917 + $0x61] sm:$0xff]
        %v2359 = vld [vmem:[%s917 + $0x71] sm:$0xff]
        %2368 = vrot.lane.b32.xlu0 %v2352, 96
        %v2369 = vpop.permute.xlu0 %2368
        %2370 = vrot.lane.b32.xlu0 %v2353, 96
        %v2371 = vpop.permute.xlu0 %2370
        %2372 = vrot.lane.b32.xlu0 %v2354, 96
        %v2373 = vpop.permute.xlu0 %2372
        %2374 = vrot.lane.b32.xlu0 %v2355, 96
        %v2375 = vpop.permute.xlu0 %2374
        %2376 = vrot.lane.b32.xlu0 %v2356, 96
        %v2377 = vpop.permute.xlu0 %2376
        %2378 = vrot.lane.b32.xlu0 %v2357, 96
        %v2379 = vpop.permute.xlu0 %2378
        %2380 = vrot.lane.b32.xlu0 %v2358, 96
        %v2381 = vpop.permute.xlu0 %2380
        %2382 = vrot.lane.b32.xlu0 %v2359, 96
        %v2383 = vpop.permute.xlu0 %2382
        %2392 = vst.msk [vmem:[#allocation3 + $0x8] sm:$0xff] %vm844, %v2369
        %2393 = vst.msk [vmem:[#allocation3 + $0x20] sm:$0xff] %vm844, %v2371
        %2394 = vst.msk [vmem:[#allocation3 + $0x38] sm:$0xff] %vm844, %v2373
        %2395 = vst.msk [vmem:[#allocation3 + $0x50] sm:$0xff] %vm844, %v2375
        %2396 = vst.msk [vmem:[#allocation3 + $0x68] sm:$0xff] %vm844, %v2377
        %2397 = vst.msk [vmem:[#allocation3 + $0x80] sm:$0xff] %vm844, %v2379
        %2398 = vst.msk [vmem:[#allocation3 + $0x98] sm:$0xff] %vm844, %v2381
        %2399 = vst.msk [vmem:[#allocation3 + $0xb0] sm:$0xff] %vm844, %v2383
        %v2400 = vld [vmem:[%s917 + $0x2] sm:$0xff]
        %v2401 = vld [vmem:[%s917 + $0x12] sm:$0xff]
        %v2402 = vld [vmem:[%s917 + $0x22] sm:$0xff]
        %v2403 = vld [vmem:[%s917 + $0x32] sm:$0xff]
        %v2404 = vld [vmem:[%s917 + $0x42] sm:$0xff]
        %v2405 = vld [vmem:[%s917 + $0x52] sm:$0xff]
        %v2406 = vld [vmem:[%s917 + $0x62] sm:$0xff]
        %v2407 = vld [vmem:[%s917 + $0x72] sm:$0xff]
        %2408 = vst.msk [vmem:[#allocation3 + $0x10] sm:$0xff] %vm627, %v2400
        %2409 = vst.msk [vmem:[#allocation3 + $0x28] sm:$0xff] %vm627, %v2401
        %2410 = vst.msk [vmem:[#allocation3 + $0x40] sm:$0xff] %vm627, %v2402
        %2411 = vst.msk [vmem:[#allocation3 + $0x58] sm:$0xff] %vm627, %v2403
        %2412 = vst.msk [vmem:[#allocation3 + $0x70] sm:$0xff] %vm627, %v2404
        %2413 = vst.msk [vmem:[#allocation3 + $0x88] sm:$0xff] %vm627, %v2405
        %2414 = vst.msk [vmem:[#allocation3 + $0xa0] sm:$0xff] %vm627, %v2406
        %2415 = vst.msk [vmem:[#allocation3 + $0xb8] sm:$0xff] %vm627, %v2407
        %v2416 = vld [vmem:[#allocation3] sm:$0xff]
        %v2417 = vld [vmem:[#allocation3 + $0x8] sm:$0xff]
        %v2418 = vld [vmem:[#allocation3 + $0x10] sm:$0xff]
        %v2419 = vld [vmem:[#allocation3 + $0x18] sm:$0xff]
        %v2420 = vld [vmem:[#allocation3 + $0x20] sm:$0xff]
        %v2421 = vld [vmem:[#allocation3 + $0x28] sm:$0xff]
        %v2422 = vld [vmem:[#allocation3 + $0x30] sm:$0xff]
        %v2423 = vld [vmem:[#allocation3 + $0x38] sm:$0xff]
        %v2424 = vld [vmem:[#allocation3 + $0x40] sm:$0xff]
        %v2425 = vld [vmem:[#allocation3 + $0x48] sm:$0xff]
        %v2426 = vld [vmem:[#allocation3 + $0x50] sm:$0xff]
        %v2427 = vld [vmem:[#allocation3 + $0x58] sm:$0xff]
        %v2428 = vld [vmem:[#allocation3 + $0x60] sm:$0xff]
        %v2429 = vld [vmem:[#allocation3 + $0x68] sm:$0xff]
        %v2430 = vld [vmem:[#allocation3 + $0x70] sm:$0xff]
        %v2431 = vld [vmem:[#allocation3 + $0x78] sm:$0xff]
        %v2432 = vld [vmem:[#allocation3 + $0x80] sm:$0xff]
        %v2433 = vld [vmem:[#allocation3 + $0x88] sm:$0xff]
        %v2434 = vld [vmem:[#allocation3 + $0x90] sm:$0xff]
        %v2435 = vld [vmem:[#allocation3 + $0x98] sm:$0xff]
        %v2436 = vld [vmem:[#allocation3 + $0xa0] sm:$0xff]
        %v2437 = vld [vmem:[#allocation3 + $0xa8] sm:$0xff]
        %v2438 = vld [vmem:[#allocation3 + $0xb0] sm:$0xff]
        %v2439 = vld [vmem:[#allocation3 + $0xb8] sm:$0xff]
        %v2440 = vpack.c.bf16 %v2419, %v2416
        %v2441 = vpack.c.bf16 %v2420, %v2417
        %v2442 = vpack.c.bf16 %v2421, %v2418
        %v2443 = vpack.c.bf16 %v2425, %v2422
        %v2444 = vpack.c.bf16 %v2426, %v2423
        %v2445 = vpack.c.bf16 %v2427, %v2424
        %v2446 = vpack.c.bf16 %v2431, %v2428
        %v2447 = vpack.c.bf16 %v2432, %v2429
        %v2448 = vpack.c.bf16 %v2433, %v2430
        %v2449 = vpack.c.bf16 %v2437, %v2434
        %v2450 = vpack.c.bf16 %v2438, %v2435
        %v2451 = vpack.c.bf16 %v2439, %v2436
        %v2452 = vld [vmem:[%s7] sm:$0xf]
        %v2453 = vld [vmem:[%s7 + $0x4] sm:$0xf]
        %v2454 = vld [vmem:[%s7 + $0x8] sm:$0xf]
        %v2455 = vld [vmem:[%s7 + $0xc] sm:$0xf]
        %v2456 = vld [vmem:[%s7 + $0x10] sm:$0xf]
        %v2457 = vld [vmem:[%s7 + $0x14] sm:$0xf]
        %v2458 = vld [vmem:[%s7 + $0x18] sm:$0xf]
        %v2459 = vld [vmem:[%s7 + $0x1c] sm:$0xf]
        %v2460 = vld [vmem:[%s7 + $0x20] sm:$0xf]
        %v2461 = vld [vmem:[%s7 + $0x24] sm:$0xf]
        %v2462 = vld [vmem:[%s7 + $0x28] sm:$0xf]
        %v2463 = vld [vmem:[%s7 + $0x2c] sm:$0xf]
        %v2464 = vld [vmem:[%s7 + $0x30] sm:$0xf]
        %v2465 = vld [vmem:[%s7 + $0x34] sm:$0xf]
        %v2466 = vld [vmem:[%s7 + $0x38] sm:$0xf]
        %v2467 = vld [vmem:[%s7 + $0x3c] sm:$0xf]
        %v2468 = vld [vmem:[%s7 + $0x40] sm:$0xf]
        %v2469 = vld [vmem:[%s7 + $0x44] sm:$0xf]
        %v2470 = vld [vmem:[%s7 + $0x48] sm:$0xf]
        %v2471 = vld [vmem:[%s7 + $0x4c] sm:$0xf]
        %v2472 = vld [vmem:[%s7 + $0x50] sm:$0xf]
        %v2473 = vld [vmem:[%s7 + $0x54] sm:$0xf]
        %v2474 = vld [vmem:[%s7 + $0x58] sm:$0xf]
        %v2475 = vld [vmem:[%s7 + $0x5c] sm:$0xf]
        %v2476 = vld [vmem:[%s7 + $0x60] sm:$0xf]
        %v2477 = vld [vmem:[%s7 + $0x64] sm:$0xf]
        %v2478 = vld [vmem:[%s7 + $0x68] sm:$0xf]
        %v2479 = vld [vmem:[%s7 + $0x6c] sm:$0xf]
        %v2480 = vld [vmem:[%s7 + $0x70] sm:$0xf]
        %v2481 = vld [vmem:[%s7 + $0x74] sm:$0xf]
        %v2482 = vld [vmem:[%s7 + $0x78] sm:$0xf]
        %v2483 = vld [vmem:[%s7 + $0x7c] sm:$0xf]
        %v2484 = vld [vmem:[%s7 + $0x80] sm:$0xf]
        %v2485 = vld [vmem:[%s7 + $0x84] sm:$0xf]
        %v2486 = vld [vmem:[%s7 + $0x88] sm:$0xf]
        %v2487 = vld [vmem:[%s7 + $0x8c] sm:$0xf]
        %v2488 = vld [vmem:[%s8] sm:$0x1]
        %v2490 = vlaneseq
        %v2491 = vshrl.u32 %v2490, 7
        %v2492 = vsub.s32 0, %v2491
        %v2493 = vrot.slane %v2488, %v2492
        %v2531 = vunpack.c.l.b16 %v2452
        %v2532 = vunpack.c.l.b16 %v2453
        %v2533 = vunpack.c.l.b16 %v2454
        %v2534 = vunpack.c.l.b16 %v2455
        %v2535 = vunpack.c.l.b16 %v2456
        %v2536 = vunpack.c.l.b16 %v2457
        %v2537 = vunpack.c.l.b16 %v2458
        %v2538 = vunpack.c.l.b16 %v2459
        %v2539 = vunpack.c.l.b16 %v2460
        %v2540 = vunpack.c.l.b16 %v2461
        %v2541 = vunpack.c.l.b16 %v2462
        %v2542 = vunpack.c.l.b16 %v2463
        %v2543 = vunpack.c.l.b16 %v2464
        %v2544 = vunpack.c.l.b16 %v2465
        %v2545 = vunpack.c.l.b16 %v2466
        %v2546 = vunpack.c.l.b16 %v2467
        %v2547 = vunpack.c.l.b16 %v2468
        %v2548 = vunpack.c.l.b16 %v2469
        %v2549 = vunpack.c.l.b16 %v2470
        %v2550 = vunpack.c.l.b16 %v2471
        %v2551 = vunpack.c.l.b16 %v2472
        %v2552 = vunpack.c.l.b16 %v2473
        %v2553 = vunpack.c.l.b16 %v2474
        %v2554 = vunpack.c.l.b16 %v2475
        %v2555 = vunpack.c.l.b16 %v2476
        %v2556 = vunpack.c.l.b16 %v2477
        %v2557 = vunpack.c.l.b16 %v2478
        %v2558 = vunpack.c.l.b16 %v2479
        %v2559 = vunpack.c.l.b16 %v2480
        %v2560 = vunpack.c.l.b16 %v2481
        %v2561 = vunpack.c.l.b16 %v2482
        %v2562 = vunpack.c.l.b16 %v2483
        %v2563 = vunpack.c.l.b16 %v2484
        %v2564 = vunpack.c.l.b16 %v2485
        %v2565 = vunpack.c.l.b16 %v2486
        %v2566 = vunpack.c.l.b16 %v2487
        %v2567 = vpack.c.b16 %v2532, %v2531
        %v2568 = vpack.c.b16 %v2534, %v2533
        %v2569 = vpack.c.b16 %v2536, %v2535
        %v2570 = vpack.c.b16 %v2538, %v2537
        %v2571 = vpack.c.b16 %v2540, %v2539
        %v2572 = vpack.c.b16 %v2542, %v2541
        %v2573 = vpack.c.b16 %v2544, %v2543
        %v2574 = vpack.c.b16 %v2546, %v2545
        %v2575 = vpack.c.b16 %v2548, %v2547
        %v2576 = vpack.c.b16 %v2550, %v2549
        %v2577 = vpack.c.b16 %v2552, %v2551
        %v2578 = vpack.c.b16 %v2554, %v2553
        %v2579 = vpack.c.b16 %v2556, %v2555
        %v2580 = vpack.c.b16 %v2558, %v2557
        %v2581 = vpack.c.b16 %v2560, %v2559
        %v2582 = vpack.c.b16 %v2562, %v2561
        %v2583 = vpack.c.b16 %v2564, %v2563
        %v2584 = vpack.c.b16 %v2566, %v2565
        %v2604 = vsel %vm627, %v2442, 0
        %v2607 = vsel %vm627, %v2445, 0
        %v2610 = vsel %vm627, %v2448, 0
        %v2613 = vsel %vm627, %v2451, 0
        %2615 = vmatprep.subr.bf16.mxu0 0
        %2616 = vmatpush1.bf16.msra.mxu0 %v2567
        %2617 = vmatprep.subr.bf16.mxu0 0
        %2618 = vmatpush1.bf16.msra.mxu0 %v2568
        %2619 = vmatprep.subr.bf16.mxu0 0
        %2620 = vmatpush1.bf16.msra.mxu0 %v2569
        %2621 = vmatprep.subr.bf16.mxu0 0
        %2622 = vmatpush1.bf16.msra.mxu0 %v2570
        %2623 = vmatprep.subr.bf16.mxu0 0
        %2624 = vmatpush1.bf16.msra.mxu0 %v2571
        %2625 = vmatprep.subr.bf16.mxu0 0
        %2626 = vmatpush1.bf16.msra.mxu0 %v2572
        %2627 = vmatprep.subr.bf16.mxu0 0
        %2628 = vmatpush1.bf16.msra.mxu0 %v2573
        %2629 = vmatprep.subr.bf16.mxu0 0
        %2630 = vmatpush1.bf16.msra.mxu0 %v2574
        %2631 = vmatprep.subr.bf16.mxu0 0
        %2632 = vmatpush1.bf16.msra.mxu0 %v2575
        %2633 = vmatprep.subr.bf16.mxu0 0
        %2634 = vmatpush1.bf16.msra.mxu0 %v2576
        %2635 = vmatprep.subr.bf16.mxu0 0
        %2636 = vmatpush1.bf16.msra.mxu0 %v2577
        %2637 = vmatprep.subr.bf16.mxu0 0
        %2638 = vmatpush1.bf16.msra.mxu0 %v2578
        %2639 = vmatprep.subr.bf16.mxu0 0
        %2640 = vmatpush1.bf16.msra.mxu0 %v2579
        %2641 = vmatprep.subr.bf16.mxu0 0
        %2642 = vmatpush1.bf16.msra.mxu0 %v2580
        %2643 = vmatprep.subr.bf16.mxu0 0
        %2644 = vmatpush1.bf16.msra.mxu0 %v2581
        %2645 = vmatprep.subr.bf16.mxu0 0
        %2646 = vmatpush1.bf16.msra.mxu0 %v2582
        %2647 = vmatprep.mubr.bf16.mxu0 %v2441
        %2648 = vmatmul.mubr.bf16.gmra.mrb[0].mxu0 %v2440
        %v2649 = vpop.f32.mrb[0].mxu0
        %v2650 = vadd.f32 %v2493, %v2649
        %v2651 = vpop.f32.mrb[0].mxu0
        %v2652 = vpop.f32.mrb[0].mxu0
        %v2653 = vadd.f32 %v2493, %v2652
        %v2654 = vpop.f32.mrb[0].mxu0
        %2655 = vmatprep.mubr.bf16.mxu0 %v2444
        %2656 = vmatmul.mubr.bf16.gmra.mrb[0].mxu0 %v2443
        %v2657 = vpop.f32.mrb[0].mxu0
        %v2658 = vadd.f32 %v2493, %v2657
        %v2659 = vpop.f32.mrb[0].mxu0
        %v2660 = vpop.f32.mrb[0].mxu0
        %v2661 = vadd.f32 %v2493, %v2660
        %v2662 = vpop.f32.mrb[0].mxu0
        %2663 = vmatprep.mubr.bf16.mxu0 %v2447
        %2664 = vmatmul.mubr.bf16.gmra.mrb[0].mxu0 %v2446
        %v2665 = vpop.f32.mrb[0].mxu0
        %v2666 = vadd.f32 %v2493, %v2665
        %v2667 = vpop.f32.mrb[0].mxu0
        %v2668 = vpop.f32.mrb[0].mxu0
        %v2669 = vadd.f32 %v2493, %v2668
        %v2670 = vpop.f32.mrb[0].mxu0
        %2671 = vmatprep.mubr.bf16.mxu0 %v2450
        %2672 = vmatmul.mubr.bf16.gmra.mrb[0].mxu0 %v2449
        %v2673 = vpop.f32.mrb[0].mxu0
        %v2674 = vadd.f32 %v2493, %v2673
        %v2675 = vpop.f32.mrb[0].mxu0
        %v2676 = vpop.f32.mrb[0].mxu0
        %v2677 = vadd.f32 %v2493, %v2676
        %v2678 = vpop.f32.mrb[0].mxu0
        %2679 = vdwg.mxu0
        %2680 = vmatprep.subr.bf16.mxu0 0
        %2681 = vmatpush1.bf16.msra.mxu0 %v2583
        %2682 = vmatprep.subr.bf16.mxu0 0
        %2683 = vmatpush1.bf16.msra.mxu0 %v2584
        %2684 = vmatprep.subr.bf16.mxu0 0
        %2685 = vmatpush1.bf16.msra.mxu0 0
        %2686 = vmatprep.subr.bf16.mxu0 0
        %2687 = vmatpush1.bf16.msra.mxu0 0
        %2688 = vmatprep.subr.bf16.mxu0 0
        %2689 = vmatpush1.bf16.msra.mxu0 0
        %2690 = vmatprep.subr.bf16.mxu0 0
        %2691 = vmatpush1.bf16.msra.mxu0 0
        %2692 = vmatprep.subr.bf16.mxu0 0
        %2693 = vmatpush1.bf16.msra.mxu0 0
        %2694 = vmatprep.subr.bf16.mxu0 0
        %2695 = vmatpush1.bf16.msra.mxu0 0
        %2696 = vmatprep.subr.bf16.mxu0 0
        %2697 = vmatpush1.bf16.msra.mxu0 0
        %2698 = vmatprep.subr.bf16.mxu0 0
        %2699 = vmatpush1.bf16.msra.mxu0 0
        %2700 = vmatprep.subr.bf16.mxu0 0
        %2701 = vmatpush1.bf16.msra.mxu0 0
        %2702 = vmatprep.subr.bf16.mxu0 0
        %2703 = vmatpush1.bf16.msra.mxu0 0
        %2704 = vmatprep.subr.bf16.mxu0 0
        %2705 = vmatpush1.bf16.msra.mxu0 0
        %2706 = vmatprep.subr.bf16.mxu0 0
        %2707 = vmatpush1.bf16.msra.mxu0 0
        %2708 = vmatprep.subr.bf16.mxu0 0
        %2709 = vmatpush1.bf16.msra.mxu0 0
        %2710 = vmatprep.subr.bf16.mxu0 0
        %2711 = vmatpush1.bf16.msra.mxu0 0
        %2712 = vmatprep.mubr.bf16.mxu0 0
        %2713 = vmatmul.mubr.bf16.gmra.mrb[0].mxu0 %v2604
        %v2714 = vpop.f32.mrb[0].mxu0
        %v2715 = vadd.f32 %v2650, %v2714
        %v2716 = vpop.f32.mrb[0].mxu0
        %v2717 = vpop.f32.mrb[0].mxu0
        %v2718 = vadd.f32 %v2653, %v2717
        %v2719 = vpop.f32.mrb[0].mxu0
        %2720 = vmatprep.mubr.bf16.mxu0 0
        %2721 = vmatmul.mubr.bf16.gmra.mrb[0].mxu0 %v2607
        %v2722 = vpop.f32.mrb[0].mxu0
        %v2723 = vadd.f32 %v2658, %v2722
        %v2724 = vpop.f32.mrb[0].mxu0
        %v2725 = vpop.f32.mrb[0].mxu0
        %v2726 = vadd.f32 %v2661, %v2725
        %v2727 = vpop.f32.mrb[0].mxu0
        %2728 = vmatprep.mubr.bf16.mxu0 0
        %2729 = vmatmul.mubr.bf16.gmra.mrb[0].mxu0 %v2610
        %v2730 = vpop.f32.mrb[0].mxu0
        %v2731 = vadd.f32 %v2666, %v2730
        %v2732 = vpop.f32.mrb[0].mxu0
        %v2733 = vpop.f32.mrb[0].mxu0
        %v2734 = vadd.f32 %v2669, %v2733
        %v2735 = vpop.f32.mrb[0].mxu0
        %2736 = vmatprep.mubr.bf16.mxu0 0
        %2737 = vmatmul.mubr.bf16.gmra.mrb[0].mxu0 %v2613
        %v2738 = vpop.f32.mrb[0].mxu0
        %v2739 = vadd.f32 %v2674, %v2738
        %v2740 = vpop.f32.mrb[0].mxu0
        %v2741 = vpop.f32.mrb[0].mxu0
        %v2742 = vadd.f32 %v2677, %v2741
        %v2743 = vpop.f32.mrb[0].mxu0
        %2744 = vdwg.mxu0
        %v2745 = vmax.f32 %v2715, 0.0
        %v2746 = vmax.f32 %v2718, 0.0
        %v2747 = vmax.f32 %v2723, 0.0
        %v2748 = vmax.f32 %v2726, 0.0
        %v2749 = vmax.f32 %v2731, 0.0
        %v2750 = vmax.f32 %v2734, 0.0
        %v2751 = vmax.f32 %v2739, 0.0
        %v2752 = vmax.f32 %v2742, 0.0
        %2761 = vrot.lane.b32.xlu0 %v1359, 32
        %v2762 = vpop.permute.xlu0 %2761
        %2763 = vrot.lane.b32.xlu0 %v1360, 32
        %v2764 = vpop.permute.xlu0 %2763
        %2765 = vrot.lane.b32.xlu0 %v1361, 32
        %v2766 = vpop.permute.xlu0 %2765
        %2767 = vrot.lane.b32.xlu0 %v1362, 32
        %v2768 = vpop.permute.xlu0 %2767
        %2769 = vrot.lane.b32.xlu0 %v1363, 32
        %v2770 = vpop.permute.xlu0 %2769
        %2771 = vrot.lane.b32.xlu0 %v1364, 32
        %v2772 = vpop.permute.xlu0 %2771
        %2773 = vrot.lane.b32.xlu0 %v1365, 32
        %v2774 = vpop.permute.xlu0 %2773
        %2775 = vrot.lane.b32.xlu0 %v1366, 32
        %v2776 = vpop.permute.xlu0 %2775
        %2785 = vst.msk [vmem:[#allocation4] sm:$0xff] %vm746, %v2762
        %2786 = vst.msk [vmem:[#allocation4 + $0x8] sm:$0xff] %vm746, %v2764
        %2787 = vst.msk [vmem:[#allocation4 + $0x10] sm:$0xff] %vm746, %v2766
        %2788 = vst.msk [vmem:[#allocation4 + $0x18] sm:$0xff] %vm746, %v2768
        %2789 = vst.msk [vmem:[#allocation4 + $0x20] sm:$0xff] %vm746, %v2770
        %2790 = vst.msk [vmem:[#allocation4 + $0x28] sm:$0xff] %vm746, %v2772
        %2791 = vst.msk [vmem:[#allocation4 + $0x30] sm:$0xff] %vm746, %v2774
        %2792 = vst.msk [vmem:[#allocation4 + $0x38] sm:$0xff] %vm746, %v2776
        %2801 = vrot.lane.b32.xlu0 %v2745, 64
        %v2802 = vpop.permute.xlu0 %2801
        %2803 = vrot.lane.b32.xlu0 %v2746, 64
        %v2804 = vpop.permute.xlu0 %2803
        %2805 = vrot.lane.b32.xlu0 %v2747, 64
        %v2806 = vpop.permute.xlu0 %2805
        %2807 = vrot.lane.b32.xlu0 %v2748, 64
        %v2808 = vpop.permute.xlu0 %2807
        %2809 = vrot.lane.b32.xlu0 %v2749, 64
        %v2810 = vpop.permute.xlu0 %2809
        %2811 = vrot.lane.b32.xlu0 %v2750, 64
        %v2812 = vpop.permute.xlu0 %2811
        %2813 = vrot.lane.b32.xlu0 %v2751, 64
        %v2814 = vpop.permute.xlu0 %2813
        %2815 = vrot.lane.b32.xlu0 %v2752, 64
        %v2816 = vpop.permute.xlu0 %2815
        %2825 = vst.msk [vmem:[#allocation4] sm:$0xff] %vm795, %v2802
        %2826 = vst.msk [vmem:[#allocation4 + $0x8] sm:$0xff] %vm795, %v2804
        %2827 = vst.msk [vmem:[#allocation4 + $0x10] sm:$0xff] %vm795, %v2806
        %2828 = vst.msk [vmem:[#allocation4 + $0x18] sm:$0xff] %vm795, %v2808
        %2829 = vst.msk [vmem:[#allocation4 + $0x20] sm:$0xff] %vm795, %v2810
        %2830 = vst.msk [vmem:[#allocation4 + $0x28] sm:$0xff] %vm795, %v2812
        %2831 = vst.msk [vmem:[#allocation4 + $0x30] sm:$0xff] %vm795, %v2814
        %2832 = vst.msk [vmem:[#allocation4 + $0x38] sm:$0xff] %vm795, %v2816
        %v2833 = vld [vmem:[#allocation4] sm:$0xff]
        %v2834 = vld [vmem:[#allocation4 + $0x8] sm:$0xff]
        %v2835 = vld [vmem:[#allocation4 + $0x10] sm:$0xff]
        %v2836 = vld [vmem:[#allocation4 + $0x18] sm:$0xff]
        %v2837 = vld [vmem:[#allocation4 + $0x20] sm:$0xff]
        %v2838 = vld [vmem:[#allocation4 + $0x28] sm:$0xff]
        %v2839 = vld [vmem:[#allocation4 + $0x30] sm:$0xff]
        %v2840 = vld [vmem:[#allocation4 + $0x38] sm:$0xff]
        %v2841 = vpack.c.bf16 %v2834, %v2833
        %v2842 = vpack.c.bf16 %v2836, %v2835
        %v2843 = vpack.c.bf16 %v2838, %v2837
        %v2844 = vpack.c.bf16 %v2840, %v2839
        %v2845 = vld [vmem:[%s9] sm:$0xff]
        %v2846 = vld [vmem:[%s9 + $0x8] sm:$0xff]
        %v2847 = vld [vmem:[%s9 + $0x10] sm:$0xff]
        %v2848 = vld [vmem:[%s9 + $0x18] sm:$0xff]
        %v2849 = vld [vmem:[%s9 + $0x20] sm:$0xff]
        %v2850 = vld [vmem:[%s9 + $0x28] sm:$0xff]
        %v2851 = vld [vmem:[%s9 + $0x30] sm:$0xff]
        %v2852 = vld [vmem:[%s9 + $0x38] sm:$0xff]
        %v2853 = vld [vmem:[%s9 + $0x40] sm:$0xff]
        %v2854 = vld [vmem:[%s9 + $0x48] sm:$0xff]
        %v2855 = vld [vmem:[%s9 + $0x50] sm:$0xff]
        %v2856 = vld [vmem:[%s9 + $0x58] sm:$0xff]
        %v2857 = vld [vmem:[%s10] sm:$0x3]
        %v2859 = vlaneseq
        %v2860 = vshrl.u32 %v2859, 7
        %v2861 = vsub.s32 0, %v2860
        %v2862 = vrot.slane %v2857, %v2861
        %v2863 = vlaneseq
        %v2864 = vshrl.u32 %v2863, 7
        %v2865 = vsub.s32 1, %v2864
        %v2866 = vrot.slane %v2857, %v2865
        %v2881 = vunpack.c.l.b16 %v2845
        %v2882 = vunpack.c.h.b16 %v2845
        %v2883 = vunpack.c.l.b16 %v2846
        %v2884 = vunpack.c.h.b16 %v2846
        %v2885 = vunpack.c.l.b16 %v2847
        %v2886 = vunpack.c.h.b16 %v2847
        %v2887 = vunpack.c.l.b16 %v2848
        %v2888 = vunpack.c.h.b16 %v2848
        %v2889 = vunpack.c.l.b16 %v2849
        %v2890 = vunpack.c.h.b16 %v2849
        %v2891 = vunpack.c.l.b16 %v2850
        %v2892 = vunpack.c.h.b16 %v2850
        %v2893 = vunpack.c.l.b16 %v2851
        %v2894 = vunpack.c.h.b16 %v2851
        %v2895 = vunpack.c.l.b16 %v2852
        %v2896 = vunpack.c.h.b16 %v2852
        %v2897 = vunpack.c.l.b16 %v2853
        %v2898 = vunpack.c.h.b16 %v2853
        %v2899 = vunpack.c.l.b16 %v2854
        %v2900 = vunpack.c.h.b16 %v2854
        %v2901 = vunpack.c.l.b16 %v2855
        %v2902 = vunpack.c.h.b16 %v2855
        %v2903 = vunpack.c.l.b16 %v2856
        %v2904 = vunpack.c.h.b16 %v2856
        %v2905 = vpack.c.b16 %v2883, %v2881
        %v2906 = vpack.c.b16 %v2884, %v2882
        %v2907 = vpack.c.b16 %v2887, %v2885
        %v2908 = vpack.c.b16 %v2888, %v2886
        %v2909 = vpack.c.b16 %v2891, %v2889
        %v2910 = vpack.c.b16 %v2892, %v2890
        %v2911 = vpack.c.b16 %v2895, %v2893
        %v2912 = vpack.c.b16 %v2896, %v2894
        %v2913 = vpack.c.b16 %v2899, %v2897
        %v2914 = vpack.c.b16 %v2900, %v2898
        %v2915 = vpack.c.b16 %v2903, %v2901
        %v2916 = vpack.c.b16 %v2904, %v2902
        %v2930 = vsel %vm618, %v2841, 0
        %v2933 = vsel %vm618, %v2842, 0
        %v2936 = vsel %vm618, %v2843, 0
        %v2939 = vsel %vm618, %v2844, 0
        %2941 = vmatprep.subr.bf16.mxu0 %v2906
        %2942 = vmatpush1.bf16.msra.mxu0 %v2905
        %2943 = vmatprep.subr.bf16.mxu0 %v2908
        %2944 = vmatpush1.bf16.msra.mxu0 %v2907
        %2945 = vmatprep.subr.bf16.mxu0 %v2910
        %2946 = vmatpush1.bf16.msra.mxu0 %v2909
        %2947 = vmatprep.subr.bf16.mxu0 %v2912
        %2948 = vmatpush1.bf16.msra.mxu0 %v2911
        %2949 = vmatprep.subr.bf16.mxu0 %v2914
        %2950 = vmatpush1.bf16.msra.mxu0 %v2913
        %2951 = vmatprep.subr.bf16.mxu0 %v2916
        %2952 = vmatpush1.bf16.msra.mxu0 %v2915
        %2953 = vmatprep.subr.bf16.mxu0 0
        %2954 = vmatpush1.bf16.msra.mxu0 0
        %2955 = vmatprep.subr.bf16.mxu0 0
        %2956 = vmatpush1.bf16.msra.mxu0 0
        %2957 = vmatprep.subr.bf16.mxu0 0
        %2958 = vmatpush1.bf16.msra.mxu0 0
        %2959 = vmatprep.subr.bf16.mxu0 0
        %2960 = vmatpush1.bf16.msra.mxu0 0
        %2961 = vmatprep.subr.bf16.mxu0 0
        %2962 = vmatpush1.bf16.msra.mxu0 0
        %2963 = vmatprep.subr.bf16.mxu0 0
        %2964 = vmatpush1.bf16.msra.mxu0 0
        %2965 = vmatprep.subr.bf16.mxu0 0
        %2966 = vmatpush1.bf16.msra.mxu0 0
        %2967 = vmatprep.subr.bf16.mxu0 0
        %2968 = vmatpush1.bf16.msra.mxu0 0
        %2969 = vmatprep.subr.bf16.mxu0 0
        %2970 = vmatpush1.bf16.msra.mxu0 0
        %2971 = vmatprep.subr.bf16.mxu0 0
        %2972 = vmatpush1.bf16.msra.mxu0 0
        %2973 = vmatprep.mubr.bf16.mxu0 0
        %2974 = vmatmul.mubr.bf16.gmra.mrb[0].mxu0 %v2930
        %v2975 = vpop.f32.mrb[0].mxu0
        %v2976 = vadd.f32 %v2862, %v2975
        %v2977 = vpop.f32.mrb[0].mxu0
        %v2978 = vadd.f32 %v2866, %v2977
        %v2979 = vpop.f32.mrb[0].mxu0
        %v2980 = vadd.f32 %v2862, %v2979
        %v2981 = vpop.f32.mrb[0].mxu0
        %v2982 = vadd.f32 %v2866, %v2981
        %2983 = vmatprep.mubr.bf16.mxu0 0
        %2984 = vmatmul.mubr.bf16.gmra.mrb[0].mxu0 %v2933
        %v2985 = vpop.f32.mrb[0].mxu0
        %v2986 = vadd.f32 %v2862, %v2985
        %v2987 = vpop.f32.mrb[0].mxu0
        %v2988 = vadd.f32 %v2866, %v2987
        %v2989 = vpop.f32.mrb[0].mxu0
        %v2990 = vadd.f32 %v2862, %v2989
        %v2991 = vpop.f32.mrb[0].mxu0
        %v2992 = vadd.f32 %v2866, %v2991
        %2993 = vmatprep.mubr.bf16.mxu0 0
        %2994 = vmatmul.mubr.bf16.gmra.mrb[0].mxu0 %v2936
        %v2995 = vpop.f32.mrb[0].mxu0
        %v2996 = vadd.f32 %v2862, %v2995
        %v2997 = vpop.f32.mrb[0].mxu0
        %v2998 = vadd.f32 %v2866, %v2997
        %v2999 = vpop.f32.mrb[0].mxu0
        %v3000 = vadd.f32 %v2862, %v2999
        %v3001 = vpop.f32.mrb[0].mxu0
        %v3002 = vadd.f32 %v2866, %v3001
        %3003 = vmatprep.mubr.bf16.mxu0 0
        %3004 = vmatmul.mubr.bf16.gmra.mrb[0].mxu0 %v2939
        %v3005 = vpop.f32.mrb[0].mxu0
        %v3006 = vadd.f32 %v2862, %v3005
        %v3007 = vpop.f32.mrb[0].mxu0
        %v3008 = vadd.f32 %v2866, %v3007
        %v3009 = vpop.f32.mrb[0].mxu0
        %v3010 = vadd.f32 %v2862, %v3009
        %v3011 = vpop.f32.mrb[0].mxu0
        %v3012 = vadd.f32 %v2866, %v3011
        %3013 = vdwg.mxu0
        %v3014 = vmul.f32 %v2976, 0.17
        %v3015 = vmul.f32 %v2978, 0.17
        %v3016 = vmul.f32 %v2980, 0.17
        %v3017 = vmul.f32 %v2982, 0.17
        %v3018 = vmul.f32 %v2986, 0.17
        %v3019 = vmul.f32 %v2988, 0.17
        %v3020 = vmul.f32 %v2990, 0.17
        %v3021 = vmul.f32 %v2992, 0.17
        %v3022 = vmul.f32 %v2996, 0.17
        %v3023 = vmul.f32 %v2998, 0.17
        %v3024 = vmul.f32 %v3000, 0.17
        %v3025 = vmul.f32 %v3002, 0.17
        %v3026 = vmul.f32 %v3006, 0.17
        %v3027 = vmul.f32 %v3008, 0.17
        %v3028 = vmul.f32 %v3010, 0.17
        %v3029 = vmul.f32 %v3012, 0.17
        %v3030 = vadd.f32 %v3014, %v386
        %v3031 = vadd.f32 %v3015, %v387
        %v3032 = vadd.f32 %v3016, %v388
        %v3033 = vadd.f32 %v3017, %v389
        %v3034 = vadd.f32 %v3018, %v390
        %v3035 = vadd.f32 %v3019, %v391
        %v3036 = vadd.f32 %v3020, %v392
        %v3037 = vadd.f32 %v3021, %v393
        %v3038 = vadd.f32 %v3022, %v394
        %v3039 = vadd.f32 %v3023, %v395
        %v3040 = vadd.f32 %v3024, %v396
        %v3041 = vadd.f32 %v3025, %v397
        %v3042 = vadd.f32 %v3026, %v398
        %v3043 = vadd.f32 %v3027, %v399
        %v3044 = vadd.f32 %v3028, %v400
        %v3045 = vadd.f32 %v3029, %v401
        %v3046 = vmax.f32 %v3030, 0.0
        %v3047 = vmax.f32 %v3031, 0.0
        %v3048 = vmax.f32 %v3032, 0.0
        %v3049 = vmax.f32 %v3033, 0.0
        %v3050 = vmax.f32 %v3034, 0.0
        %v3051 = vmax.f32 %v3035, 0.0
        %v3052 = vmax.f32 %v3036, 0.0
        %v3053 = vmax.f32 %v3037, 0.0
        %v3054 = vmax.f32 %v3038, 0.0
        %v3055 = vmax.f32 %v3039, 0.0
        %v3056 = vmax.f32 %v3040, 0.0
        %v3057 = vmax.f32 %v3041, 0.0
        %v3058 = vmax.f32 %v3042, 0.0
        %v3059 = vmax.f32 %v3043, 0.0
        %v3060 = vmax.f32 %v3044, 0.0
        %v3061 = vmax.f32 %v3045, 0.0
        %3062 = vst [vmem:[%s379] sm:$0xff] %v3046
        %3063 = vst [vmem:[%s379 + $0x8] sm:$0xff] %v3047
        %3064 = vst [vmem:[%s379 + $0x10] sm:$0xff] %v3048
        %3065 = vst [vmem:[%s379 + $0x18] sm:$0xff] %v3049
        %3066 = vst [vmem:[%s379 + $0x20] sm:$0xff] %v3050
        %3067 = vst [vmem:[%s379 + $0x28] sm:$0xff] %v3051
        %3068 = vst [vmem:[%s379 + $0x30] sm:$0xff] %v3052
        %3069 = vst [vmem:[%s379 + $0x38] sm:$0xff] %v3053
        %3070 = vst [vmem:[%s379 + $0x40] sm:$0xff] %v3054
        %3071 = vst [vmem:[%s379 + $0x48] sm:$0xff] %v3055
        %3072 = vst [vmem:[%s379 + $0x50] sm:$0xff] %v3056
        %3073 = vst [vmem:[%s379 + $0x58] sm:$0xff] %v3057
        %3074 = vst [vmem:[%s379 + $0x60] sm:$0xff] %v3058
        %3075 = vst [vmem:[%s379 + $0x68] sm:$0xff] %v3059
        %3076 = vst [vmem:[%s379 + $0x70] sm:$0xff] %v3060
        %3077 = vst [vmem:[%s379 + $0x78] sm:$0xff] %v3061
        %s3078 = sand.u32 %s269, 1
        %s3079 = scalar_lea.sflag [#allocation6], %s3078
        %s3080 = sand.u32 %s269, 1
        %s3081 = smul.addr %s3080, 128
        %s3082 = scalar_lea.vmem [#allocation5], %s3081
        // Predicated region
        $region65: #{block35_forward.1} parent=63 // pred_check
          %p3083 = pneg %p279
        $region66: #{block35_forward.1} parent=63 // pred_check_branch
          %3085 = sbr.rel (%p3083) target = $region68
        $region67: #{block35_forward.1} parent=63 // pred_region
          %s3087 = ssub.s32 2048, 2048
          %3088 = vsyncadd %s3079, %s3087
          %s3089 = smul.addr %s25, 16
          %s3090 = smul.addr %s3089, 128
          %s3091 = scalar_lea.hbm %s11, %s3090
          %s3092 = sshll.u32 %s3082, 4
          %s3093 = int_to_ptr.vmem [resolvable:$true] %s3092
          %3098 = dma.vmem_to_hbm [thread:$0]  %s3093, 2048, %s3091, %s3079, 256, 256, 16
        $region68: #{block35_forward.1} parent=63 // pred_fallthru
          _
      $region64: #{block35_forward.1} parent=5 // pred_fallthru
        _
      %p3099 = scmp.le.s32.totalorder 2, %s20
      // Predicated region
      $region69: #{block35_forward.1} parent=5 // pred_check
        %p3100 = pneg %p3099
      $region70: #{block35_forward.1} parent=5 // pred_check_branch
        %3102 = sbr.rel (%p3100) target = $region72
      $region71: #{block35_forward.1} parent=5 // pred_region
        %s3103 = ssub.s32 %s20, 2
        // Predicated region
        $region73: #{block35_forward.1} parent=71 // pred_check
          %p3104 = pneg %p285
        $region74: #{block35_forward.1} parent=71 // pred_check_branch
          %3106 = sbr.rel (%p3104) target = $region76
        $region75: #{block35_forward.1} parent=71 // pred_region
          %s3107 = sand.u32 %s270, 1
          %s3108 = scalar_lea.sflag [#allocation6], %s3107
          %s3109 = sand.u32 %s270, 1
          %s3110 = smul.addr %s3109, 128
          %s3111 = scalar_lea.vmem [#allocation5], %s3110
          %3112 = dma.done %s3108, 2048
        $region76: #{block35_forward.1} parent=71 // pred_fallthru
          _
      $region72: #{block35_forward.1} parent=5 // pred_fallthru
        _
    $region6: #{block35_forward.1} parent=1 // loop_footer
      %s24 = sadd.s32 1, %s20
    $region7: #{block35_forward.1} parent=1 // loop_footer_branch
      %19 = sbr.rel target = $region3
    $region8: #{block35_forward.1} parent=1 // loop_exit
      _
    %3113 = vsyncpa [#allocation6], 1
    %s3114 = scalar_lea.sflag [#allocation6], 1
    %3115 = vsyncpa %s3114, 1

</llo_original>
